<compile_context>
chip_gen: v5e
topology: v5e:2x2
jax: 0.10.0
libtpu: 0.0.40
codegen_flags: <defaults>
</compile_context>

<pallas_src>
import functools

import jax
import jax.numpy as jnp
from jax.experimental import pallas as pl
from jax.experimental.pallas import tpu as pltpu

EPS = 1e-5  # torch.layer_norm default eps


def _round_up(n, m):
  return ((n + m - 1) // m) * m


# ----------------------------- in-kernel helpers -----------------------------

def _sigmoid(x):
  # exact sigmoid expressed through tanh -> routed to the EUP, numerically safe
  return 0.5 * (jnp.tanh(0.5 * x) + 1.0)


def _layer_norm_all(z):
  # torch.layer_norm(z, z.shape[1:]): normalize over ALL (C,H,W) elements of
  # one sample, no affine.  One-pass mean / E[x^2].
  n = z.size
  s1 = jnp.sum(z)
  s2 = jnp.sum(z * z)
  mean = s1 / n
  var = s2 / n - mean * mean
  return (z - mean) * jax.lax.rsqrt(var + EPS)


def _shift_lanes(x, d, hw):
  """shifted[:, j] = x[:, j + d] for 0 <= j + d < hw, else 0 (static d)."""
  if d == 0:
    return x
  ch = x.shape[0]
  if d > 0:
    return jnp.concatenate([x[:, d:], jnp.zeros((ch, d), x.dtype)], axis=1)
  return jnp.concatenate([jnp.zeros((ch, -d), x.dtype), x[:, :hw + d]], axis=1)


def _conv_same(xin, w_taps_ref, b_ref, masks, w_img, k, hw):
  """KxK 'same' conv on a (Cin, HW) slab -> (Cout, HW) in transposed layout.

  out[co, j] = b[co] + sum_taps  W_tap[co, :] @ shift_tap(xin)[:, j]
  """
  p = k // 2
  cout = w_taps_ref.shape[1]
  acc = jnp.zeros((cout, hw), jnp.float32)
  t = 0
  for oy in range(-p, p + 1):
    for ox in range(-p, p + 1):
      d = oy * w_img + ox
      s = _shift_lanes(xin, d, hw)
      if d != 0:
        s = s * masks[t]            # zero 'same'-padding / wrapped-row columns
      acc = acc + jnp.dot(w_taps_ref[t], s,
                          preferred_element_type=jnp.float32)
      t += 1
  return acc + b_ref[...]


# --------------------------------- kernel ------------------------------------

def _causal_lstm_kernel(hid, out_ch, k, h_img, w_img, forget_bias,
                        x_ref, h_ref, c_ref, m_ref, mask_ref,
                        w1_ref, b1_ref, w2_ref, b2_ref, w3_ref, b3_ref,
                        w4_ref, b4_ref, w5_ref, b5_ref,
                        h_out_ref, c_out_ref, m_out_ref):
  hw = h_img * w_img
  x = x_ref[0]                                   # (Cin_p, HW)
  h = h_ref[0]                                   # (hid,   HW)
  c = c_ref[0]                                   # (hid,   HW)
  m = m_ref[0]                                   # (hid,   HW)
  masks = [mask_ref[t] for t in range(k * k)]    # each (1, HW)

  # ---- stage 1: conv_w1(cat[x,h,c]) -> LN -> (g,i,f) -> c_new ----
  z1 = _layer_norm_all(_conv_same(jnp.concatenate([x, h, c], axis=0),
                                  w1_ref, b1_ref, masks, w_img, k, hw))
  g = jnp.tanh(z1[:hid])
  i = _sigmoid(z1[hid:2 * hid])
  f = _sigmoid(z1[2 * hid:3 * hid] + forget_bias)
  c_new = f * c + i * g
  c_out_ref[0] = c_new

  # ---- stage 2: conv_w2(cat[x,c_new,m]) -> LN -> gates ; conv_w3(m) -> m_new
  z2 = _layer_norm_all(_conv_same(jnp.concatenate([x, c_new, m], axis=0),
                                  w2_ref, b2_ref, masks, w_img, k, hw))
  gg = jnp.tanh(z2[:out_ch])
  ii = _sigmoid(z2[out_ch:2 * out_ch])
  ff = _sigmoid(z2[2 * out_ch:3 * out_ch] + forget_bias)
  conv3 = (jnp.dot(w3_ref[...], m, preferred_element_type=jnp.float32)
           + b3_ref[...])                        # 1x1 conv on original m
  m_new = ff * jnp.tanh(conv3) + ii * gg
  m_out_ref[0] = m_new

  # ---- stage 3: conv_w4 -> LN -> o ; conv_w5(cat[c_new,m_new]) -> LN -> h ----
  z4 = _layer_norm_all(_conv_same(jnp.concatenate([x, c_new, m_new], axis=0),
                                  w4_ref, b4_ref, masks, w_img, k, hw))
  o = jnp.tanh(z4)
  z5 = (jnp.dot(w5_ref[...], jnp.concatenate([c_new, m_new], axis=0),
                preferred_element_type=jnp.float32) + b5_ref[...])
  z5 = _layer_norm_all(z5)
  h_out_ref[0] = o * jnp.tanh(z5)


# ----------------------------- plain-JAX glue ---------------------------------

def _make_masks(h_img, w_img, k):
  """(k*k, 1, H*W) float masks: 1 where the shifted tap hits a valid pixel."""
  p = k // 2
  yy = jnp.arange(h_img).reshape(h_img, 1)
  xx = jnp.arange(w_img).reshape(1, w_img)
  ms = []
  for oy in range(-p, p + 1):
    for ox in range(-p, p + 1):
      valid = ((yy + oy >= 0) & (yy + oy < h_img) &
               (xx + ox >= 0) & (xx + ox < w_img))
      ms.append(valid.reshape(1, h_img * w_img))
  return jnp.stack(ms, axis=0).astype(jnp.float32)


def _prep_conv_w(w, split_sizes, padded_sizes, k):
  """PyTorch (Cout, Cin, kH, kW) -> (kH*kW, Cout, Cin_padded) tap matrices.

  The input-channel axis is split into its source blocks (x / h / c / m) and
  each block is zero-padded so the in-kernel channel concatenation stays
  sublane(8)-aligned."""
  w = w.astype(jnp.float32)
  parts, off = [], 0
  for s, pz in zip(split_sizes, padded_sizes):
    blk = w[:, off:off + s]
    if pz > s:
      blk = jnp.pad(blk, ((0, 0), (0, pz - s), (0, 0), (0, 0)))
    parts.append(blk)
    off += s
  wp = jnp.concatenate(parts, axis=1)                    # (Cout, Cp, k, k)
  co, cp = wp.shape[0], wp.shape[1]
  return jnp.transpose(wp, (2, 3, 0, 1)).reshape(k * k, co, cp)


def init_params(key, in_ch, hid, out_ch, k):
  shapes = [
      ("w1", (3 * hid, in_ch + 2 * hid, k, k)), ("b1", (3 * hid,)),
      ("w2", (3 * out_ch, in_ch + 2 * hid, k, k)), ("b2", (3 * out_ch,)),
      ("w3", (out_ch, hid, 1, 1)), ("b3", (out_ch,)),
      ("w4", (hid, in_ch + hid + out_ch, k, k)), ("b4", (hid,)),
      ("w5", (hid, hid + out_ch, 1, 1)), ("b5", (hid,)),
  ]
  keys = jax.random.split(key, len(shapes))
  return {name: 0.1 * jax.random.normal(kk, shp, jnp.float32)
          for kk, (name, shp) in zip(keys, shapes)}


def causal_lstm_forward(params, x, h, c, m, *, in_ch, hid, out_ch, k,
                        forget_bias=0.01):
  """Inputs/outputs are NCHW (PyTorch convention)."""
  B, _, H, W = x.shape
  HW = H * W
  cin_p = _round_up(in_ch, 8)
  f32 = jnp.float32

  x_f = jnp.pad(x.astype(f32).reshape(B, in_ch, HW),
                ((0, 0), (0, cin_p - in_ch), (0, 0)))
  h_f = h.astype(f32).reshape(B, hid, HW)
  c_f = c.astype(f32).reshape(B, hid, HW)
  m_f = m.astype(f32).reshape(B, hid, HW)
  masks = _make_masks(H, W, k)

  w1 = _prep_conv_w(params["w1"], (in_ch, hid, hid), (cin_p, hid, hid), k)
  w2 = _prep_conv_w(params["w2"], (in_ch, hid, hid), (cin_p, hid, hid), k)
  w4 = _prep_conv_w(params["w4"], (in_ch, hid, out_ch), (cin_p, hid, out_ch), k)
  w3 = params["w3"].astype(f32).reshape(out_ch, hid)
  w5 = params["w5"].astype(f32).reshape(hid, hid + out_ch)
  b1 = params["b1"].astype(f32).reshape(-1, 1)
  b2 = params["b2"].astype(f32).reshape(-1, 1)
  b3 = params["b3"].astype(f32).reshape(-1, 1)
  b4 = params["b4"].astype(f32).reshape(-1, 1)
  b5 = params["b5"].astype(f32).reshape(-1, 1)

  def sample_spec(ch):
    return pl.BlockSpec((1, ch, HW), lambda b: (b, 0, 0))

  def full_spec(a):
    nd = a.ndim
    return pl.BlockSpec(a.shape, lambda b: (0,) * nd)

  kernel = functools.partial(_causal_lstm_kernel, hid, out_ch, k, H, W,
                             forget_bias)

  h_new, c_new, m_new = pl.pallas_call(
      kernel,
      out_shape=(jax.ShapeDtypeStruct((B, hid, HW), f32),
                 jax.ShapeDtypeStruct((B, hid, HW), f32),
                 jax.ShapeDtypeStruct((B, out_ch, HW), f32)),
      grid=(B,),
      in_specs=[sample_spec(cin_p), sample_spec(hid), sample_spec(hid),
                sample_spec(hid), full_spec(masks),
                full_spec(w1), full_spec(b1), full_spec(w2), full_spec(b2),
                full_spec(w3), full_spec(b3), full_spec(w4), full_spec(b4),
                full_spec(w5), full_spec(b5)],
      out_specs=(sample_spec(hid), sample_spec(hid), sample_spec(out_ch)),
      compiler_params=pltpu.CompilerParams(
          dimension_semantics=("parallel",)),
  )(x_f, h_f, c_f, m_f, masks, w1, b1, w2, b2, w3, b3, w4, b4, w5, b5)

  return (h_new.reshape(B, hid, H, W),
          c_new.reshape(B, hid, H, W),
          m_new.reshape(B, out_ch, H, W))


# ------------------------- pure-JAX reference (check) --------------------------

def _conv_ref(x, w, b, pad):
  out = jax.lax.conv_general_dilated(
      x, w, window_strides=(1, 1), padding=((pad, pad), (pad, pad)),
      dimension_numbers=("NCHW", "OIHW", "NCHW"))
  return out + b[None, :, None, None]


def _ln_ref(z):
  mean = jnp.mean(z, axis=(1, 2, 3), keepdims=True)
  var = jnp.mean((z - mean) ** 2, axis=(1, 2, 3), keepdims=True)
  return (z - mean) / jnp.sqrt(var + EPS)


def causal_lstm_ref(params, x, h, c, m, *, hid, out_ch, k, forget_bias=0.01):
  pad = k // 2
  w1o = _ln_ref(_conv_ref(jnp.concatenate([x, h, c], 1), params["w1"],
                          params["b1"], pad))
  g = jnp.tanh(w1o[:, :hid])
  i = jax.nn.sigmoid(w1o[:, hid:2 * hid])
  f = jax.nn.sigmoid(w1o[:, 2 * hid:] + forget_bias)
  c = f * c + i * g
  w2o = _ln_ref(_conv_ref(jnp.concatenate([x, c, m], 1), params["w2"],
                          params["b2"], pad))
  gg = jnp.tanh(w2o[:, :out_ch])
  ii = jax.nn.sigmoid(w2o[:, out_ch:2 * out_ch])
  ff = jax.nn.sigmoid(w2o[:, 2 * out_ch:] + forget_bias)
  m = ff * jnp.tanh(_conv_ref(m, params["w3"], params["b3"], 0)) + ii * gg
  w4o = _ln_ref(_conv_ref(jnp.concatenate([x, c, m], 1), params["w4"],
                          params["b4"], pad))
  o = jnp.tanh(w4o)
  w5o = _ln_ref(_conv_ref(jnp.concatenate([c, m], 1), params["w5"],
                          params["b5"], 0))
  h = o * jnp.tanh(w5o)
  return h, c, m


# ----------------------------------- main --------------------------------------

if __name__ == "__main__":
  IN_CH, HID, OUT_CH, K = 4, 8, 8, 3
  B, H, W = 2, 16, 16
  FB = 0.01

  key = jax.random.PRNGKey(0)
  kp, kx, kh, kc, km = jax.random.split(key, 5)
  params = init_params(kp, IN_CH, HID, OUT_CH, K)
  x = jax.random.normal(kx, (B, IN_CH, H, W), jnp.float32)
  h0 = jax.random.normal(kh, (B, HID, H, W), jnp.float32)
  c0 = jax.random.normal(kc, (B, HID, H, W), jnp.float32)
  m0 = jax.random.normal(km, (B, HID, H, W), jnp.float32)

  fwd = jax.jit(functools.partial(causal_lstm_forward, in_ch=IN_CH, hid=HID,
                                  out_ch=OUT_CH, k=K, forget_bias=FB))
  h_new, c_new, m_new = fwd(params, x, h0, c0, m0)
  jax.block_until_ready((h_new, c_new, m_new))

  h_ref, c_ref, m_ref = causal_lstm_ref(params, x, h0, c0, m0, hid=HID,
                                        out_ch=OUT_CH, k=K, forget_bias=FB)

  ok = True
  for name, got, ref in (("h", h_new, h_ref), ("c", c_new, c_ref),
                         ("m", m_new, m_ref)):
    err = float(jnp.max(jnp.abs(got - ref)))
    if err > 2e-3:
      ok = False
      print(f"MISMATCH {name}: max abs err = {err}")
  if ok:
    print("KERNEL_OK")
</pallas_src>

<mosaic_0001>
module attributes {stable_mosaic.version = 11 : i64} {
  func.func @_causal_lstm_kernel(%arg0: i32, %arg1: memref<1x8x256xf32, #tpu.memory_space<vmem>>, %arg2: memref<1x8x256xf32, #tpu.memory_space<vmem>>, %arg3: memref<1x8x256xf32, #tpu.memory_space<vmem>>, %arg4: memref<1x8x256xf32, #tpu.memory_space<vmem>>, %arg5: memref<9x1x256xf32, #tpu.memory_space<vmem>>, %arg6: memref<9x24x24xf32, #tpu.memory_space<vmem>>, %arg7: memref<24x1xf32, #tpu.memory_space<vmem>>, %arg8: memref<9x24x24xf32, #tpu.memory_space<vmem>>, %arg9: memref<24x1xf32, #tpu.memory_space<vmem>>, %arg10: memref<8x8xf32, #tpu.memory_space<vmem>>, %arg11: memref<8x1xf32, #tpu.memory_space<vmem>>, %arg12: memref<9x8x24xf32, #tpu.memory_space<vmem>>, %arg13: memref<8x1xf32, #tpu.memory_space<vmem>>, %arg14: memref<8x16xf32, #tpu.memory_space<vmem>>, %arg15: memref<8x1xf32, #tpu.memory_space<vmem>>, %arg16: memref<1x8x256xf32, #tpu.memory_space<vmem>>, %arg17: memref<1x8x256xf32, #tpu.memory_space<vmem>>, %arg18: memref<1x8x256xf32, #tpu.memory_space<vmem>>) attributes {dimension_semantics = [#tpu.dimension_semantics<parallel>], iteration_bounds = array<i64: 2>, scalar_prefetch = 0 : i64, scratch_operands = 0 : i64, tpu.core_type = #tpu.core_type<tc>, window_params = [{transform_indices = @transform_0, window_bounds = array<i64: 1, 8, 256>}, {transform_indices = @transform_1, window_bounds = array<i64: 1, 8, 256>}, {transform_indices = @transform_2, window_bounds = array<i64: 1, 8, 256>}, {transform_indices = @transform_3, window_bounds = array<i64: 1, 8, 256>}, {pipeline_mode = #tpu.pipeline_mode<synchronous>, transform_indices = @transform_4, window_bounds = array<i64: 9, 1, 256>}, {pipeline_mode = #tpu.pipeline_mode<synchronous>, transform_indices = @transform_5, window_bounds = array<i64: 9, 24, 24>}, {pipeline_mode = #tpu.pipeline_mode<synchronous>, transform_indices = @transform_6, window_bounds = array<i64: 24, 1>}, {pipeline_mode = #tpu.pipeline_mode<synchronous>, transform_indices = @transform_7, window_bounds = array<i64: 9, 24, 24>}, {pipeline_mode = #tpu.pipeline_mode<synchronous>, transform_indices = @transform_8, window_bounds = array<i64: 24, 1>}, {pipeline_mode = #tpu.pipeline_mode<synchronous>, transform_indices = @transform_9, window_bounds = array<i64: 8, 8>}, {pipeline_mode = #tpu.pipeline_mode<synchronous>, transform_indices = @transform_10, window_bounds = array<i64: 8, 1>}, {pipeline_mode = #tpu.pipeline_mode<synchronous>, transform_indices = @transform_11, window_bounds = array<i64: 9, 8, 24>}, {pipeline_mode = #tpu.pipeline_mode<synchronous>, transform_indices = @transform_12, window_bounds = array<i64: 8, 1>}, {pipeline_mode = #tpu.pipeline_mode<synchronous>, transform_indices = @transform_13, window_bounds = array<i64: 8, 16>}, {pipeline_mode = #tpu.pipeline_mode<synchronous>, transform_indices = @transform_14, window_bounds = array<i64: 8, 1>}, {transform_indices = @transform_15, window_bounds = array<i64: 1, 8, 256>}, {transform_indices = @transform_16, window_bounds = array<i64: 1, 8, 256>}, {transform_indices = @transform_17, window_bounds = array<i64: 1, 8, 256>}]} {
    %c0 = arith.constant 0 : index
    %c0_0 = arith.constant 0 : index
    %c0_1 = arith.constant 0 : index
    %0 = vector.load %arg1[%c0, %c0_0, %c0_1] : memref<1x8x256xf32, #tpu.memory_space<vmem>>, vector<1x8x256xf32>
    %1 = vector.shape_cast %0 : vector<1x8x256xf32> to vector<8x256xf32>
    %c0_2 = arith.constant 0 : index
    %c0_3 = arith.constant 0 : index
    %c0_4 = arith.constant 0 : index
    %2 = vector.load %arg2[%c0_2, %c0_3, %c0_4] : memref<1x8x256xf32, #tpu.memory_space<vmem>>, vector<1x8x256xf32>
    %3 = vector.shape_cast %2 : vector<1x8x256xf32> to vector<8x256xf32>
    %c0_5 = arith.constant 0 : index
    %c0_6 = arith.constant 0 : index
    %c0_7 = arith.constant 0 : index
    %4 = vector.load %arg3[%c0_5, %c0_6, %c0_7] : memref<1x8x256xf32, #tpu.memory_space<vmem>>, vector<1x8x256xf32>
    %5 = vector.shape_cast %4 : vector<1x8x256xf32> to vector<8x256xf32>
    %c0_8 = arith.constant 0 : index
    %c0_9 = arith.constant 0 : index
    %c0_10 = arith.constant 0 : index
    %6 = vector.load %arg4[%c0_8, %c0_9, %c0_10] : memref<1x8x256xf32, #tpu.memory_space<vmem>>, vector<1x8x256xf32>
    %7 = vector.shape_cast %6 : vector<1x8x256xf32> to vector<8x256xf32>
    %c0_11 = arith.constant 0 : index
    %c0_12 = arith.constant 0 : index
    %c0_13 = arith.constant 0 : index
    %8 = vector.load %arg5[%c0_11, %c0_12, %c0_13] : memref<9x1x256xf32, #tpu.memory_space<vmem>>, vector<1x1x256xf32>
    %9 = vector.shape_cast %8 : vector<1x1x256xf32> to vector<1x256xf32>
    %c1 = arith.constant 1 : index
    %c0_14 = arith.constant 0 : index
    %c0_15 = arith.constant 0 : index
    %10 = vector.load %arg5[%c1, %c0_14, %c0_15] : memref<9x1x256xf32, #tpu.memory_space<vmem>>, vector<1x1x256xf32>
    %11 = vector.shape_cast %10 : vector<1x1x256xf32> to vector<1x256xf32>
    %c2 = arith.constant 2 : index
    %c0_16 = arith.constant 0 : index
    %c0_17 = arith.constant 0 : index
    %12 = vector.load %arg5[%c2, %c0_16, %c0_17] : memref<9x1x256xf32, #tpu.memory_space<vmem>>, vector<1x1x256xf32>
    %13 = vector.shape_cast %12 : vector<1x1x256xf32> to vector<1x256xf32>
    %c3 = arith.constant 3 : index
    %c0_18 = arith.constant 0 : index
    %c0_19 = arith.constant 0 : index
    %14 = vector.load %arg5[%c3, %c0_18, %c0_19] : memref<9x1x256xf32, #tpu.memory_space<vmem>>, vector<1x1x256xf32>
    %15 = vector.shape_cast %14 : vector<1x1x256xf32> to vector<1x256xf32>
    %c5 = arith.constant 5 : index
    %c0_20 = arith.constant 0 : index
    %c0_21 = arith.constant 0 : index
    %16 = vector.load %arg5[%c5, %c0_20, %c0_21] : memref<9x1x256xf32, #tpu.memory_space<vmem>>, vector<1x1x256xf32>
    %17 = vector.shape_cast %16 : vector<1x1x256xf32> to vector<1x256xf32>
    %c6 = arith.constant 6 : index
    %c0_22 = arith.constant 0 : index
    %c0_23 = arith.constant 0 : index
    %18 = vector.load %arg5[%c6, %c0_22, %c0_23] : memref<9x1x256xf32, #tpu.memory_space<vmem>>, vector<1x1x256xf32>
    %19 = vector.shape_cast %18 : vector<1x1x256xf32> to vector<1x256xf32>
    %c7 = arith.constant 7 : index
    %c0_24 = arith.constant 0 : index
    %c0_25 = arith.constant 0 : index
    %20 = vector.load %arg5[%c7, %c0_24, %c0_25] : memref<9x1x256xf32, #tpu.memory_space<vmem>>, vector<1x1x256xf32>
    %21 = vector.shape_cast %20 : vector<1x1x256xf32> to vector<1x256xf32>
    %c8 = arith.constant 8 : index
    %c0_26 = arith.constant 0 : index
    %c0_27 = arith.constant 0 : index
    %22 = vector.load %arg5[%c8, %c0_26, %c0_27] : memref<9x1x256xf32, #tpu.memory_space<vmem>>, vector<1x1x256xf32>
    %23 = vector.shape_cast %22 : vector<1x1x256xf32> to vector<1x256xf32>
    %24 = tpu.concatenate %1, %3, %5 in 0 : vector<8x256xf32>, vector<8x256xf32>, vector<8x256xf32> -> vector<24x256xf32>
    %cst = arith.constant 0.000000e+00 : f32
    %25 = vector.broadcast %cst : f32 to vector<24x256xf32>
    %cst_28 = arith.constant 0.000000e+00 : f32
    %26 = vector.broadcast %cst_28 : f32 to vector<24x17xf32>
    %27 = vector.extract_strided_slice %24 {offsets = [0, 0], sizes = [24, 239], strides = [1, 1]} : vector<24x256xf32> to vector<24x239xf32>
    %28 = tpu.concatenate %26, %27 in 1 : vector<24x17xf32>, vector<24x239xf32> -> vector<24x256xf32>
    %29 = vector.broadcast %9 : vector<1x256xf32> to vector<24x256xf32>
    %30 = arith.mulf %28, %29 : vector<24x256xf32>
    %c0_29 = arith.constant 0 : index
    %c0_30 = arith.constant 0 : index
    %c0_31 = arith.constant 0 : index
    %31 = vector.load %arg6[%c0_29, %c0_30, %c0_31] : memref<9x24x24xf32, #tpu.memory_space<vmem>>, vector<1x24x24xf32>
    %32 = vector.shape_cast %31 : vector<1x24x24xf32> to vector<24x24xf32>
    %cst_32 = arith.constant dense<0.000000e+00> : vector<24x256xf32>
    %33 = tpu.matmul %32, %30, %cst_32 {dimension_numbers = #tpu.dot_dimension_numbers<[1], [0], [0], [1], [0, 0, 1, 1], [], []>} : vector<24x24xf32>, vector<24x256xf32>, vector<24x256xf32> -> vector<24x256xf32>
    %34 = arith.addf %25, %33 : vector<24x256xf32>
    %cst_33 = arith.constant 0.000000e+00 : f32
    %35 = vector.broadcast %cst_33 : f32 to vector<24x16xf32>
    %36 = vector.extract_strided_slice %24 {offsets = [0, 0], sizes = [24, 240], strides = [1, 1]} : vector<24x256xf32> to vector<24x240xf32>
    %37 = tpu.concatenate %35, %36 in 1 : vector<24x16xf32>, vector<24x240xf32> -> vector<24x256xf32>
    %38 = vector.broadcast %11 : vector<1x256xf32> to vector<24x256xf32>
    %39 = arith.mulf %37, %38 : vector<24x256xf32>
    %c1_34 = arith.constant 1 : index
    %c0_35 = arith.constant 0 : index
    %c0_36 = arith.constant 0 : index
    %40 = vector.load %arg6[%c1_34, %c0_35, %c0_36] : memref<9x24x24xf32, #tpu.memory_space<vmem>>, vector<1x24x24xf32>
    %41 = vector.shape_cast %40 : vector<1x24x24xf32> to vector<24x24xf32>
    %cst_37 = arith.constant dense<0.000000e+00> : vector<24x256xf32>
    %42 = tpu.matmul %41, %39, %cst_37 {dimension_numbers = #tpu.dot_dimension_numbers<[1], [0], [0], [1], [0, 0, 1, 1], [], []>} : vector<24x24xf32>, vector<24x256xf32>, vector<24x256xf32> -> vector<24x256xf32>
    %43 = arith.addf %34, %42 : vector<24x256xf32>
    %cst_38 = arith.constant 0.000000e+00 : f32
    %44 = vector.broadcast %cst_38 : f32 to vector<24x15xf32>
    %45 = vector.extract_strided_slice %24 {offsets = [0, 0], sizes = [24, 241], strides = [1, 1]} : vector<24x256xf32> to vector<24x241xf32>
    %46 = tpu.concatenate %44, %45 in 1 : vector<24x15xf32>, vector<24x241xf32> -> vector<24x256xf32>
    %47 = vector.broadcast %13 : vector<1x256xf32> to vector<24x256xf32>
    %48 = arith.mulf %46, %47 : vector<24x256xf32>
    %c2_39 = arith.constant 2 : index
    %c0_40 = arith.constant 0 : index
    %c0_41 = arith.constant 0 : index
    %49 = vector.load %arg6[%c2_39, %c0_40, %c0_41] : memref<9x24x24xf32, #tpu.memory_space<vmem>>, vector<1x24x24xf32>
    %50 = vector.shape_cast %49 : vector<1x24x24xf32> to vector<24x24xf32>
    %cst_42 = arith.constant dense<0.000000e+00> : vector<24x256xf32>
    %51 = tpu.matmul %50, %48, %cst_42 {dimension_numbers = #tpu.dot_dimension_numbers<[1], [0], [0], [1], [0, 0, 1, 1], [], []>} : vector<24x24xf32>, vector<24x256xf32>, vector<24x256xf32> -> vector<24x256xf32>
    %52 = arith.addf %43, %51 : vector<24x256xf32>
    %cst_43 = arith.constant 0.000000e+00 : f32
    %53 = vector.broadcast %cst_43 : f32 to vector<24x1xf32>
    %54 = vector.extract_strided_slice %24 {offsets = [0, 0], sizes = [24, 255], strides = [1, 1]} : vector<24x256xf32> to vector<24x255xf32>
    %55 = tpu.concatenate %53, %54 in 1 : vector<24x1xf32>, vector<24x255xf32> -> vector<24x256xf32>
    %56 = vector.broadcast %15 : vector<1x256xf32> to vector<24x256xf32>
    %57 = arith.mulf %55, %56 : vector<24x256xf32>
    %c3_44 = arith.constant 3 : index
    %c0_45 = arith.constant 0 : index
    %c0_46 = arith.constant 0 : index
    %58 = vector.load %arg6[%c3_44, %c0_45, %c0_46] : memref<9x24x24xf32, #tpu.memory_space<vmem>>, vector<1x24x24xf32>
    %59 = vector.shape_cast %58 : vector<1x24x24xf32> to vector<24x24xf32>
    %cst_47 = arith.constant dense<0.000000e+00> : vector<24x256xf32>
    %60 = tpu.matmul %59, %57, %cst_47 {dimension_numbers = #tpu.dot_dimension_numbers<[1], [0], [0], [1], [0, 0, 1, 1], [], []>} : vector<24x24xf32>, vector<24x256xf32>, vector<24x256xf32> -> vector<24x256xf32>
    %61 = arith.addf %52, %60 : vector<24x256xf32>
    %c4 = arith.constant 4 : index
    %c0_48 = arith.constant 0 : index
    %c0_49 = arith.constant 0 : index
    %62 = vector.load %arg6[%c4, %c0_48, %c0_49] : memref<9x24x24xf32, #tpu.memory_space<vmem>>, vector<1x24x24xf32>
    %63 = vector.shape_cast %62 : vector<1x24x24xf32> to vector<24x24xf32>
    %cst_50 = arith.constant dense<0.000000e+00> : vector<24x256xf32>
    %64 = tpu.matmul %63, %24, %cst_50 {dimension_numbers = #tpu.dot_dimension_numbers<[1], [0], [0], [1], [0, 0, 1, 1], [], []>} : vector<24x24xf32>, vector<24x256xf32>, vector<24x256xf32> -> vector<24x256xf32>
    %65 = arith.addf %61, %64 : vector<24x256xf32>
    %66 = vector.extract_strided_slice %24 {offsets = [0, 1], sizes = [24, 255], strides = [1, 1]} : vector<24x256xf32> to vector<24x255xf32>
    %cst_51 = arith.constant 0.000000e+00 : f32
    %67 = vector.broadcast %cst_51 : f32 to vector<24x1xf32>
    %68 = tpu.concatenate %66, %67 in 1 : vector<24x255xf32>, vector<24x1xf32> -> vector<24x256xf32>
    %69 = vector.broadcast %17 : vector<1x256xf32> to vector<24x256xf32>
    %70 = arith.mulf %68, %69 : vector<24x256xf32>
    %c5_52 = arith.constant 5 : index
    %c0_53 = arith.constant 0 : index
    %c0_54 = arith.constant 0 : index
    %71 = vector.load %arg6[%c5_52, %c0_53, %c0_54] : memref<9x24x24xf32, #tpu.memory_space<vmem>>, vector<1x24x24xf32>
    %72 = vector.shape_cast %71 : vector<1x24x24xf32> to vector<24x24xf32>
    %cst_55 = arith.constant dense<0.000000e+00> : vector<24x256xf32>
    %73 = tpu.matmul %72, %70, %cst_55 {dimension_numbers = #tpu.dot_dimension_numbers<[1], [0], [0], [1], [0, 0, 1, 1], [], []>} : vector<24x24xf32>, vector<24x256xf32>, vector<24x256xf32> -> vector<24x256xf32>
    %74 = arith.addf %65, %73 : vector<24x256xf32>
    %75 = vector.extract_strided_slice %24 {offsets = [0, 15], sizes = [24, 241], strides = [1, 1]} : vector<24x256xf32> to vector<24x241xf32>
    %cst_56 = arith.constant 0.000000e+00 : f32
    %76 = vector.broadcast %cst_56 : f32 to vector<24x15xf32>
    %77 = tpu.concatenate %75, %76 in 1 : vector<24x241xf32>, vector<24x15xf32> -> vector<24x256xf32>
    %78 = vector.broadcast %19 : vector<1x256xf32> to vector<24x256xf32>
    %79 = arith.mulf %77, %78 : vector<24x256xf32>
    %c6_57 = arith.constant 6 : index
    %c0_58 = arith.constant 0 : index
    %c0_59 = arith.constant 0 : index
    %80 = vector.load %arg6[%c6_57, %c0_58, %c0_59] : memref<9x24x24xf32, #tpu.memory_space<vmem>>, vector<1x24x24xf32>
    %81 = vector.shape_cast %80 : vector<1x24x24xf32> to vector<24x24xf32>
    %cst_60 = arith.constant dense<0.000000e+00> : vector<24x256xf32>
    %82 = tpu.matmul %81, %79, %cst_60 {dimension_numbers = #tpu.dot_dimension_numbers<[1], [0], [0], [1], [0, 0, 1, 1], [], []>} : vector<24x24xf32>, vector<24x256xf32>, vector<24x256xf32> -> vector<24x256xf32>
    %83 = arith.addf %74, %82 : vector<24x256xf32>
    %84 = vector.extract_strided_slice %24 {offsets = [0, 16], sizes = [24, 240], strides = [1, 1]} : vector<24x256xf32> to vector<24x240xf32>
    %cst_61 = arith.constant 0.000000e+00 : f32
    %85 = vector.broadcast %cst_61 : f32 to vector<24x16xf32>
    %86 = tpu.concatenate %84, %85 in 1 : vector<24x240xf32>, vector<24x16xf32> -> vector<24x256xf32>
    %87 = vector.broadcast %21 : vector<1x256xf32> to vector<24x256xf32>
    %88 = arith.mulf %86, %87 : vector<24x256xf32>
    %c7_62 = arith.constant 7 : index
    %c0_63 = arith.constant 0 : index
    %c0_64 = arith.constant 0 : index
    %89 = vector.load %arg6[%c7_62, %c0_63, %c0_64] : memref<9x24x24xf32, #tpu.memory_space<vmem>>, vector<1x24x24xf32>
    %90 = vector.shape_cast %89 : vector<1x24x24xf32> to vector<24x24xf32>
    %cst_65 = arith.constant dense<0.000000e+00> : vector<24x256xf32>
    %91 = tpu.matmul %90, %88, %cst_65 {dimension_numbers = #tpu.dot_dimension_numbers<[1], [0], [0], [1], [0, 0, 1, 1], [], []>} : vector<24x24xf32>, vector<24x256xf32>, vector<24x256xf32> -> vector<24x256xf32>
    %92 = arith.addf %83, %91 : vector<24x256xf32>
    %93 = vector.extract_strided_slice %24 {offsets = [0, 17], sizes = [24, 239], strides = [1, 1]} : vector<24x256xf32> to vector<24x239xf32>
    %cst_66 = arith.constant 0.000000e+00 : f32
    %94 = vector.broadcast %cst_66 : f32 to vector<24x17xf32>
    %95 = tpu.concatenate %93, %94 in 1 : vector<24x239xf32>, vector<24x17xf32> -> vector<24x256xf32>
    %96 = vector.broadcast %23 : vector<1x256xf32> to vector<24x256xf32>
    %97 = arith.mulf %95, %96 : vector<24x256xf32>
    %c8_67 = arith.constant 8 : index
    %c0_68 = arith.constant 0 : index
    %c0_69 = arith.constant 0 : index
    %98 = vector.load %arg6[%c8_67, %c0_68, %c0_69] : memref<9x24x24xf32, #tpu.memory_space<vmem>>, vector<1x24x24xf32>
    %99 = vector.shape_cast %98 : vector<1x24x24xf32> to vector<24x24xf32>
    %cst_70 = arith.constant dense<0.000000e+00> : vector<24x256xf32>
    %100 = tpu.matmul %99, %97, %cst_70 {dimension_numbers = #tpu.dot_dimension_numbers<[1], [0], [0], [1], [0, 0, 1, 1], [], []>} : vector<24x24xf32>, vector<24x256xf32>, vector<24x256xf32> -> vector<24x256xf32>
    %101 = arith.addf %92, %100 : vector<24x256xf32>
    %c0_71 = arith.constant 0 : index
    %c0_72 = arith.constant 0 : index
    %102 = vector.load %arg7[%c0_71, %c0_72] : memref<24x1xf32, #tpu.memory_space<vmem>>, vector<24x1xf32>
    %103 = vector.broadcast %102 : vector<24x1xf32> to vector<24x256xf32>
    %104 = arith.addf %101, %103 : vector<24x256xf32>
    %105 = vector.shape_cast %104 : vector<24x256xf32> to vector<1x24x256xf32>
    %cst_73 = arith.constant dense<0.000000e+00> : vector<1xf32>
    %106 = vector.multi_reduction <add>, %105, %cst_73 [1, 2] : vector<1x24x256xf32> to vector<1xf32>
    %107 = vector.shape_cast %106 : vector<1xf32> to vector<1x1x1xf32>
    %108 = vector.extract %107[0, 0, 0] : f32 from vector<1x1x1xf32>
    %109 = arith.mulf %104, %104 : vector<24x256xf32>
    %110 = vector.shape_cast %109 : vector<24x256xf32> to vector<1x24x256xf32>
    %cst_74 = arith.constant dense<0.000000e+00> : vector<1xf32>
    %111 = vector.multi_reduction <add>, %110, %cst_74 [1, 2] : vector<1x24x256xf32> to vector<1xf32>
    %112 = vector.shape_cast %111 : vector<1xf32> to vector<1x1x1xf32>
    %113 = vector.extract %112[0, 0, 0] : f32 from vector<1x1x1xf32>
    %cst_75 = arith.constant 6.144000e+03 : f32
    %114 = arith.divf %108, %cst_75 : f32
    %cst_76 = arith.constant 6.144000e+03 : f32
    %115 = arith.divf %113, %cst_76 : f32
    %116 = arith.mulf %114, %114 : f32
    %117 = arith.subf %115, %116 : f32
    %118 = vector.broadcast %114 : f32 to vector<24x256xf32>
    %119 = arith.subf %104, %118 : vector<24x256xf32>
    %cst_77 = arith.constant 9.99999974E-6 : f32
    %120 = arith.addf %117, %cst_77 : f32
    %121 = math.rsqrt %120 : f32
    %122 = vector.broadcast %121 : f32 to vector<24x256xf32>
    %123 = arith.mulf %119, %122 : vector<24x256xf32>
    %124 = vector.extract_strided_slice %123 {offsets = [0, 0], sizes = [8, 256], strides = [1, 1]} : vector<24x256xf32> to vector<8x256xf32>
    %125 = math.tanh %124 : vector<8x256xf32>
    %126 = vector.extract_strided_slice %123 {offsets = [8, 0], sizes = [8, 256], strides = [1, 1]} : vector<24x256xf32> to vector<8x256xf32>
    %cst_78 = arith.constant 5.000000e-01 : f32
    %127 = vector.broadcast %cst_78 : f32 to vector<8x256xf32>
    %128 = arith.mulf %127, %126 : vector<8x256xf32>
    %129 = math.tanh %128 : vector<8x256xf32>
    %cst_79 = arith.constant 1.000000e+00 : f32
    %130 = vector.broadcast %cst_79 : f32 to vector<8x256xf32>
    %131 = arith.addf %129, %130 : vector<8x256xf32>
    %cst_80 = arith.constant 5.000000e-01 : f32
    %132 = vector.broadcast %cst_80 : f32 to vector<8x256xf32>
    %133 = arith.mulf %132, %131 : vector<8x256xf32>
    %134 = vector.extract_strided_slice %123 {offsets = [16, 0], sizes = [8, 256], strides = [1, 1]} : vector<24x256xf32> to vector<8x256xf32>
    %cst_81 = arith.constant 0.00999999977 : f32
    %135 = vector.broadcast %cst_81 : f32 to vector<8x256xf32>
    %136 = arith.addf %134, %135 : vector<8x256xf32>
    %cst_82 = arith.constant 5.000000e-01 : f32
    %137 = vector.broadcast %cst_82 : f32 to vector<8x256xf32>
    %138 = arith.mulf %137, %136 : vector<8x256xf32>
    %139 = math.tanh %138 : vector<8x256xf32>
    %cst_83 = arith.constant 1.000000e+00 : f32
    %140 = vector.broadcast %cst_83 : f32 to vector<8x256xf32>
    %141 = arith.addf %139, %140 : vector<8x256xf32>
    %cst_84 = arith.constant 5.000000e-01 : f32
    %142 = vector.broadcast %cst_84 : f32 to vector<8x256xf32>
    %143 = arith.mulf %142, %141 : vector<8x256xf32>
    %144 = arith.mulf %143, %5 : vector<8x256xf32>
    %145 = arith.mulf %133, %125 : vector<8x256xf32>
    %146 = arith.addf %144, %145 : vector<8x256xf32>
    %c0_85 = arith.constant 0 : index
    %c0_86 = arith.constant 0 : index
    %c0_87 = arith.constant 0 : index
    %147 = vector.load %arg17[%c0_85, %c0_86, %c0_87] : memref<1x8x256xf32, #tpu.memory_space<vmem>>, vector<1x8x256xf32>
    %148 = vector.shape_cast %147 : vector<1x8x256xf32> to vector<8x256xf32>
    %149 = vector.shape_cast %146 : vector<8x256xf32> to vector<1x8x256xf32>
    tpu.vector_store %arg17[%c0_85, %c0_86, %c0_87], %149 {strides = array<i32>} : memref<1x8x256xf32, #tpu.memory_space<vmem>>, vector<1x8x256xf32>,
    %150 = tpu.concatenate %1, %146, %7 in 0 : vector<8x256xf32>, vector<8x256xf32>, vector<8x256xf32> -> vector<24x256xf32>
    %cst_88 = arith.constant 0.000000e+00 : f32
    %151 = vector.broadcast %cst_88 : f32 to vector<24x256xf32>
    %cst_89 = arith.constant 0.000000e+00 : f32
    %152 = vector.broadcast %cst_89 : f32 to vector<24x17xf32>
    %153 = vector.extract_strided_slice %150 {offsets = [0, 0], sizes = [24, 239], strides = [1, 1]} : vector<24x256xf32> to vector<24x239xf32>
    %154 = tpu.concatenate %152, %153 in 1 : vector<24x17xf32>, vector<24x239xf32> -> vector<24x256xf32>
    %155 = vector.broadcast %9 : vector<1x256xf32> to vector<24x256xf32>
    %156 = arith.mulf %154, %155 : vector<24x256xf32>
    %c0_90 = arith.constant 0 : index
    %c0_91 = arith.constant 0 : index
    %c0_92 = arith.constant 0 : index
    %157 = vector.load %arg8[%c0_90, %c0_91, %c0_92] : memref<9x24x24xf32, #tpu.memory_space<vmem>>, vector<1x24x24xf32>
    %158 = vector.shape_cast %157 : vector<1x24x24xf32> to vector<24x24xf32>
    %cst_93 = arith.constant dense<0.000000e+00> : vector<24x256xf32>
    %159 = tpu.matmul %158, %156, %cst_93 {dimension_numbers = #tpu.dot_dimension_numbers<[1], [0], [0], [1], [0, 0, 1, 1], [], []>} : vector<24x24xf32>, vector<24x256xf32>, vector<24x256xf32> -> vector<24x256xf32>
    %160 = arith.addf %151, %159 : vector<24x256xf32>
    %cst_94 = arith.constant 0.000000e+00 : f32
    %161 = vector.broadcast %cst_94 : f32 to vector<24x16xf32>
    %162 = vector.extract_strided_slice %150 {offsets = [0, 0], sizes = [24, 240], strides = [1, 1]} : vector<24x256xf32> to vector<24x240xf32>
    %163 = tpu.concatenate %161, %162 in 1 : vector<24x16xf32>, vector<24x240xf32> -> vector<24x256xf32>
    %164 = vector.broadcast %11 : vector<1x256xf32> to vector<24x256xf32>
    %165 = arith.mulf %163, %164 : vector<24x256xf32>
    %c1_95 = arith.constant 1 : index
    %c0_96 = arith.constant 0 : index
    %c0_97 = arith.constant 0 : index
    %166 = vector.load %arg8[%c1_95, %c0_96, %c0_97] : memref<9x24x24xf32, #tpu.memory_space<vmem>>, vector<1x24x24xf32>
    %167 = vector.shape_cast %166 : vector<1x24x24xf32> to vector<24x24xf32>
    %cst_98 = arith.constant dense<0.000000e+00> : vector<24x256xf32>
    %168 = tpu.matmul %167, %165, %cst_98 {dimension_numbers = #tpu.dot_dimension_numbers<[1], [0], [0], [1], [0, 0, 1, 1], [], []>} : vector<24x24xf32>, vector<24x256xf32>, vector<24x256xf32> -> vector<24x256xf32>
    %169 = arith.addf %160, %168 : vector<24x256xf32>
    %cst_99 = arith.constant 0.000000e+00 : f32
    %170 = vector.broadcast %cst_99 : f32 to vector<24x15xf32>
    %171 = vector.extract_strided_slice %150 {offsets = [0, 0], sizes = [24, 241], strides = [1, 1]} : vector<24x256xf32> to vector<24x241xf32>
    %172 = tpu.concatenate %170, %171 in 1 : vector<24x15xf32>, vector<24x241xf32> -> vector<24x256xf32>
    %173 = vector.broadcast %13 : vector<1x256xf32> to vector<24x256xf32>
    %174 = arith.mulf %172, %173 : vector<24x256xf32>
    %c2_100 = arith.constant 2 : index
    %c0_101 = arith.constant 0 : index
    %c0_102 = arith.constant 0 : index
    %175 = vector.load %arg8[%c2_100, %c0_101, %c0_102] : memref<9x24x24xf32, #tpu.memory_space<vmem>>, vector<1x24x24xf32>
    %176 = vector.shape_cast %175 : vector<1x24x24xf32> to vector<24x24xf32>
    %cst_103 = arith.constant dense<0.000000e+00> : vector<24x256xf32>
    %177 = tpu.matmul %176, %174, %cst_103 {dimension_numbers = #tpu.dot_dimension_numbers<[1], [0], [0], [1], [0, 0, 1, 1], [], []>} : vector<24x24xf32>, vector<24x256xf32>, vector<24x256xf32> -> vector<24x256xf32>
    %178 = arith.addf %169, %177 : vector<24x256xf32>
    %cst_104 = arith.constant 0.000000e+00 : f32
    %179 = vector.broadcast %cst_104 : f32 to vector<24x1xf32>
    %180 = vector.extract_strided_slice %150 {offsets = [0, 0], sizes = [24, 255], strides = [1, 1]} : vector<24x256xf32> to vector<24x255xf32>
    %181 = tpu.concatenate %179, %180 in 1 : vector<24x1xf32>, vector<24x255xf32> -> vector<24x256xf32>
    %182 = vector.broadcast %15 : vector<1x256xf32> to vector<24x256xf32>
    %183 = arith.mulf %181, %182 : vector<24x256xf32>
    %c3_105 = arith.constant 3 : index
    %c0_106 = arith.constant 0 : index
    %c0_107 = arith.constant 0 : index
    %184 = vector.load %arg8[%c3_105, %c0_106, %c0_107] : memref<9x24x24xf32, #tpu.memory_space<vmem>>, vector<1x24x24xf32>
    %185 = vector.shape_cast %184 : vector<1x24x24xf32> to vector<24x24xf32>
    %cst_108 = arith.constant dense<0.000000e+00> : vector<24x256xf32>
    %186 = tpu.matmul %185, %183, %cst_108 {dimension_numbers = #tpu.dot_dimension_numbers<[1], [0], [0], [1], [0, 0, 1, 1], [], []>} : vector<24x24xf32>, vector<24x256xf32>, vector<24x256xf32> -> vector<24x256xf32>
    %187 = arith.addf %178, %186 : vector<24x256xf32>
    %c4_109 = arith.constant 4 : index
    %c0_110 = arith.constant 0 : index
    %c0_111 = arith.constant 0 : index
    %188 = vector.load %arg8[%c4_109, %c0_110, %c0_111] : memref<9x24x24xf32, #tpu.memory_space<vmem>>, vector<1x24x24xf32>
    %189 = vector.shape_cast %188 : vector<1x24x24xf32> to vector<24x24xf32>
    %cst_112 = arith.constant dense<0.000000e+00> : vector<24x256xf32>
    %190 = tpu.matmul %189, %150, %cst_112 {dimension_numbers = #tpu.dot_dimension_numbers<[1], [0], [0], [1], [0, 0, 1, 1], [], []>} : vector<24x24xf32>, vector<24x256xf32>, vector<24x256xf32> -> vector<24x256xf32>
    %191 = arith.addf %187, %190 : vector<24x256xf32>
    %192 = vector.extract_strided_slice %150 {offsets = [0, 1], sizes = [24, 255], strides = [1, 1]} : vector<24x256xf32> to vector<24x255xf32>
    %cst_113 = arith.constant 0.000000e+00 : f32
    %193 = vector.broadcast %cst_113 : f32 to vector<24x1xf32>
    %194 = tpu.concatenate %192, %193 in 1 : vector<24x255xf32>, vector<24x1xf32> -> vector<24x256xf32>
    %195 = vector.broadcast %17 : vector<1x256xf32> to vector<24x256xf32>
    %196 = arith.mulf %194, %195 : vector<24x256xf32>
    %c5_114 = arith.constant 5 : index
    %c0_115 = arith.constant 0 : index
    %c0_116 = arith.constant 0 : index
    %197 = vector.load %arg8[%c5_114, %c0_115, %c0_116] : memref<9x24x24xf32, #tpu.memory_space<vmem>>, vector<1x24x24xf32>
    %198 = vector.shape_cast %197 : vector<1x24x24xf32> to vector<24x24xf32>
    %cst_117 = arith.constant dense<0.000000e+00> : vector<24x256xf32>
    %199 = tpu.matmul %198, %196, %cst_117 {dimension_numbers = #tpu.dot_dimension_numbers<[1], [0], [0], [1], [0, 0, 1, 1], [], []>} : vector<24x24xf32>, vector<24x256xf32>, vector<24x256xf32> -> vector<24x256xf32>
    %200 = arith.addf %191, %199 : vector<24x256xf32>
    %201 = vector.extract_strided_slice %150 {offsets = [0, 15], sizes = [24, 241], strides = [1, 1]} : vector<24x256xf32> to vector<24x241xf32>
    %cst_118 = arith.constant 0.000000e+00 : f32
    %202 = vector.broadcast %cst_118 : f32 to vector<24x15xf32>
    %203 = tpu.concatenate %201, %202 in 1 : vector<24x241xf32>, vector<24x15xf32> -> vector<24x256xf32>
    %204 = vector.broadcast %19 : vector<1x256xf32> to vector<24x256xf32>
    %205 = arith.mulf %203, %204 : vector<24x256xf32>
    %c6_119 = arith.constant 6 : index
    %c0_120 = arith.constant 0 : index
    %c0_121 = arith.constant 0 : index
    %206 = vector.load %arg8[%c6_119, %c0_120, %c0_121] : memref<9x24x24xf32, #tpu.memory_space<vmem>>, vector<1x24x24xf32>
    %207 = vector.shape_cast %206 : vector<1x24x24xf32> to vector<24x24xf32>
    %cst_122 = arith.constant dense<0.000000e+00> : vector<24x256xf32>
    %208 = tpu.matmul %207, %205, %cst_122 {dimension_numbers = #tpu.dot_dimension_numbers<[1], [0], [0], [1], [0, 0, 1, 1], [], []>} : vector<24x24xf32>, vector<24x256xf32>, vector<24x256xf32> -> vector<24x256xf32>
    %209 = arith.addf %200, %208 : vector<24x256xf32>
    %210 = vector.extract_strided_slice %150 {offsets = [0, 16], sizes = [24, 240], strides = [1, 1]} : vector<24x256xf32> to vector<24x240xf32>
    %cst_123 = arith.constant 0.000000e+00 : f32
    %211 = vector.broadcast %cst_123 : f32 to vector<24x16xf32>
    %212 = tpu.concatenate %210, %211 in 1 : vector<24x240xf32>, vector<24x16xf32> -> vector<24x256xf32>
    %213 = vector.broadcast %21 : vector<1x256xf32> to vector<24x256xf32>
    %214 = arith.mulf %212, %213 : vector<24x256xf32>
    %c7_124 = arith.constant 7 : index
    %c0_125 = arith.constant 0 : index
    %c0_126 = arith.constant 0 : index
    %215 = vector.load %arg8[%c7_124, %c0_125, %c0_126] : memref<9x24x24xf32, #tpu.memory_space<vmem>>, vector<1x24x24xf32>
    %216 = vector.shape_cast %215 : vector<1x24x24xf32> to vector<24x24xf32>
    %cst_127 = arith.constant dense<0.000000e+00> : vector<24x256xf32>
    %217 = tpu.matmul %216, %214, %cst_127 {dimension_numbers = #tpu.dot_dimension_numbers<[1], [0], [0], [1], [0, 0, 1, 1], [], []>} : vector<24x24xf32>, vector<24x256xf32>, vector<24x256xf32> -> vector<24x256xf32>
    %218 = arith.addf %209, %217 : vector<24x256xf32>
    %219 = vector.extract_strided_slice %150 {offsets = [0, 17], sizes = [24, 239], strides = [1, 1]} : vector<24x256xf32> to vector<24x239xf32>
    %cst_128 = arith.constant 0.000000e+00 : f32
    %220 = vector.broadcast %cst_128 : f32 to vector<24x17xf32>
    %221 = tpu.concatenate %219, %220 in 1 : vector<24x239xf32>, vector<24x17xf32> -> vector<24x256xf32>
    %222 = vector.broadcast %23 : vector<1x256xf32> to vector<24x256xf32>
    %223 = arith.mulf %221, %222 : vector<24x256xf32>
    %c8_129 = arith.constant 8 : index
    %c0_130 = arith.constant 0 : index
    %c0_131 = arith.constant 0 : index
    %224 = vector.load %arg8[%c8_129, %c0_130, %c0_131] : memref<9x24x24xf32, #tpu.memory_space<vmem>>, vector<1x24x24xf32>
    %225 = vector.shape_cast %224 : vector<1x24x24xf32> to vector<24x24xf32>
    %cst_132 = arith.constant dense<0.000000e+00> : vector<24x256xf32>
    %226 = tpu.matmul %225, %223, %cst_132 {dimension_numbers = #tpu.dot_dimension_numbers<[1], [0], [0], [1], [0, 0, 1, 1], [], []>} : vector<24x24xf32>, vector<24x256xf32>, vector<24x256xf32> -> vector<24x256xf32>
    %227 = arith.addf %218, %226 : vector<24x256xf32>
    %c0_133 = arith.constant 0 : index
    %c0_134 = arith.constant 0 : index
    %228 = vector.load %arg9[%c0_133, %c0_134] : memref<24x1xf32, #tpu.memory_space<vmem>>, vector<24x1xf32>
    %229 = vector.broadcast %228 : vector<24x1xf32> to vector<24x256xf32>
    %230 = arith.addf %227, %229 : vector<24x256xf32>
    %231 = vector.shape_cast %230 : vector<24x256xf32> to vector<1x24x256xf32>
    %cst_135 = arith.constant dense<0.000000e+00> : vector<1xf32>
    %232 = vector.multi_reduction <add>, %231, %cst_135 [1, 2] : vector<1x24x256xf32> to vector<1xf32>
    %233 = vector.shape_cast %232 : vector<1xf32> to vector<1x1x1xf32>
    %234 = vector.extract %233[0, 0, 0] : f32 from vector<1x1x1xf32>
    %235 = arith.mulf %230, %230 : vector<24x256xf32>
    %236 = vector.shape_cast %235 : vector<24x256xf32> to vector<1x24x256xf32>
    %cst_136 = arith.constant dense<0.000000e+00> : vector<1xf32>
    %237 = vector.multi_reduction <add>, %236, %cst_136 [1, 2] : vector<1x24x256xf32> to vector<1xf32>
    %238 = vector.shape_cast %237 : vector<1xf32> to vector<1x1x1xf32>
    %239 = vector.extract %238[0, 0, 0] : f32 from vector<1x1x1xf32>
    %cst_137 = arith.constant 6.144000e+03 : f32
    %240 = arith.divf %234, %cst_137 : f32
    %cst_138 = arith.constant 6.144000e+03 : f32
    %241 = arith.divf %239, %cst_138 : f32
    %242 = arith.mulf %240, %240 : f32
    %243 = arith.subf %241, %242 : f32
    %244 = vector.broadcast %240 : f32 to vector<24x256xf32>
    %245 = arith.subf %230, %244 : vector<24x256xf32>
    %cst_139 = arith.constant 9.99999974E-6 : f32
    %246 = arith.addf %243, %cst_139 : f32
    %247 = math.rsqrt %246 : f32
    %248 = vector.broadcast %247 : f32 to vector<24x256xf32>
    %249 = arith.mulf %245, %248 : vector<24x256xf32>
    %250 = vector.extract_strided_slice %249 {offsets = [0, 0], sizes = [8, 256], strides = [1, 1]} : vector<24x256xf32> to vector<8x256xf32>
    %251 = math.tanh %250 : vector<8x256xf32>
    %252 = vector.extract_strided_slice %249 {offsets = [8, 0], sizes = [8, 256], strides = [1, 1]} : vector<24x256xf32> to vector<8x256xf32>
    %cst_140 = arith.constant 5.000000e-01 : f32
    %253 = vector.broadcast %cst_140 : f32 to vector<8x256xf32>
    %254 = arith.mulf %253, %252 : vector<8x256xf32>
    %255 = math.tanh %254 : vector<8x256xf32>
    %cst_141 = arith.constant 1.000000e+00 : f32
    %256 = vector.broadcast %cst_141 : f32 to vector<8x256xf32>
    %257 = arith.addf %255, %256 : vector<8x256xf32>
    %cst_142 = arith.constant 5.000000e-01 : f32
    %258 = vector.broadcast %cst_142 : f32 to vector<8x256xf32>
    %259 = arith.mulf %258, %257 : vector<8x256xf32>
    %260 = vector.extract_strided_slice %249 {offsets = [16, 0], sizes = [8, 256], strides = [1, 1]} : vector<24x256xf32> to vector<8x256xf32>
    %cst_143 = arith.constant 0.00999999977 : f32
    %261 = vector.broadcast %cst_143 : f32 to vector<8x256xf32>
    %262 = arith.addf %260, %261 : vector<8x256xf32>
    %cst_144 = arith.constant 5.000000e-01 : f32
    %263 = vector.broadcast %cst_144 : f32 to vector<8x256xf32>
    %264 = arith.mulf %263, %262 : vector<8x256xf32>
    %265 = math.tanh %264 : vector<8x256xf32>
    %cst_145 = arith.constant 1.000000e+00 : f32
    %266 = vector.broadcast %cst_145 : f32 to vector<8x256xf32>
    %267 = arith.addf %265, %266 : vector<8x256xf32>
    %cst_146 = arith.constant 5.000000e-01 : f32
    %268 = vector.broadcast %cst_146 : f32 to vector<8x256xf32>
    %269 = arith.mulf %268, %267 : vector<8x256xf32>
    %c0_147 = arith.constant 0 : index
    %c0_148 = arith.constant 0 : index
    %270 = vector.load %arg10[%c0_147, %c0_148] : memref<8x8xf32, #tpu.memory_space<vmem>>, vector<8x8xf32>
    %cst_149 = arith.constant dense<0.000000e+00> : vector<8x256xf32>
    %271 = tpu.matmul %270, %7, %cst_149 {dimension_numbers = #tpu.dot_dimension_numbers<[1], [0], [0], [1], [0, 0, 1, 1], [], []>} : vector<8x8xf32>, vector<8x256xf32>, vector<8x256xf32> -> vector<8x256xf32>
    %c0_150 = arith.constant 0 : index
    %c0_151 = arith.constant 0 : index
    %272 = vector.load %arg11[%c0_150, %c0_151] : memref<8x1xf32, #tpu.memory_space<vmem>>, vector<8x1xf32>
    %273 = vector.broadcast %272 : vector<8x1xf32> to vector<8x256xf32>
    %274 = arith.addf %271, %273 : vector<8x256xf32>
    %275 = math.tanh %274 : vector<8x256xf32>
    %276 = arith.mulf %269, %275 : vector<8x256xf32>
    %277 = arith.mulf %259, %251 : vector<8x256xf32>
    %278 = arith.addf %276, %277 : vector<8x256xf32>
    %c0_152 = arith.constant 0 : index
    %c0_153 = arith.constant 0 : index
    %c0_154 = arith.constant 0 : index
    %279 = vector.load %arg18[%c0_152, %c0_153, %c0_154] : memref<1x8x256xf32, #tpu.memory_space<vmem>>, vector<1x8x256xf32>
    %280 = vector.shape_cast %279 : vector<1x8x256xf32> to vector<8x256xf32>
    %281 = vector.shape_cast %278 : vector<8x256xf32> to vector<1x8x256xf32>
    tpu.vector_store %arg18[%c0_152, %c0_153, %c0_154], %281 {strides = array<i32>} : memref<1x8x256xf32, #tpu.memory_space<vmem>>, vector<1x8x256xf32>,
    %282 = tpu.concatenate %1, %146, %278 in 0 : vector<8x256xf32>, vector<8x256xf32>, vector<8x256xf32> -> vector<24x256xf32>
    %cst_155 = arith.constant 0.000000e+00 : f32
    %283 = vector.broadcast %cst_155 : f32 to vector<8x256xf32>
    %cst_156 = arith.constant 0.000000e+00 : f32
    %284 = vector.broadcast %cst_156 : f32 to vector<24x17xf32>
    %285 = vector.extract_strided_slice %282 {offsets = [0, 0], sizes = [24, 239], strides = [1, 1]} : vector<24x256xf32> to vector<24x239xf32>
    %286 = tpu.concatenate %284, %285 in 1 : vector<24x17xf32>, vector<24x239xf32> -> vector<24x256xf32>
    %287 = vector.broadcast %9 : vector<1x256xf32> to vector<24x256xf32>
    %288 = arith.mulf %286, %287 : vector<24x256xf32>
    %c0_157 = arith.constant 0 : index
    %c0_158 = arith.constant 0 : index
    %c0_159 = arith.constant 0 : index
    %289 = vector.load %arg12[%c0_157, %c0_158, %c0_159] : memref<9x8x24xf32, #tpu.memory_space<vmem>>, vector<1x8x24xf32>
    %290 = vector.shape_cast %289 : vector<1x8x24xf32> to vector<8x24xf32>
    %cst_160 = arith.constant dense<0.000000e+00> : vector<8x256xf32>
    %291 = tpu.matmul %290, %288, %cst_160 {dimension_numbers = #tpu.dot_dimension_numbers<[1], [0], [0], [1], [0, 0, 1, 1], [], []>} : vector<8x24xf32>, vector<24x256xf32>, vector<8x256xf32> -> vector<8x256xf32>
    %292 = arith.addf %283, %291 : vector<8x256xf32>
    %cst_161 = arith.constant 0.000000e+00 : f32
    %293 = vector.broadcast %cst_161 : f32 to vector<24x16xf32>
    %294 = vector.extract_strided_slice %282 {offsets = [0, 0], sizes = [24, 240], strides = [1, 1]} : vector<24x256xf32> to vector<24x240xf32>
    %295 = tpu.concatenate %293, %294 in 1 : vector<24x16xf32>, vector<24x240xf32> -> vector<24x256xf32>
    %296 = vector.broadcast %11 : vector<1x256xf32> to vector<24x256xf32>
    %297 = arith.mulf %295, %296 : vector<24x256xf32>
    %c1_162 = arith.constant 1 : index
    %c0_163 = arith.constant 0 : index
    %c0_164 = arith.constant 0 : index
    %298 = vector.load %arg12[%c1_162, %c0_163, %c0_164] : memref<9x8x24xf32, #tpu.memory_space<vmem>>, vector<1x8x24xf32>
    %299 = vector.shape_cast %298 : vector<1x8x24xf32> to vector<8x24xf32>
    %cst_165 = arith.constant dense<0.000000e+00> : vector<8x256xf32>
    %300 = tpu.matmul %299, %297, %cst_165 {dimension_numbers = #tpu.dot_dimension_numbers<[1], [0], [0], [1], [0, 0, 1, 1], [], []>} : vector<8x24xf32>, vector<24x256xf32>, vector<8x256xf32> -> vector<8x256xf32>
    %301 = arith.addf %292, %300 : vector<8x256xf32>
    %cst_166 = arith.constant 0.000000e+00 : f32
    %302 = vector.broadcast %cst_166 : f32 to vector<24x15xf32>
    %303 = vector.extract_strided_slice %282 {offsets = [0, 0], sizes = [24, 241], strides = [1, 1]} : vector<24x256xf32> to vector<24x241xf32>
    %304 = tpu.concatenate %302, %303 in 1 : vector<24x15xf32>, vector<24x241xf32> -> vector<24x256xf32>
    %305 = vector.broadcast %13 : vector<1x256xf32> to vector<24x256xf32>
    %306 = arith.mulf %304, %305 : vector<24x256xf32>
    %c2_167 = arith.constant 2 : index
    %c0_168 = arith.constant 0 : index
    %c0_169 = arith.constant 0 : index
    %307 = vector.load %arg12[%c2_167, %c0_168, %c0_169] : memref<9x8x24xf32, #tpu.memory_space<vmem>>, vector<1x8x24xf32>
    %308 = vector.shape_cast %307 : vector<1x8x24xf32> to vector<8x24xf32>
    %cst_170 = arith.constant dense<0.000000e+00> : vector<8x256xf32>
    %309 = tpu.matmul %308, %306, %cst_170 {dimension_numbers = #tpu.dot_dimension_numbers<[1], [0], [0], [1], [0, 0, 1, 1], [], []>} : vector<8x24xf32>, vector<24x256xf32>, vector<8x256xf32> -> vector<8x256xf32>
    %310 = arith.addf %301, %309 : vector<8x256xf32>
    %cst_171 = arith.constant 0.000000e+00 : f32
    %311 = vector.broadcast %cst_171 : f32 to vector<24x1xf32>
    %312 = vector.extract_strided_slice %282 {offsets = [0, 0], sizes = [24, 255], strides = [1, 1]} : vector<24x256xf32> to vector<24x255xf32>
    %313 = tpu.concatenate %311, %312 in 1 : vector<24x1xf32>, vector<24x255xf32> -> vector<24x256xf32>
    %314 = vector.broadcast %15 : vector<1x256xf32> to vector<24x256xf32>
    %315 = arith.mulf %313, %314 : vector<24x256xf32>
    %c3_172 = arith.constant 3 : index
    %c0_173 = arith.constant 0 : index
    %c0_174 = arith.constant 0 : index
    %316 = vector.load %arg12[%c3_172, %c0_173, %c0_174] : memref<9x8x24xf32, #tpu.memory_space<vmem>>, vector<1x8x24xf32>
    %317 = vector.shape_cast %316 : vector<1x8x24xf32> to vector<8x24xf32>
    %cst_175 = arith.constant dense<0.000000e+00> : vector<8x256xf32>
    %318 = tpu.matmul %317, %315, %cst_175 {dimension_numbers = #tpu.dot_dimension_numbers<[1], [0], [0], [1], [0, 0, 1, 1], [], []>} : vector<8x24xf32>, vector<24x256xf32>, vector<8x256xf32> -> vector<8x256xf32>
    %319 = arith.addf %310, %318 : vector<8x256xf32>
    %c4_176 = arith.constant 4 : index
    %c0_177 = arith.constant 0 : index
    %c0_178 = arith.constant 0 : index
    %320 = vector.load %arg12[%c4_176, %c0_177, %c0_178] : memref<9x8x24xf32, #tpu.memory_space<vmem>>, vector<1x8x24xf32>
    %321 = vector.shape_cast %320 : vector<1x8x24xf32> to vector<8x24xf32>
    %cst_179 = arith.constant dense<0.000000e+00> : vector<8x256xf32>
    %322 = tpu.matmul %321, %282, %cst_179 {dimension_numbers = #tpu.dot_dimension_numbers<[1], [0], [0], [1], [0, 0, 1, 1], [], []>} : vector<8x24xf32>, vector<24x256xf32>, vector<8x256xf32> -> vector<8x256xf32>
    %323 = arith.addf %319, %322 : vector<8x256xf32>
    %324 = vector.extract_strided_slice %282 {offsets = [0, 1], sizes = [24, 255], strides = [1, 1]} : vector<24x256xf32> to vector<24x255xf32>
    %cst_180 = arith.constant 0.000000e+00 : f32
    %325 = vector.broadcast %cst_180 : f32 to vector<24x1xf32>
    %326 = tpu.concatenate %324, %325 in 1 : vector<24x255xf32>, vector<24x1xf32> -> vector<24x256xf32>
    %327 = vector.broadcast %17 : vector<1x256xf32> to vector<24x256xf32>
    %328 = arith.mulf %326, %327 : vector<24x256xf32>
    %c5_181 = arith.constant 5 : index
    %c0_182 = arith.constant 0 : index
    %c0_183 = arith.constant 0 : index
    %329 = vector.load %arg12[%c5_181, %c0_182, %c0_183] : memref<9x8x24xf32, #tpu.memory_space<vmem>>, vector<1x8x24xf32>
    %330 = vector.shape_cast %329 : vector<1x8x24xf32> to vector<8x24xf32>
    %cst_184 = arith.constant dense<0.000000e+00> : vector<8x256xf32>
    %331 = tpu.matmul %330, %328, %cst_184 {dimension_numbers = #tpu.dot_dimension_numbers<[1], [0], [0], [1], [0, 0, 1, 1], [], []>} : vector<8x24xf32>, vector<24x256xf32>, vector<8x256xf32> -> vector<8x256xf32>
    %332 = arith.addf %323, %331 : vector<8x256xf32>
    %333 = vector.extract_strided_slice %282 {offsets = [0, 15], sizes = [24, 241], strides = [1, 1]} : vector<24x256xf32> to vector<24x241xf32>
    %cst_185 = arith.constant 0.000000e+00 : f32
    %334 = vector.broadcast %cst_185 : f32 to vector<24x15xf32>
    %335 = tpu.concatenate %333, %334 in 1 : vector<24x241xf32>, vector<24x15xf32> -> vector<24x256xf32>
    %336 = vector.broadcast %19 : vector<1x256xf32> to vector<24x256xf32>
    %337 = arith.mulf %335, %336 : vector<24x256xf32>
    %c6_186 = arith.constant 6 : index
    %c0_187 = arith.constant 0 : index
    %c0_188 = arith.constant 0 : index
    %338 = vector.load %arg12[%c6_186, %c0_187, %c0_188] : memref<9x8x24xf32, #tpu.memory_space<vmem>>, vector<1x8x24xf32>
    %339 = vector.shape_cast %338 : vector<1x8x24xf32> to vector<8x24xf32>
    %cst_189 = arith.constant dense<0.000000e+00> : vector<8x256xf32>
    %340 = tpu.matmul %339, %337, %cst_189 {dimension_numbers = #tpu.dot_dimension_numbers<[1], [0], [0], [1], [0, 0, 1, 1], [], []>} : vector<8x24xf32>, vector<24x256xf32>, vector<8x256xf32> -> vector<8x256xf32>
    %341 = arith.addf %332, %340 : vector<8x256xf32>
    %342 = vector.extract_strided_slice %282 {offsets = [0, 16], sizes = [24, 240], strides = [1, 1]} : vector<24x256xf32> to vector<24x240xf32>
    %cst_190 = arith.constant 0.000000e+00 : f32
    %343 = vector.broadcast %cst_190 : f32 to vector<24x16xf32>
    %344 = tpu.concatenate %342, %343 in 1 : vector<24x240xf32>, vector<24x16xf32> -> vector<24x256xf32>
    %345 = vector.broadcast %21 : vector<1x256xf32> to vector<24x256xf32>
    %346 = arith.mulf %344, %345 : vector<24x256xf32>
    %c7_191 = arith.constant 7 : index
    %c0_192 = arith.constant 0 : index
    %c0_193 = arith.constant 0 : index
    %347 = vector.load %arg12[%c7_191, %c0_192, %c0_193] : memref<9x8x24xf32, #tpu.memory_space<vmem>>, vector<1x8x24xf32>
    %348 = vector.shape_cast %347 : vector<1x8x24xf32> to vector<8x24xf32>
    %cst_194 = arith.constant dense<0.000000e+00> : vector<8x256xf32>
    %349 = tpu.matmul %348, %346, %cst_194 {dimension_numbers = #tpu.dot_dimension_numbers<[1], [0], [0], [1], [0, 0, 1, 1], [], []>} : vector<8x24xf32>, vector<24x256xf32>, vector<8x256xf32> -> vector<8x256xf32>
    %350 = arith.addf %341, %349 : vector<8x256xf32>
    %351 = vector.extract_strided_slice %282 {offsets = [0, 17], sizes = [24, 239], strides = [1, 1]} : vector<24x256xf32> to vector<24x239xf32>
    %cst_195 = arith.constant 0.000000e+00 : f32
    %352 = vector.broadcast %cst_195 : f32 to vector<24x17xf32>
    %353 = tpu.concatenate %351, %352 in 1 : vector<24x239xf32>, vector<24x17xf32> -> vector<24x256xf32>
    %354 = vector.broadcast %23 : vector<1x256xf32> to vector<24x256xf32>
    %355 = arith.mulf %353, %354 : vector<24x256xf32>
    %c8_196 = arith.constant 8 : index
    %c0_197 = arith.constant 0 : index
    %c0_198 = arith.constant 0 : index
    %356 = vector.load %arg12[%c8_196, %c0_197, %c0_198] : memref<9x8x24xf32, #tpu.memory_space<vmem>>, vector<1x8x24xf32>
    %357 = vector.shape_cast %356 : vector<1x8x24xf32> to vector<8x24xf32>
    %cst_199 = arith.constant dense<0.000000e+00> : vector<8x256xf32>
    %358 = tpu.matmul %357, %355, %cst_199 {dimension_numbers = #tpu.dot_dimension_numbers<[1], [0], [0], [1], [0, 0, 1, 1], [], []>} : vector<8x24xf32>, vector<24x256xf32>, vector<8x256xf32> -> vector<8x256xf32>
    %359 = arith.addf %350, %358 : vector<8x256xf32>
    %c0_200 = arith.constant 0 : index
    %c0_201 = arith.constant 0 : index
    %360 = vector.load %arg13[%c0_200, %c0_201] : memref<8x1xf32, #tpu.memory_space<vmem>>, vector<8x1xf32>
    %361 = vector.broadcast %360 : vector<8x1xf32> to vector<8x256xf32>
    %362 = arith.addf %359, %361 : vector<8x256xf32>
    %363 = vector.shape_cast %362 : vector<8x256xf32> to vector<1x8x256xf32>
    %cst_202 = arith.constant dense<0.000000e+00> : vector<1xf32>
    %364 = vector.multi_reduction <add>, %363, %cst_202 [1, 2] : vector<1x8x256xf32> to vector<1xf32>
    %365 = vector.shape_cast %364 : vector<1xf32> to vector<1x1x1xf32>
    %366 = vector.extract %365[0, 0, 0] : f32 from vector<1x1x1xf32>
    %367 = arith.mulf %362, %362 : vector<8x256xf32>
    %368 = vector.shape_cast %367 : vector<8x256xf32> to vector<1x8x256xf32>
    %cst_203 = arith.constant dense<0.000000e+00> : vector<1xf32>
    %369 = vector.multi_reduction <add>, %368, %cst_203 [1, 2] : vector<1x8x256xf32> to vector<1xf32>
    %370 = vector.shape_cast %369 : vector<1xf32> to vector<1x1x1xf32>
    %371 = vector.extract %370[0, 0, 0] : f32 from vector<1x1x1xf32>
    %cst_204 = arith.constant 2.048000e+03 : f32
    %372 = arith.divf %366, %cst_204 : f32
    %cst_205 = arith.constant 2.048000e+03 : f32
    %373 = arith.divf %371, %cst_205 : f32
    %374 = arith.mulf %372, %372 : f32
    %375 = arith.subf %373, %374 : f32
    %376 = vector.broadcast %372 : f32 to vector<8x256xf32>
    %377 = arith.subf %362, %376 : vector<8x256xf32>
    %cst_206 = arith.constant 9.99999974E-6 : f32
    %378 = arith.addf %375, %cst_206 : f32
    %379 = math.rsqrt %378 : f32
    %380 = vector.broadcast %379 : f32 to vector<8x256xf32>
    %381 = arith.mulf %377, %380 : vector<8x256xf32>
    %382 = math.tanh %381 : vector<8x256xf32>
    %c0_207 = arith.constant 0 : index
    %c0_208 = arith.constant 0 : index
    %383 = vector.load %arg14[%c0_207, %c0_208] : memref<8x16xf32, #tpu.memory_space<vmem>>, vector<8x16xf32>
    %384 = tpu.concatenate %146, %278 in 0 : vector<8x256xf32>, vector<8x256xf32> -> vector<16x256xf32>
    %cst_209 = arith.constant dense<0.000000e+00> : vector<8x256xf32>
    %385 = tpu.matmul %383, %384, %cst_209 {dimension_numbers = #tpu.dot_dimension_numbers<[1], [0], [0], [1], [0, 0, 1, 1], [], []>} : vector<8x16xf32>, vector<16x256xf32>, vector<8x256xf32> -> vector<8x256xf32>
    %c0_210 = arith.constant 0 : index
    %c0_211 = arith.constant 0 : index
    %386 = vector.load %arg15[%c0_210, %c0_211] : memref<8x1xf32, #tpu.memory_space<vmem>>, vector<8x1xf32>
    %387 = vector.broadcast %386 : vector<8x1xf32> to vector<8x256xf32>
    %388 = arith.addf %385, %387 : vector<8x256xf32>
    %389 = vector.shape_cast %388 : vector<8x256xf32> to vector<1x8x256xf32>
    %cst_212 = arith.constant dense<0.000000e+00> : vector<1xf32>
    %390 = vector.multi_reduction <add>, %389, %cst_212 [1, 2] : vector<1x8x256xf32> to vector<1xf32>
    %391 = vector.shape_cast %390 : vector<1xf32> to vector<1x1x1xf32>
    %392 = vector.extract %391[0, 0, 0] : f32 from vector<1x1x1xf32>
    %393 = arith.mulf %388, %388 : vector<8x256xf32>
    %394 = vector.shape_cast %393 : vector<8x256xf32> to vector<1x8x256xf32>
    %cst_213 = arith.constant dense<0.000000e+00> : vector<1xf32>
    %395 = vector.multi_reduction <add>, %394, %cst_213 [1, 2] : vector<1x8x256xf32> to vector<1xf32>
    %396 = vector.shape_cast %395 : vector<1xf32> to vector<1x1x1xf32>
    %397 = vector.extract %396[0, 0, 0] : f32 from vector<1x1x1xf32>
    %cst_214 = arith.constant 2.048000e+03 : f32
    %398 = arith.divf %392, %cst_214 : f32
    %cst_215 = arith.constant 2.048000e+03 : f32
    %399 = arith.divf %397, %cst_215 : f32
    %400 = arith.mulf %398, %398 : f32
    %401 = arith.subf %399, %400 : f32
    %402 = vector.broadcast %398 : f32 to vector<8x256xf32>
    %403 = arith.subf %388, %402 : vector<8x256xf32>
    %cst_216 = arith.constant 9.99999974E-6 : f32
    %404 = arith.addf %401, %cst_216 : f32
    %405 = math.rsqrt %404 : f32
    %406 = vector.broadcast %405 : f32 to vector<8x256xf32>
    %407 = arith.mulf %403, %406 : vector<8x256xf32>
    %408 = math.tanh %407 : vector<8x256xf32>
    %409 = arith.mulf %382, %408 : vector<8x256xf32>
    %c0_217 = arith.constant 0 : index
    %c0_218 = arith.constant 0 : index
    %c0_219 = arith.constant 0 : index
    %410 = vector.load %arg16[%c0_217, %c0_218, %c0_219] : memref<1x8x256xf32, #tpu.memory_space<vmem>>, vector<1x8x256xf32>
    %411 = vector.shape_cast %410 : vector<1x8x256xf32> to vector<8x256xf32>
    %412 = vector.shape_cast %409 : vector<8x256xf32> to vector<1x8x256xf32>
    tpu.vector_store %arg16[%c0_217, %c0_218, %c0_219], %412 {strides = array<i32>} : memref<1x8x256xf32, #tpu.memory_space<vmem>>, vector<1x8x256xf32>,
    return
  }
  func.func @transform_0(%arg0: i32) -> (i32, i32, i32) {
    %c0_i32 = arith.constant 0 : i32
    %c0_i32_0 = arith.constant 0 : i32
    %c0_i32_1 = arith.constant 0 : i32
    return %arg0, %c0_i32, %c0_i32_0 : i32, i32, i32
  }
  func.func @transform_1(%arg0: i32) -> (i32, i32, i32) {
    %c0_i32 = arith.constant 0 : i32
    %c0_i32_0 = arith.constant 0 : i32
    %c0_i32_1 = arith.constant 0 : i32
    return %arg0, %c0_i32, %c0_i32_0 : i32, i32, i32
  }
  func.func @transform_2(%arg0: i32) -> (i32, i32, i32) {
    %c0_i32 = arith.constant 0 : i32
    %c0_i32_0 = arith.constant 0 : i32
    %c0_i32_1 = arith.constant 0 : i32
    return %arg0, %c0_i32, %c0_i32_0 : i32, i32, i32
  }
  func.func @transform_3(%arg0: i32) -> (i32, i32, i32) {
    %c0_i32 = arith.constant 0 : i32
    %c0_i32_0 = arith.constant 0 : i32
    %c0_i32_1 = arith.constant 0 : i32
    return %arg0, %c0_i32, %c0_i32_0 : i32, i32, i32
  }
  func.func @transform_4(%arg0: i32) -> (i32, i32, i32) {
    %c0_i32 = arith.constant 0 : i32
    %c0_i32_0 = arith.constant 0 : i32
    %c0_i32_1 = arith.constant 0 : i32
    %c0_i32_2 = arith.constant 0 : i32
    return %c0_i32, %c0_i32_0, %c0_i32_1 : i32, i32, i32
  }
  func.func @transform_5(%arg0: i32) -> (i32, i32, i32) {
    %c0_i32 = arith.constant 0 : i32
    %c0_i32_0 = arith.constant 0 : i32
    %c0_i32_1 = arith.constant 0 : i32
    %c0_i32_2 = arith.constant 0 : i32
    return %c0_i32, %c0_i32_0, %c0_i32_1 : i32, i32, i32
  }
  func.func @transform_6(%arg0: i32) -> (i32, i32) {
    %c0_i32 = arith.constant 0 : i32
    %c0_i32_0 = arith.constant 0 : i32
    %c0_i32_1 = arith.constant 0 : i32
    return %c0_i32, %c0_i32_0 : i32, i32
  }
  func.func @transform_7(%arg0: i32) -> (i32, i32, i32) {
    %c0_i32 = arith.constant 0 : i32
    %c0_i32_0 = arith.constant 0 : i32
    %c0_i32_1 = arith.constant 0 : i32
    %c0_i32_2 = arith.constant 0 : i32
    return %c0_i32, %c0_i32_0, %c0_i32_1 : i32, i32, i32
  }
  func.func @transform_8(%arg0: i32) -> (i32, i32) {
    %c0_i32 = arith.constant 0 : i32
    %c0_i32_0 = arith.constant 0 : i32
    %c0_i32_1 = arith.constant 0 : i32
    return %c0_i32, %c0_i32_0 : i32, i32
  }
  func.func @transform_9(%arg0: i32) -> (i32, i32) {
    %c0_i32 = arith.constant 0 : i32
    %c0_i32_0 = arith.constant 0 : i32
    %c0_i32_1 = arith.constant 0 : i32
    return %c0_i32, %c0_i32_0 : i32, i32
  }
  func.func @transform_10(%arg0: i32) -> (i32, i32) {
    %c0_i32 = arith.constant 0 : i32
    %c0_i32_0 = arith.constant 0 : i32
    %c0_i32_1 = arith.constant 0 : i32
    return %c0_i32, %c0_i32_0 : i32, i32
  }
  func.func @transform_11(%arg0: i32) -> (i32, i32, i32) {
    %c0_i32 = arith.constant 0 : i32
    %c0_i32_0 = arith.constant 0 : i32
    %c0_i32_1 = arith.constant 0 : i32
    %c0_i32_2 = arith.constant 0 : i32
    return %c0_i32, %c0_i32_0, %c0_i32_1 : i32, i32, i32
  }
  func.func @transform_12(%arg0: i32) -> (i32, i32) {
    %c0_i32 = arith.constant 0 : i32
    %c0_i32_0 = arith.constant 0 : i32
    %c0_i32_1 = arith.constant 0 : i32
    return %c0_i32, %c0_i32_0 : i32, i32
  }
  func.func @transform_13(%arg0: i32) -> (i32, i32) {
    %c0_i32 = arith.constant 0 : i32
    %c0_i32_0 = arith.constant 0 : i32
    %c0_i32_1 = arith.constant 0 : i32
    return %c0_i32, %c0_i32_0 : i32, i32
  }
  func.func @transform_14(%arg0: i32) -> (i32, i32) {
    %c0_i32 = arith.constant 0 : i32
    %c0_i32_0 = arith.constant 0 : i32
    %c0_i32_1 = arith.constant 0 : i32
    return %c0_i32, %c0_i32_0 : i32, i32
  }
  func.func @transform_15(%arg0: i32) -> (i32, i32, i32) {
    %c0_i32 = arith.constant 0 : i32
    %c0_i32_0 = arith.constant 0 : i32
    %c0_i32_1 = arith.constant 0 : i32
    return %arg0, %c0_i32, %c0_i32_0 : i32, i32, i32
  }
  func.func @transform_16(%arg0: i32) -> (i32, i32, i32) {
    %c0_i32 = arith.constant 0 : i32
    %c0_i32_0 = arith.constant 0 : i32
    %c0_i32_1 = arith.constant 0 : i32
    return %arg0, %c0_i32, %c0_i32_0 : i32, i32, i32
  }
  func.func @transform_17(%arg0: i32) -> (i32, i32, i32) {
    %c0_i32 = arith.constant 0 : i32
    %c0_i32_0 = arith.constant 0 : i32
    %c0_i32_1 = arith.constant 0 : i32
    return %arg0, %c0_i32, %c0_i32_0 : i32, i32, i32
  }
}

</mosaic_0001>

<llo_original>
// kernel: causal_lstm_forward.1
$region0: #{causal_lstm_forward.1}
  #allocation0 [shape = 'u32[]', space=smem, size = 0x4, offset = 0x4, fixed_abs, tag = 'smem constant byte address 0x4 - core index']
  #allocation1 [shape = 'u32[72,128]{1,0:T(1,128)}', space=vmem, size = 0x9000, scoped, tag = 'internal scratch']
  %s0 = inlined_call_operand.vmem [shape: f32[2,8,256], index: 0, kind: input, shape index: {}]
  %s1 = inlined_call_operand.vmem [shape: f32[2,8,256], index: 1, kind: input, shape index: {}]
  %s2 = inlined_call_operand.vmem [shape: f32[2,8,256], index: 2, kind: input, shape index: {}]
  %s3 = inlined_call_operand.vmem [shape: f32[2,8,256], index: 3, kind: input, shape index: {}]
  %s4 = inlined_call_operand.vmem [shape: f32[9,1,256], index: 4, kind: input, shape index: {}]
  %s5 = inlined_call_operand.vmem [shape: f32[9,24,24], index: 5, kind: input, shape index: {}]
  %s6 = inlined_call_operand.vmem [shape: f32[24,1], index: 6, kind: input, shape index: {}]
  %s7 = inlined_call_operand.vmem [shape: f32[9,24,24], index: 7, kind: input, shape index: {}]
  %s8 = inlined_call_operand.vmem [shape: f32[24,1], index: 8, kind: input, shape index: {}]
  %s9 = inlined_call_operand.vmem [shape: f32[8,8], index: 9, kind: input, shape index: {}]
  %s10 = inlined_call_operand.vmem [shape: f32[8,1], index: 10, kind: input, shape index: {}]
  %s11 = inlined_call_operand.vmem [shape: f32[9,8,24], index: 11, kind: input, shape index: {}]
  %s12 = inlined_call_operand.vmem [shape: f32[8,1], index: 12, kind: input, shape index: {}]
  %s13 = inlined_call_operand.vmem [shape: f32[8,16], index: 13, kind: input, shape index: {}]
  %s14 = inlined_call_operand.vmem [shape: f32[8,1], index: 14, kind: input, shape index: {}]
  %s15 = inlined_call_operand.vmem [shape: f32[2,8,256], index: 15, kind: output, shape index: {0}]
  %s16 = inlined_call_operand.vmem [shape: f32[2,8,256], index: 16, kind: output, shape index: {1}]
  %s17 = inlined_call_operand.vmem [shape: f32[2,8,256], index: 17, kind: output, shape index: {2}]
  %18 = xla_tuple %s15, %s16, %s17
  %s19 = sld [smem:[#allocation0]]
  $region109: #{causal_lstm_forward.1} parent=0
    _
  %s21 = ssub.s32 1, %s19
  %s22 = scalar_select 0, %s21, %s19
  loop: start=0, step=1, limit=4
  $region2: #{causal_lstm_forward.1} parent=0 // loop_pre_header
    _
  $region3: #{causal_lstm_forward.1} parent=0 // loop_header
    %s24 = sphi 0, %s28
    %p25 = scmp.ge.s32.totalorder %s24, 4
    %s34 = sphi 0, %s36
    %s37 = sphi 0, %s34
    %s38 = sphi 0, %s37
    %s54 = sphi 0, %s38
    %s60 = sphi 0, %s62
    %s63 = sphi 0, %s60
    %s64 = sphi 0, %s63
    %s80 = sphi 0, %s64
    %s86 = sphi 0, %s88
    %s89 = sphi 0, %s86
    %s90 = sphi 0, %s89
    %s106 = sphi 0, %s90
    %s112 = sphi 0, %s114
    %s115 = sphi 0, %s112
    %s116 = sphi 0, %s115
    %s132 = sphi 0, %s116
    %s136 = sphi 0, %s136
    %s138 = sphi 0, %s136
    %s139 = sphi 0, %s138
    %s153 = sphi 0, %s139
    %s157 = sphi 0, %s157
    %s159 = sphi 0, %s157
    %s160 = sphi 0, %s159
    %s174 = sphi 0, %s160
    %s178 = sphi 0, %s178
    %s180 = sphi 0, %s178
    %s181 = sphi 0, %s180
    %s195 = sphi 0, %s181
    %s199 = sphi 0, %s199
    %s201 = sphi 0, %s199
    %s202 = sphi 0, %s201
    %s216 = sphi 0, %s202
    %s220 = sphi 0, %s220
    %s222 = sphi 0, %s220
    %s223 = sphi 0, %s222
    %s237 = sphi 0, %s223
    %s241 = sphi 0, %s241
    %s243 = sphi 0, %s241
    %s244 = sphi 0, %s243
    %s258 = sphi 0, %s244
    %s262 = sphi 0, %s262
    %s264 = sphi 0, %s262
    %s265 = sphi 0, %s264
    %s279 = sphi 0, %s265
    %s283 = sphi 0, %s283
    %s285 = sphi 0, %s283
    %s286 = sphi 0, %s285
    %s300 = sphi 0, %s286
    %s304 = sphi 0, %s304
    %s306 = sphi 0, %s304
    %s307 = sphi 0, %s306
    %s321 = sphi 0, %s307
    %s325 = sphi 0, %s325
    %s327 = sphi 0, %s325
    %s328 = sphi 0, %s327
    %s342 = sphi 0, %s328
    %s346 = sphi 0, %s346
    %s348 = sphi 0, %s346
    %s349 = sphi 0, %s348
    %s363 = sphi 0, %s349
    %s369 = sphi 0, %s371
    %s372 = sphi 0, %s369
    %s373 = sphi 0, %s372
    %s389 = sphi 0, %s373
    %s395 = sphi 0, %s397
    %s398 = sphi 0, %s395
    %s399 = sphi 0, %s398
    %s415 = sphi 0, %s399
    %s421 = sphi 0, %s423
    %s424 = sphi 0, %s421
    %s425 = sphi 0, %s424
    %s441 = sphi 0, %s425
  $region4: #{causal_lstm_forward.1} parent=0 // loop_header_branch
    %27 = sbr.rel (%p25) target = $region8
  $region5: #{causal_lstm_forward.1} parent=0 // loop_body
    %s29 = ssub.s32 %s24, 1
    %s30 = ssub.s32 %s24, 2
    %s31 = sadd.s32 %s24, 1
    %s32 = ssub.s32 %s24, %s31
    %p33 = scmp.eq.s32.totalorder %s32, 0
    %s35 = sadd.s32 %s34, 1
    %s36 = scalar_select %p33, %s34, %s35
    %p39 = pneg %p33
    %p40 = scmp.eq.s32.totalorder %s24, 1
    %p41 = por %p39, %p40
    %p42 = scmp.ne.s32.totalorder %s34, %s37
    %p43 = scmp.eq.s32.totalorder %s24, 0
    %p44 = por %p42, %p43
    %p45 = scmp.ne.s32.totalorder %s34, %s37
    %p46 = scmp.eq.s32.totalorder %s29, 1
    %p47 = por %p45, %p46
    %p48 = scmp.ne.s32.totalorder %s37, %s38
    %p49 = scmp.eq.s32.totalorder %s29, 0
    %p50 = por %p48, %p49
    %p51 = scmp.ne.s32.totalorder %s37, %s38
    %p52 = scmp.eq.s32.totalorder %s30, 1
    %p53 = por %p51, %p52
    %p55 = scmp.ne.s32.totalorder %s38, %s54
    %p56 = scmp.eq.s32.totalorder %s30, 0
    %p57 = por %p55, %p56
    %s58 = ssub.s32 %s24, %s31
    %p59 = scmp.eq.s32.totalorder %s58, 0
    %s61 = sadd.s32 %s60, 1
    %s62 = scalar_select %p59, %s60, %s61
    %p65 = pneg %p59
    %p66 = scmp.eq.s32.totalorder %s24, 1
    %p67 = por %p65, %p66
    %p68 = scmp.ne.s32.totalorder %s60, %s63
    %p69 = scmp.eq.s32.totalorder %s24, 0
    %p70 = por %p68, %p69
    %p71 = scmp.ne.s32.totalorder %s60, %s63
    %p72 = scmp.eq.s32.totalorder %s29, 1
    %p73 = por %p71, %p72
    %p74 = scmp.ne.s32.totalorder %s63, %s64
    %p75 = scmp.eq.s32.totalorder %s29, 0
    %p76 = por %p74, %p75
    %p77 = scmp.ne.s32.totalorder %s63, %s64
    %p78 = scmp.eq.s32.totalorder %s30, 1
    %p79 = por %p77, %p78
    %p81 = scmp.ne.s32.totalorder %s64, %s80
    %p82 = scmp.eq.s32.totalorder %s30, 0
    %p83 = por %p81, %p82
    %s84 = ssub.s32 %s24, %s31
    %p85 = scmp.eq.s32.totalorder %s84, 0
    %s87 = sadd.s32 %s86, 1
    %s88 = scalar_select %p85, %s86, %s87
    %p91 = pneg %p85
    %p92 = scmp.eq.s32.totalorder %s24, 1
    %p93 = por %p91, %p92
    %p94 = scmp.ne.s32.totalorder %s86, %s89
    %p95 = scmp.eq.s32.totalorder %s24, 0
    %p96 = por %p94, %p95
    %p97 = scmp.ne.s32.totalorder %s86, %s89
    %p98 = scmp.eq.s32.totalorder %s29, 1
    %p99 = por %p97, %p98
    %p100 = scmp.ne.s32.totalorder %s89, %s90
    %p101 = scmp.eq.s32.totalorder %s29, 0
    %p102 = por %p100, %p101
    %p103 = scmp.ne.s32.totalorder %s89, %s90
    %p104 = scmp.eq.s32.totalorder %s30, 1
    %p105 = por %p103, %p104
    %p107 = scmp.ne.s32.totalorder %s90, %s106
    %p108 = scmp.eq.s32.totalorder %s30, 0
    %p109 = por %p107, %p108
    %s110 = ssub.s32 %s24, %s31
    %p111 = scmp.eq.s32.totalorder %s110, 0
    %s113 = sadd.s32 %s112, 1
    %s114 = scalar_select %p111, %s112, %s113
    %p117 = pneg %p111
    %p118 = scmp.eq.s32.totalorder %s24, 1
    %p119 = por %p117, %p118
    %p120 = scmp.ne.s32.totalorder %s112, %s115
    %p121 = scmp.eq.s32.totalorder %s24, 0
    %p122 = por %p120, %p121
    %p123 = scmp.ne.s32.totalorder %s112, %s115
    %p124 = scmp.eq.s32.totalorder %s29, 1
    %p125 = por %p123, %p124
    %p126 = scmp.ne.s32.totalorder %s115, %s116
    %p127 = scmp.eq.s32.totalorder %s29, 0
    %p128 = por %p126, %p127
    %p129 = scmp.ne.s32.totalorder %s115, %s116
    %p130 = scmp.eq.s32.totalorder %s30, 1
    %p131 = por %p129, %p130
    %p133 = scmp.ne.s32.totalorder %s116, %s132
    %p134 = scmp.eq.s32.totalorder %s30, 0
    %p135 = por %p133, %p134
    %s137 = sadd.s32 %s136, 1
    %p140 = scmp.eq.s32.totalorder %s24, 1
    %p141 = scmp.ne.s32.totalorder %s136, %s138
    %p142 = scmp.eq.s32.totalorder %s24, 0
    %p143 = por %p141, %p142
    %p144 = scmp.ne.s32.totalorder %s136, %s138
    %p145 = scmp.eq.s32.totalorder %s29, 1
    %p146 = por %p144, %p145
    %p147 = scmp.ne.s32.totalorder %s138, %s139
    %p148 = scmp.eq.s32.totalorder %s29, 0
    %p149 = por %p147, %p148
    %p150 = scmp.ne.s32.totalorder %s138, %s139
    %p151 = scmp.eq.s32.totalorder %s30, 1
    %p152 = por %p150, %p151
    %p154 = scmp.ne.s32.totalorder %s139, %s153
    %p155 = scmp.eq.s32.totalorder %s30, 0
    %p156 = por %p154, %p155
    %s158 = sadd.s32 %s157, 1
    %p161 = scmp.eq.s32.totalorder %s24, 1
    %p162 = scmp.ne.s32.totalorder %s157, %s159
    %p163 = scmp.eq.s32.totalorder %s24, 0
    %p164 = por %p162, %p163
    %p165 = scmp.ne.s32.totalorder %s157, %s159
    %p166 = scmp.eq.s32.totalorder %s29, 1
    %p167 = por %p165, %p166
    %p168 = scmp.ne.s32.totalorder %s159, %s160
    %p169 = scmp.eq.s32.totalorder %s29, 0
    %p170 = por %p168, %p169
    %p171 = scmp.ne.s32.totalorder %s159, %s160
    %p172 = scmp.eq.s32.totalorder %s30, 1
    %p173 = por %p171, %p172
    %p175 = scmp.ne.s32.totalorder %s160, %s174
    %p176 = scmp.eq.s32.totalorder %s30, 0
    %p177 = por %p175, %p176
    %s179 = sadd.s32 %s178, 1
    %p182 = scmp.eq.s32.totalorder %s24, 1
    %p183 = scmp.ne.s32.totalorder %s178, %s180
    %p184 = scmp.eq.s32.totalorder %s24, 0
    %p185 = por %p183, %p184
    %p186 = scmp.ne.s32.totalorder %s178, %s180
    %p187 = scmp.eq.s32.totalorder %s29, 1
    %p188 = por %p186, %p187
    %p189 = scmp.ne.s32.totalorder %s180, %s181
    %p190 = scmp.eq.s32.totalorder %s29, 0
    %p191 = por %p189, %p190
    %p192 = scmp.ne.s32.totalorder %s180, %s181
    %p193 = scmp.eq.s32.totalorder %s30, 1
    %p194 = por %p192, %p193
    %p196 = scmp.ne.s32.totalorder %s181, %s195
    %p197 = scmp.eq.s32.totalorder %s30, 0
    %p198 = por %p196, %p197
    %s200 = sadd.s32 %s199, 1
    %p203 = scmp.eq.s32.totalorder %s24, 1
    %p204 = scmp.ne.s32.totalorder %s199, %s201
    %p205 = scmp.eq.s32.totalorder %s24, 0
    %p206 = por %p204, %p205
    %p207 = scmp.ne.s32.totalorder %s199, %s201
    %p208 = scmp.eq.s32.totalorder %s29, 1
    %p209 = por %p207, %p208
    %p210 = scmp.ne.s32.totalorder %s201, %s202
    %p211 = scmp.eq.s32.totalorder %s29, 0
    %p212 = por %p210, %p211
    %p213 = scmp.ne.s32.totalorder %s201, %s202
    %p214 = scmp.eq.s32.totalorder %s30, 1
    %p215 = por %p213, %p214
    %p217 = scmp.ne.s32.totalorder %s202, %s216
    %p218 = scmp.eq.s32.totalorder %s30, 0
    %p219 = por %p217, %p218
    %s221 = sadd.s32 %s220, 1
    %p224 = scmp.eq.s32.totalorder %s24, 1
    %p225 = scmp.ne.s32.totalorder %s220, %s222
    %p226 = scmp.eq.s32.totalorder %s24, 0
    %p227 = por %p225, %p226
    %p228 = scmp.ne.s32.totalorder %s220, %s222
    %p229 = scmp.eq.s32.totalorder %s29, 1
    %p230 = por %p228, %p229
    %p231 = scmp.ne.s32.totalorder %s222, %s223
    %p232 = scmp.eq.s32.totalorder %s29, 0
    %p233 = por %p231, %p232
    %p234 = scmp.ne.s32.totalorder %s222, %s223
    %p235 = scmp.eq.s32.totalorder %s30, 1
    %p236 = por %p234, %p235
    %p238 = scmp.ne.s32.totalorder %s223, %s237
    %p239 = scmp.eq.s32.totalorder %s30, 0
    %p240 = por %p238, %p239
    %s242 = sadd.s32 %s241, 1
    %p245 = scmp.eq.s32.totalorder %s24, 1
    %p246 = scmp.ne.s32.totalorder %s241, %s243
    %p247 = scmp.eq.s32.totalorder %s24, 0
    %p248 = por %p246, %p247
    %p249 = scmp.ne.s32.totalorder %s241, %s243
    %p250 = scmp.eq.s32.totalorder %s29, 1
    %p251 = por %p249, %p250
    %p252 = scmp.ne.s32.totalorder %s243, %s244
    %p253 = scmp.eq.s32.totalorder %s29, 0
    %p254 = por %p252, %p253
    %p255 = scmp.ne.s32.totalorder %s243, %s244
    %p256 = scmp.eq.s32.totalorder %s30, 1
    %p257 = por %p255, %p256
    %p259 = scmp.ne.s32.totalorder %s244, %s258
    %p260 = scmp.eq.s32.totalorder %s30, 0
    %p261 = por %p259, %p260
    %s263 = sadd.s32 %s262, 1
    %p266 = scmp.eq.s32.totalorder %s24, 1
    %p267 = scmp.ne.s32.totalorder %s262, %s264
    %p268 = scmp.eq.s32.totalorder %s24, 0
    %p269 = por %p267, %p268
    %p270 = scmp.ne.s32.totalorder %s262, %s264
    %p271 = scmp.eq.s32.totalorder %s29, 1
    %p272 = por %p270, %p271
    %p273 = scmp.ne.s32.totalorder %s264, %s265
    %p274 = scmp.eq.s32.totalorder %s29, 0
    %p275 = por %p273, %p274
    %p276 = scmp.ne.s32.totalorder %s264, %s265
    %p277 = scmp.eq.s32.totalorder %s30, 1
    %p278 = por %p276, %p277
    %p280 = scmp.ne.s32.totalorder %s265, %s279
    %p281 = scmp.eq.s32.totalorder %s30, 0
    %p282 = por %p280, %p281
    %s284 = sadd.s32 %s283, 1
    %p287 = scmp.eq.s32.totalorder %s24, 1
    %p288 = scmp.ne.s32.totalorder %s283, %s285
    %p289 = scmp.eq.s32.totalorder %s24, 0
    %p290 = por %p288, %p289
    %p291 = scmp.ne.s32.totalorder %s283, %s285
    %p292 = scmp.eq.s32.totalorder %s29, 1
    %p293 = por %p291, %p292
    %p294 = scmp.ne.s32.totalorder %s285, %s286
    %p295 = scmp.eq.s32.totalorder %s29, 0
    %p296 = por %p294, %p295
    %p297 = scmp.ne.s32.totalorder %s285, %s286
    %p298 = scmp.eq.s32.totalorder %s30, 1
    %p299 = por %p297, %p298
    %p301 = scmp.ne.s32.totalorder %s286, %s300
    %p302 = scmp.eq.s32.totalorder %s30, 0
    %p303 = por %p301, %p302
    %s305 = sadd.s32 %s304, 1
    %p308 = scmp.eq.s32.totalorder %s24, 1
    %p309 = scmp.ne.s32.totalorder %s304, %s306
    %p310 = scmp.eq.s32.totalorder %s24, 0
    %p311 = por %p309, %p310
    %p312 = scmp.ne.s32.totalorder %s304, %s306
    %p313 = scmp.eq.s32.totalorder %s29, 1
    %p314 = por %p312, %p313
    %p315 = scmp.ne.s32.totalorder %s306, %s307
    %p316 = scmp.eq.s32.totalorder %s29, 0
    %p317 = por %p315, %p316
    %p318 = scmp.ne.s32.totalorder %s306, %s307
    %p319 = scmp.eq.s32.totalorder %s30, 1
    %p320 = por %p318, %p319
    %p322 = scmp.ne.s32.totalorder %s307, %s321
    %p323 = scmp.eq.s32.totalorder %s30, 0
    %p324 = por %p322, %p323
    %s326 = sadd.s32 %s325, 1
    %p329 = scmp.eq.s32.totalorder %s24, 1
    %p330 = scmp.ne.s32.totalorder %s325, %s327
    %p331 = scmp.eq.s32.totalorder %s24, 0
    %p332 = por %p330, %p331
    %p333 = scmp.ne.s32.totalorder %s325, %s327
    %p334 = scmp.eq.s32.totalorder %s29, 1
    %p335 = por %p333, %p334
    %p336 = scmp.ne.s32.totalorder %s327, %s328
    %p337 = scmp.eq.s32.totalorder %s29, 0
    %p338 = por %p336, %p337
    %p339 = scmp.ne.s32.totalorder %s327, %s328
    %p340 = scmp.eq.s32.totalorder %s30, 1
    %p341 = por %p339, %p340
    %p343 = scmp.ne.s32.totalorder %s328, %s342
    %p344 = scmp.eq.s32.totalorder %s30, 0
    %p345 = por %p343, %p344
    %s347 = sadd.s32 %s346, 1
    %p350 = scmp.eq.s32.totalorder %s24, 1
    %p351 = scmp.ne.s32.totalorder %s346, %s348
    %p352 = scmp.eq.s32.totalorder %s24, 0
    %p353 = por %p351, %p352
    %p354 = scmp.ne.s32.totalorder %s346, %s348
    %p355 = scmp.eq.s32.totalorder %s29, 1
    %p356 = por %p354, %p355
    %p357 = scmp.ne.s32.totalorder %s348, %s349
    %p358 = scmp.eq.s32.totalorder %s29, 0
    %p359 = por %p357, %p358
    %p360 = scmp.ne.s32.totalorder %s348, %s349
    %p361 = scmp.eq.s32.totalorder %s30, 1
    %p362 = por %p360, %p361
    %p364 = scmp.ne.s32.totalorder %s349, %s363
    %p365 = scmp.eq.s32.totalorder %s30, 0
    %p366 = por %p364, %p365
    %s367 = ssub.s32 %s24, %s31
    %p368 = scmp.eq.s32.totalorder %s367, 0
    %s370 = sadd.s32 %s369, 1
    %s371 = scalar_select %p368, %s369, %s370
    %p374 = pneg %p368
    %p375 = scmp.eq.s32.totalorder %s24, 1
    %p376 = por %p374, %p375
    %p377 = scmp.ne.s32.totalorder %s369, %s372
    %p378 = scmp.eq.s32.totalorder %s24, 0
    %p379 = por %p377, %p378
    %p380 = scmp.ne.s32.totalorder %s369, %s372
    %p381 = scmp.eq.s32.totalorder %s29, 1
    %p382 = por %p380, %p381
    %p383 = scmp.ne.s32.totalorder %s372, %s373
    %p384 = scmp.eq.s32.totalorder %s29, 0
    %p385 = por %p383, %p384
    %p386 = scmp.ne.s32.totalorder %s372, %s373
    %p387 = scmp.eq.s32.totalorder %s30, 1
    %p388 = por %p386, %p387
    %p390 = scmp.ne.s32.totalorder %s373, %s389
    %p391 = scmp.eq.s32.totalorder %s30, 0
    %p392 = por %p390, %p391
    %s393 = ssub.s32 %s24, %s31
    %p394 = scmp.eq.s32.totalorder %s393, 0
    %s396 = sadd.s32 %s395, 1
    %s397 = scalar_select %p394, %s395, %s396
    %p400 = pneg %p394
    %p401 = scmp.eq.s32.totalorder %s24, 1
    %p402 = por %p400, %p401
    %p403 = scmp.ne.s32.totalorder %s395, %s398
    %p404 = scmp.eq.s32.totalorder %s24, 0
    %p405 = por %p403, %p404
    %p406 = scmp.ne.s32.totalorder %s395, %s398
    %p407 = scmp.eq.s32.totalorder %s29, 1
    %p408 = por %p406, %p407
    %p409 = scmp.ne.s32.totalorder %s398, %s399
    %p410 = scmp.eq.s32.totalorder %s29, 0
    %p411 = por %p409, %p410
    %p412 = scmp.ne.s32.totalorder %s398, %s399
    %p413 = scmp.eq.s32.totalorder %s30, 1
    %p414 = por %p412, %p413
    %p416 = scmp.ne.s32.totalorder %s399, %s415
    %p417 = scmp.eq.s32.totalorder %s30, 0
    %p418 = por %p416, %p417
    %s419 = ssub.s32 %s24, %s31
    %p420 = scmp.eq.s32.totalorder %s419, 0
    %s422 = sadd.s32 %s421, 1
    %s423 = scalar_select %p420, %s421, %s422
    %p426 = pneg %p420
    %p427 = scmp.eq.s32.totalorder %s24, 1
    %p428 = por %p426, %p427
    %p429 = scmp.ne.s32.totalorder %s421, %s424
    %p430 = scmp.eq.s32.totalorder %s24, 0
    %p431 = por %p429, %p430
    %p432 = scmp.ne.s32.totalorder %s421, %s424
    %p433 = scmp.eq.s32.totalorder %s29, 1
    %p434 = por %p432, %p433
    %p435 = scmp.ne.s32.totalorder %s424, %s425
    %p436 = scmp.eq.s32.totalorder %s29, 0
    %p437 = por %p435, %p436
    %p438 = scmp.ne.s32.totalorder %s424, %s425
    %p439 = scmp.eq.s32.totalorder %s30, 1
    %p440 = por %p438, %p439
    %p442 = scmp.ne.s32.totalorder %s425, %s441
    %p443 = scmp.eq.s32.totalorder %s30, 0
    %p444 = por %p442, %p443
    %p445 = scmp.le.s32.totalorder 1, %s24
    %p446 = scmp.lt.s32.totalorder %s24, 3
    %p447 = pnand %p445, %p446
    %p448 = pneg %p447
    // Predicated region
    $region9: #{causal_lstm_forward.1} parent=5 // pred_check
      _
    $region10: #{causal_lstm_forward.1} parent=5 // pred_check_branch
      %450 = sbr.rel (%p447) target = $region12
    $region11: #{causal_lstm_forward.1} parent=5 // pred_region
      %s451 = ssub.s32 %s24, 1
      // Predicated region
      $region13: #{causal_lstm_forward.1} parent=11 // pred_check
        %p452 = pneg %p149
      $region14: #{causal_lstm_forward.1} parent=11 // pred_check_branch
        %454 = sbr.rel (%p452) target = $region16
      $region15: #{causal_lstm_forward.1} parent=11 // pred_region
        _
      $region16: #{causal_lstm_forward.1} parent=11 // pred_fallthru
        _
      // Predicated region
      $region17: #{causal_lstm_forward.1} parent=11 // pred_check
        %p455 = pneg %p170
      $region18: #{causal_lstm_forward.1} parent=11 // pred_check_branch
        %457 = sbr.rel (%p455) target = $region20
      $region19: #{causal_lstm_forward.1} parent=11 // pred_region
        _
      $region20: #{causal_lstm_forward.1} parent=11 // pred_fallthru
        _
      // Predicated region
      $region21: #{causal_lstm_forward.1} parent=11 // pred_check
        %p458 = pneg %p191
      $region22: #{causal_lstm_forward.1} parent=11 // pred_check_branch
        %460 = sbr.rel (%p458) target = $region24
      $region23: #{causal_lstm_forward.1} parent=11 // pred_region
        _
      $region24: #{causal_lstm_forward.1} parent=11 // pred_fallthru
        _
      // Predicated region
      $region25: #{causal_lstm_forward.1} parent=11 // pred_check
        %p461 = pneg %p212
      $region26: #{causal_lstm_forward.1} parent=11 // pred_check_branch
        %463 = sbr.rel (%p461) target = $region28
      $region27: #{causal_lstm_forward.1} parent=11 // pred_region
        _
      $region28: #{causal_lstm_forward.1} parent=11 // pred_fallthru
        _
      // Predicated region
      $region29: #{causal_lstm_forward.1} parent=11 // pred_check
        %p464 = pneg %p233
      $region30: #{causal_lstm_forward.1} parent=11 // pred_check_branch
        %466 = sbr.rel (%p464) target = $region32
      $region31: #{causal_lstm_forward.1} parent=11 // pred_region
        _
      $region32: #{causal_lstm_forward.1} parent=11 // pred_fallthru
        _
      // Predicated region
      $region33: #{causal_lstm_forward.1} parent=11 // pred_check
        %p467 = pneg %p254
      $region34: #{causal_lstm_forward.1} parent=11 // pred_check_branch
        %469 = sbr.rel (%p467) target = $region36
      $region35: #{causal_lstm_forward.1} parent=11 // pred_region
        _
      $region36: #{causal_lstm_forward.1} parent=11 // pred_fallthru
        _
      // Predicated region
      $region37: #{causal_lstm_forward.1} parent=11 // pred_check
        %p470 = pneg %p275
      $region38: #{causal_lstm_forward.1} parent=11 // pred_check_branch
        %472 = sbr.rel (%p470) target = $region40
      $region39: #{causal_lstm_forward.1} parent=11 // pred_region
        _
      $region40: #{causal_lstm_forward.1} parent=11 // pred_fallthru
        _
      // Predicated region
      $region41: #{causal_lstm_forward.1} parent=11 // pred_check
        %p473 = pneg %p296
      $region42: #{causal_lstm_forward.1} parent=11 // pred_check_branch
        %475 = sbr.rel (%p473) target = $region44
      $region43: #{causal_lstm_forward.1} parent=11 // pred_region
        _
      $region44: #{causal_lstm_forward.1} parent=11 // pred_fallthru
        _
      // Predicated region
      $region45: #{causal_lstm_forward.1} parent=11 // pred_check
        %p476 = pneg %p317
      $region46: #{causal_lstm_forward.1} parent=11 // pred_check_branch
        %478 = sbr.rel (%p476) target = $region48
      $region47: #{causal_lstm_forward.1} parent=11 // pred_region
        _
      $region48: #{causal_lstm_forward.1} parent=11 // pred_fallthru
        _
      // Predicated region
      $region49: #{causal_lstm_forward.1} parent=11 // pred_check
        %p479 = pneg %p338
      $region50: #{causal_lstm_forward.1} parent=11 // pred_check_branch
        %481 = sbr.rel (%p479) target = $region52
      $region51: #{causal_lstm_forward.1} parent=11 // pred_region
        _
      $region52: #{causal_lstm_forward.1} parent=11 // pred_fallthru
        _
      // Predicated region
      $region53: #{causal_lstm_forward.1} parent=11 // pred_check
        %p482 = pneg %p359
      $region54: #{causal_lstm_forward.1} parent=11 // pred_check_branch
        %484 = sbr.rel (%p482) target = $region56
      $region55: #{causal_lstm_forward.1} parent=11 // pred_region
        _
      $region56: #{causal_lstm_forward.1} parent=11 // pred_fallthru
        _
    $region12: #{causal_lstm_forward.1} parent=5 // pred_fallthru
      _
    %p485 = scmp.lt.s32.totalorder %s24, 2
    // Predicated region
    $region57: #{causal_lstm_forward.1} parent=5 // pred_check
      %p486 = pneg %p485
    $region58: #{causal_lstm_forward.1} parent=5 // pred_check_branch
      %488 = sbr.rel (%p486) target = $region60
    $region59: #{causal_lstm_forward.1} parent=5 // pred_region
      // Predicated region
      $region61: #{causal_lstm_forward.1} parent=59 // pred_check
        %p489 = pneg %p44
      $region62: #{causal_lstm_forward.1} parent=59 // pred_check_branch
        %491 = sbr.rel (%p489) target = $region64
      $region63: #{causal_lstm_forward.1} parent=59 // pred_region
        %p492 = scmp.lt.s32.totalorder %s24, 1
        %s493 = scalar_select %p492, %s24, 1
        %s494 = smul.addr %s493, 2
        %s495 = smul.addr %s494, 8
        %s496 = scalar_lea.vmem %s0, %s495
      $region64: #{causal_lstm_forward.1} parent=59 // pred_fallthru
        _
      // Predicated region
      $region65: #{causal_lstm_forward.1} parent=59 // pred_check
        %p497 = pneg %p70
      $region66: #{causal_lstm_forward.1} parent=59 // pred_check_branch
        %499 = sbr.rel (%p497) target = $region68
      $region67: #{causal_lstm_forward.1} parent=59 // pred_region
        %p500 = scmp.lt.s32.totalorder %s24, 1
        %s501 = scalar_select %p500, %s24, 1
        %s502 = smul.addr %s501, 2
        %s503 = smul.addr %s502, 8
        %s504 = scalar_lea.vmem %s1, %s503
      $region68: #{causal_lstm_forward.1} parent=59 // pred_fallthru
        _
      // Predicated region
      $region69: #{causal_lstm_forward.1} parent=59 // pred_check
        %p505 = pneg %p96
      $region70: #{causal_lstm_forward.1} parent=59 // pred_check_branch
        %507 = sbr.rel (%p505) target = $region72
      $region71: #{causal_lstm_forward.1} parent=59 // pred_region
        %p508 = scmp.lt.s32.totalorder %s24, 1
        %s509 = scalar_select %p508, %s24, 1
        %s510 = smul.addr %s509, 2
        %s511 = smul.addr %s510, 8
        %s512 = scalar_lea.vmem %s2, %s511
      $region72: #{causal_lstm_forward.1} parent=59 // pred_fallthru
        _
      // Predicated region
      $region73: #{causal_lstm_forward.1} parent=59 // pred_check
        %p513 = pneg %p122
      $region74: #{causal_lstm_forward.1} parent=59 // pred_check_branch
        %515 = sbr.rel (%p513) target = $region76
      $region75: #{causal_lstm_forward.1} parent=59 // pred_region
        %p516 = scmp.lt.s32.totalorder %s24, 1
        %s517 = scalar_select %p516, %s24, 1
        %s518 = smul.addr %s517, 2
        %s519 = smul.addr %s518, 8
        %s520 = scalar_lea.vmem %s3, %s519
      $region76: #{causal_lstm_forward.1} parent=59 // pred_fallthru
        _
    $region60: #{causal_lstm_forward.1} parent=5 // pred_fallthru
      _
    %p521 = scmp.le.s32.totalorder 1, %s24
    %p522 = scmp.lt.s32.totalorder %s24, 3
    %p523 = pnand %p521, %p522
    %p524 = pneg %p523
    // Predicated region
    $region77: #{causal_lstm_forward.1} parent=5 // pred_check
      _
    $region78: #{causal_lstm_forward.1} parent=5 // pred_check_branch
      %526 = sbr.rel (%p523) target = $region80
    $region79: #{causal_lstm_forward.1} parent=5 // pred_region
      %s527 = ssub.s32 %s24, 1
      %p528 = scmp.lt.s32.totalorder %s29, 1
      %s529 = scalar_select %p528, %s29, 1
      %s530 = smul.addr %s529, 2
      %s531 = smul.addr %s530, 8
      %s532 = scalar_lea.vmem %s0, %s531
      %p533 = pneg %p50
      %p534 = pneg %p47
      %p535 = scmp.lt.s32.totalorder %s29, 1
      %s536 = scalar_select %p535, %s29, 1
      %s537 = smul.addr %s536, 2
      %s538 = smul.addr %s537, 8
      %s539 = scalar_lea.vmem %s1, %s538
      %p540 = pneg %p76
      %p541 = pneg %p73
      %p542 = scmp.lt.s32.totalorder %s29, 1
      %s543 = scalar_select %p542, %s29, 1
      %s544 = smul.addr %s543, 2
      %s545 = smul.addr %s544, 8
      %s546 = scalar_lea.vmem %s2, %s545
      %p547 = pneg %p102
      %p548 = pneg %p99
      %p549 = scmp.lt.s32.totalorder %s29, 1
      %s550 = scalar_select %p549, %s29, 1
      %s551 = smul.addr %s550, 2
      %s552 = smul.addr %s551, 8
      %s553 = scalar_lea.vmem %s3, %s552
      %p554 = pneg %p128
      %p555 = pneg %p125
      %p556 = pneg %p149
      %p557 = pneg %p146
      %p558 = pneg %p170
      %p559 = pneg %p167
      %p560 = pneg %p191
      %p561 = pneg %p188
      %p562 = pneg %p212
      %p563 = pneg %p209
      %p564 = pneg %p233
      %p565 = pneg %p230
      %p566 = pneg %p254
      %p567 = pneg %p251
      %p568 = pneg %p275
      %p569 = pneg %p272
      %p570 = pneg %p296
      %p571 = pneg %p293
      %p572 = pneg %p317
      %p573 = pneg %p314
      %p574 = pneg %p338
      %p575 = pneg %p335
      %p576 = pneg %p359
      %p577 = pneg %p356
      %p578 = pneg %p385
      %p579 = pneg %p382
      %p580 = scmp.lt.s32.totalorder %s29, 1
      %s581 = scalar_select %p580, %s29, 1
      %s582 = smul.addr %s581, 2
      %s583 = smul.addr %s582, 8
      %s584 = scalar_lea.vmem %s15, %s583
      %p585 = pneg %p411
      %p586 = pneg %p408
      %p587 = scmp.lt.s32.totalorder %s29, 1
      %s588 = scalar_select %p587, %s29, 1
      %s589 = smul.addr %s588, 2
      %s590 = smul.addr %s589, 8
      %s591 = scalar_lea.vmem %s16, %s590
      %p592 = pneg %p437
      %p593 = pneg %p434
      %p594 = scmp.lt.s32.totalorder %s29, 1
      %s595 = scalar_select %p594, %s29, 1
      %s596 = smul.addr %s595, 2
      %s597 = smul.addr %s596, 8
      %s598 = scalar_lea.vmem %s17, %s597
      %p599 = scmp.lt.s32.totalorder %s29, 1
      %s600 = scalar_select %p599, %s29, 1
      %s601 = smul.addr %s600, 2
      %s602 = smul.addr %s601, 8
      %s603 = scalar_lea.vmem %s0, %s602
      %p604 = scmp.lt.s32.totalorder %s29, 1
      %s605 = scalar_select %p604, %s29, 1
      %s606 = smul.addr %s605, 2
      %s607 = smul.addr %s606, 8
      %s608 = scalar_lea.vmem %s1, %s607
      %p609 = scmp.lt.s32.totalorder %s29, 1
      %s610 = scalar_select %p609, %s29, 1
      %s611 = smul.addr %s610, 2
      %s612 = smul.addr %s611, 8
      %s613 = scalar_lea.vmem %s2, %s612
      %p614 = scmp.lt.s32.totalorder %s29, 1
      %s615 = scalar_select %p614, %s29, 1
      %s616 = smul.addr %s615, 2
      %s617 = smul.addr %s616, 8
      %s618 = scalar_lea.vmem %s3, %s617
      %p619 = scmp.lt.s32.totalorder %s29, 1
      %s620 = scalar_select %p619, %s29, 1
      %s621 = smul.addr %s620, 2
      %s622 = smul.addr %s621, 8
      %s623 = scalar_lea.vmem %s15, %s622
      %p624 = scmp.lt.s32.totalorder %s29, 1
      %s625 = scalar_select %p624, %s29, 1
      %s626 = smul.addr %s625, 2
      %s627 = smul.addr %s626, 8
      %s628 = scalar_lea.vmem %s16, %s627
      %p629 = scmp.lt.s32.totalorder %s29, 1
      %s630 = scalar_select %p629, %s29, 1
      %s631 = smul.addr %s630, 2
      %s632 = smul.addr %s631, 8
      %s633 = scalar_lea.vmem %s17, %s632
      %v634 = vld [vmem:[%s603] sm:$0xff]
      %v635 = vld [vmem:[%s603 + $0x8] sm:$0xff]
      %v636 = vld [vmem:[%s608] sm:$0xff]
      %v637 = vld [vmem:[%s608 + $0x8] sm:$0xff]
      %v638 = vld [vmem:[%s613] sm:$0xff]
      %v639 = vld [vmem:[%s613 + $0x8] sm:$0xff]
      %v640 = vld [vmem:[%s618] sm:$0xff]
      %v641 = vld [vmem:[%s618 + $0x8] sm:$0xff]
      %v642 = vld [vmem:[%s4] sm:$0x3]
      %s643 = scalar_lea.vmem %s4, 2
      %v644 = vld [vmem:[%s643] sm:$0x3]
      %s645 = scalar_lea.vmem %s4, 4
      %v646 = vld [vmem:[%s645] sm:$0x3]
      %s647 = scalar_lea.vmem %s4, 6
      %v648 = vld [vmem:[%s647] sm:$0x3]
      %s649 = scalar_lea.vmem %s4, 10
      %v650 = vld [vmem:[%s649] sm:$0x3]
      %s651 = scalar_lea.vmem %s4, 12
      %v652 = vld [vmem:[%s651] sm:$0x3]
      %s653 = scalar_lea.vmem %s4, 14
      %v654 = vld [vmem:[%s653] sm:$0x3]
      %s655 = scalar_lea.vmem %s4, 16
      %v656 = vld [vmem:[%s655] sm:$0x3]
      %663 = vrot.lane.b32.xlu0 %v634, 17
      %v664 = vpop.permute.xlu0 %663
      %665 = vrot.lane.b32.xlu0 %v635, 17
      %v666 = vpop.permute.xlu0 %665
      %667 = vrot.lane.b32.xlu0 %v636, 17
      %v668 = vpop.permute.xlu0 %667
      %669 = vrot.lane.b32.xlu0 %v637, 17
      %v670 = vpop.permute.xlu0 %669
      %671 = vrot.lane.b32.xlu0 %v638, 17
      %v672 = vpop.permute.xlu0 %671
      %673 = vrot.lane.b32.xlu0 %v639, 17
      %v674 = vpop.permute.xlu0 %673
      %vm675 = vcmask 138240
      %v676 = vsel %vm675, %v664, %v666
      %v677 = vsel %vm675, %v668, %v670
      %v678 = vsel %vm675, %v672, %v674
      %v685 = vsel %vm675, 0.0, %v664
      %v686 = vsel %vm675, 0.0, %v668
      %v687 = vsel %vm675, 0.0, %v672
      %v689 = vperm.slane %v642, 0
      %v690 = vperm.slane %v642, 1
      %v693 = vmul.f32 %v685, %v689
      %v694 = vmul.f32 %v676, %v690
      %v695 = vmul.f32 %v686, %v689
      %v696 = vmul.f32 %v677, %v690
      %v697 = vmul.f32 %v687, %v689
      %v698 = vmul.f32 %v678, %v690
      %v699 = vld [vmem:[%s5] sm:$0xff]
      %v700 = vld [vmem:[%s5 + $0x8] sm:$0xff]
      %v701 = vld [vmem:[%s5 + $0x10] sm:$0xff]
      %702 = vrot.lane.b32.xlu0 %v634, 16
      %v703 = vpop.permute.xlu0 %702
      %704 = vrot.lane.b32.xlu0 %v635, 16
      %v705 = vpop.permute.xlu0 %704
      %706 = vrot.lane.b32.xlu0 %v636, 16
      %v707 = vpop.permute.xlu0 %706
      %708 = vrot.lane.b32.xlu0 %v637, 16
      %v709 = vpop.permute.xlu0 %708
      %710 = vrot.lane.b32.xlu0 %v638, 16
      %v711 = vpop.permute.xlu0 %710
      %712 = vrot.lane.b32.xlu0 %v639, 16
      %v713 = vpop.permute.xlu0 %712
      %vm714 = vcmask 130048
      %v715 = vsel %vm714, %v703, %v705
      %v716 = vsel %vm714, %v707, %v709
      %v717 = vsel %vm714, %v711, %v713
      %v724 = vsel %vm714, 0.0, %v703
      %v725 = vsel %vm714, 0.0, %v707
      %v726 = vsel %vm714, 0.0, %v711
      %v728 = vperm.slane %v644, 0
      %v729 = vperm.slane %v644, 1
      %v732 = vmul.f32 %v724, %v728
      %v733 = vmul.f32 %v715, %v729
      %v734 = vmul.f32 %v725, %v728
      %v735 = vmul.f32 %v716, %v729
      %v736 = vmul.f32 %v726, %v728
      %v737 = vmul.f32 %v717, %v729
      %s738 = scalar_lea.vmem %s5, 24
      %v739 = vld [vmem:[%s738] sm:$0xff]
      %v740 = vld [vmem:[%s738 + $0x8] sm:$0xff]
      %v741 = vld [vmem:[%s738 + $0x10] sm:$0xff]
      %vm742 = vcmask 195584
      %v744 = vsel %vm742, %v739, 0
      %v747 = vsel %vm742, %v740, 0
      %v750 = vsel %vm742, %v741, 0
      %752 = vmatpush.msra.mxu0 0.0
      %753 = vmatpush.msra.mxu0 0.0
      %754 = vmatpush.msra.mxu0 0.0
      %755 = vmatpush.msra.mxu0 0.0
      %756 = vmatpush.msra.mxu0 0.0
      %757 = vmatpush.msra.mxu0 0.0
      %758 = vmatpush.msra.mxu0 0.0
      %759 = vmatpush.msra.mxu0 0.0
      %760 = vmatpush.msra.mxu0 0.0
      %761 = vmatpush.msra.mxu0 0.0
      %762 = vmatpush.msra.mxu0 0.0
      %763 = vmatpush.msra.mxu0 0.0
      %764 = vmatpush.msra.mxu0 0.0
      %765 = vmatpush.msra.mxu0 %v736
      %766 = vmatpush.msra.mxu0 %v734
      %767 = vmatpush.msra.mxu0 %v732
      %768 = vmatmul.f32.gmra.mxu0 %v744
      %v769 = vpop.f32.mrf.mxu0
      %v770 = vadd.f32 0.0, %v769
      %771 = vmatmul.f32.gmra.mxu0 %v747
      %v772 = vpop.f32.mrf.mxu0
      %v773 = vadd.f32 0.0, %v772
      %774 = vmatmul.f32.gmra.mxu0 %v750
      %v775 = vpop.f32.mrf.mxu0
      %v776 = vadd.f32 0.0, %v775
      %777 = vdwg.mxu0
      %778 = vmatpush.msra.mxu0 0.0
      %779 = vmatpush.msra.mxu0 0.0
      %780 = vmatpush.msra.mxu0 0.0
      %781 = vmatpush.msra.mxu0 0.0
      %782 = vmatpush.msra.mxu0 0.0
      %783 = vmatpush.msra.mxu0 0.0
      %784 = vmatpush.msra.mxu0 0.0
      %785 = vmatpush.msra.mxu0 0.0
      %786 = vmatpush.msra.mxu0 0.0
      %787 = vmatpush.msra.mxu0 0.0
      %788 = vmatpush.msra.mxu0 0.0
      %789 = vmatpush.msra.mxu0 0.0
      %790 = vmatpush.msra.mxu0 0.0
      %791 = vmatpush.msra.mxu0 %v737
      %792 = vmatpush.msra.mxu0 %v735
      %793 = vmatpush.msra.mxu0 %v733
      %794 = vmatmul.f32.gmra.mxu0 %v744
      %v795 = vpop.f32.mrf.mxu0
      %v796 = vadd.f32 0.0, %v795
      %797 = vmatmul.f32.gmra.mxu0 %v747
      %v798 = vpop.f32.mrf.mxu0
      %v799 = vadd.f32 0.0, %v798
      %800 = vmatmul.f32.gmra.mxu0 %v750
      %v801 = vpop.f32.mrf.mxu0
      %v802 = vadd.f32 0.0, %v801
      %803 = vdwg.mxu0
      %v805 = vsel %vm742, %v699, 0
      %v808 = vsel %vm742, %v700, 0
      %v811 = vsel %vm742, %v701, 0
      %813 = vmatpush.msra.mxu0 0.0
      %814 = vmatpush.msra.mxu0 0.0
      %815 = vmatpush.msra.mxu0 0.0
      %816 = vmatpush.msra.mxu0 0.0
      %817 = vmatpush.msra.mxu0 0.0
      %818 = vmatpush.msra.mxu0 0.0
      %819 = vmatpush.msra.mxu0 0.0
      %820 = vmatpush.msra.mxu0 0.0
      %821 = vmatpush.msra.mxu0 0.0
      %822 = vmatpush.msra.mxu0 0.0
      %823 = vmatpush.msra.mxu0 0.0
      %824 = vmatpush.msra.mxu0 0.0
      %825 = vmatpush.msra.mxu0 0.0
      %826 = vmatpush.msra.mxu0 %v697
      %827 = vmatpush.msra.mxu0 %v695
      %828 = vmatpush.msra.mxu0 %v693
      %829 = vmatmul.f32.gmra.mxu0 %v805
      %v830 = vpop.f32.mrf.mxu0
      %v831 = vadd.f32 %v770, %v830
      %832 = vmatmul.f32.gmra.mxu0 %v808
      %v833 = vpop.f32.mrf.mxu0
      %v834 = vadd.f32 %v773, %v833
      %835 = vmatmul.f32.gmra.mxu0 %v811
      %v836 = vpop.f32.mrf.mxu0
      %v837 = vadd.f32 %v776, %v836
      %838 = vdwg.mxu0
      %839 = vmatpush.msra.mxu0 0.0
      %840 = vmatpush.msra.mxu0 0.0
      %841 = vmatpush.msra.mxu0 0.0
      %842 = vmatpush.msra.mxu0 0.0
      %843 = vmatpush.msra.mxu0 0.0
      %844 = vmatpush.msra.mxu0 0.0
      %845 = vmatpush.msra.mxu0 0.0
      %846 = vmatpush.msra.mxu0 0.0
      %847 = vmatpush.msra.mxu0 0.0
      %848 = vmatpush.msra.mxu0 0.0
      %849 = vmatpush.msra.mxu0 0.0
      %850 = vmatpush.msra.mxu0 0.0
      %851 = vmatpush.msra.mxu0 0.0
      %852 = vmatpush.msra.mxu0 %v698
      %853 = vmatpush.msra.mxu0 %v696
      %854 = vmatpush.msra.mxu0 %v694
      %855 = vmatmul.f32.gmra.mxu0 %v805
      %v856 = vpop.f32.mrf.mxu0
      %v857 = vadd.f32 %v796, %v856
      %858 = vmatmul.f32.gmra.mxu0 %v808
      %v859 = vpop.f32.mrf.mxu0
      %v860 = vadd.f32 %v799, %v859
      %861 = vmatmul.f32.gmra.mxu0 %v811
      %v862 = vpop.f32.mrf.mxu0
      %v863 = vadd.f32 %v802, %v862
      %864 = vdwg.mxu0
      %865 = vrot.lane.b32.xlu0 %v634, 15
      %v866 = vpop.permute.xlu0 %865
      %867 = vrot.lane.b32.xlu0 %v635, 15
      %v868 = vpop.permute.xlu0 %867
      %869 = vrot.lane.b32.xlu0 %v636, 15
      %v870 = vpop.permute.xlu0 %869
      %871 = vrot.lane.b32.xlu0 %v637, 15
      %v872 = vpop.permute.xlu0 %871
      %873 = vrot.lane.b32.xlu0 %v638, 15
      %v874 = vpop.permute.xlu0 %873
      %875 = vrot.lane.b32.xlu0 %v639, 15
      %v876 = vpop.permute.xlu0 %875
      %vm877 = vcmask 121856
      %v878 = vsel %vm877, %v866, %v868
      %v879 = vsel %vm877, %v870, %v872
      %v880 = vsel %vm877, %v874, %v876
      %v887 = vsel %vm877, 0.0, %v866
      %v888 = vsel %vm877, 0.0, %v870
      %v889 = vsel %vm877, 0.0, %v874
      %v891 = vperm.slane %v646, 0
      %v892 = vperm.slane %v646, 1
      %v895 = vmul.f32 %v887, %v891
      %v896 = vmul.f32 %v878, %v892
      %v897 = vmul.f32 %v888, %v891
      %v898 = vmul.f32 %v879, %v892
      %v899 = vmul.f32 %v889, %v891
      %v900 = vmul.f32 %v880, %v892
      %s901 = scalar_lea.vmem %s5, 48
      %v902 = vld [vmem:[%s901] sm:$0xff]
      %v903 = vld [vmem:[%s901 + $0x8] sm:$0xff]
      %v904 = vld [vmem:[%s901 + $0x10] sm:$0xff]
      %v906 = vsel %vm742, %v902, 0
      %v909 = vsel %vm742, %v903, 0
      %v912 = vsel %vm742, %v904, 0
      %914 = vmatpush.msra.mxu0 0.0
      %915 = vmatpush.msra.mxu0 0.0
      %916 = vmatpush.msra.mxu0 0.0
      %917 = vmatpush.msra.mxu0 0.0
      %918 = vmatpush.msra.mxu0 0.0
      %919 = vmatpush.msra.mxu0 0.0
      %920 = vmatpush.msra.mxu0 0.0
      %921 = vmatpush.msra.mxu0 0.0
      %922 = vmatpush.msra.mxu0 0.0
      %923 = vmatpush.msra.mxu0 0.0
      %924 = vmatpush.msra.mxu0 0.0
      %925 = vmatpush.msra.mxu0 0.0
      %926 = vmatpush.msra.mxu0 0.0
      %927 = vmatpush.msra.mxu0 %v899
      %928 = vmatpush.msra.mxu0 %v897
      %929 = vmatpush.msra.mxu0 %v895
      %930 = vmatmul.f32.gmra.mxu0 %v906
      %v931 = vpop.f32.mrf.mxu0
      %v932 = vadd.f32 0.0, %v931
      %933 = vmatmul.f32.gmra.mxu0 %v909
      %v934 = vpop.f32.mrf.mxu0
      %v935 = vadd.f32 0.0, %v934
      %936 = vmatmul.f32.gmra.mxu0 %v912
      %v937 = vpop.f32.mrf.mxu0
      %v938 = vadd.f32 0.0, %v937
      %939 = vdwg.mxu0
      %940 = vmatpush.msra.mxu0 0.0
      %941 = vmatpush.msra.mxu0 0.0
      %942 = vmatpush.msra.mxu0 0.0
      %943 = vmatpush.msra.mxu0 0.0
      %944 = vmatpush.msra.mxu0 0.0
      %945 = vmatpush.msra.mxu0 0.0
      %946 = vmatpush.msra.mxu0 0.0
      %947 = vmatpush.msra.mxu0 0.0
      %948 = vmatpush.msra.mxu0 0.0
      %949 = vmatpush.msra.mxu0 0.0
      %950 = vmatpush.msra.mxu0 0.0
      %951 = vmatpush.msra.mxu0 0.0
      %952 = vmatpush.msra.mxu0 0.0
      %953 = vmatpush.msra.mxu0 %v900
      %954 = vmatpush.msra.mxu0 %v898
      %955 = vmatpush.msra.mxu0 %v896
      %956 = vmatmul.f32.gmra.mxu0 %v906
      %v957 = vpop.f32.mrf.mxu0
      %v958 = vadd.f32 0.0, %v957
      %959 = vmatmul.f32.gmra.mxu0 %v909
      %v960 = vpop.f32.mrf.mxu0
      %v961 = vadd.f32 0.0, %v960
      %962 = vmatmul.f32.gmra.mxu0 %v912
      %v963 = vpop.f32.mrf.mxu0
      %v964 = vadd.f32 0.0, %v963
      %965 = vdwg.mxu0
      %v966 = vadd.f32 %v831, %v932
      %v967 = vadd.f32 %v857, %v958
      %v968 = vadd.f32 %v834, %v935
      %v969 = vadd.f32 %v860, %v961
      %v970 = vadd.f32 %v837, %v938
      %v971 = vadd.f32 %v863, %v964
      %972 = vrot.lane.b32.xlu0 %v634, 1
      %v973 = vpop.permute.xlu0 %972
      %974 = vrot.lane.b32.xlu0 %v635, 1
      %v975 = vpop.permute.xlu0 %974
      %976 = vrot.lane.b32.xlu0 %v636, 1
      %v977 = vpop.permute.xlu0 %976
      %978 = vrot.lane.b32.xlu0 %v637, 1
      %v979 = vpop.permute.xlu0 %978
      %980 = vrot.lane.b32.xlu0 %v638, 1
      %v981 = vpop.permute.xlu0 %980
      %982 = vrot.lane.b32.xlu0 %v639, 1
      %v983 = vpop.permute.xlu0 %982
      %vm984 = vcmask 7168
      %v985 = vsel %vm984, %v973, %v975
      %v986 = vsel %vm984, %v977, %v979
      %v987 = vsel %vm984, %v981, %v983
      %v994 = vsel %vm984, 0.0, %v973
      %v995 = vsel %vm984, 0.0, %v977
      %v996 = vsel %vm984, 0.0, %v981
      %v998 = vperm.slane %v648, 0
      %v999 = vperm.slane %v648, 1
      %v1002 = vmul.f32 %v994, %v998
      %v1003 = vmul.f32 %v985, %v999
      %v1004 = vmul.f32 %v995, %v998
      %v1005 = vmul.f32 %v986, %v999
      %v1006 = vmul.f32 %v996, %v998
      %v1007 = vmul.f32 %v987, %v999
      %s1008 = scalar_lea.vmem %s5, 72
      %v1009 = vld [vmem:[%s1008] sm:$0xff]
      %v1010 = vld [vmem:[%s1008 + $0x8] sm:$0xff]
      %v1011 = vld [vmem:[%s1008 + $0x10] sm:$0xff]
      %v1013 = vsel %vm742, %v1009, 0
      %v1016 = vsel %vm742, %v1010, 0
      %v1019 = vsel %vm742, %v1011, 0
      %1021 = vmatpush.msra.mxu0 0.0
      %1022 = vmatpush.msra.mxu0 0.0
      %1023 = vmatpush.msra.mxu0 0.0
      %1024 = vmatpush.msra.mxu0 0.0
      %1025 = vmatpush.msra.mxu0 0.0
      %1026 = vmatpush.msra.mxu0 0.0
      %1027 = vmatpush.msra.mxu0 0.0
      %1028 = vmatpush.msra.mxu0 0.0
      %1029 = vmatpush.msra.mxu0 0.0
      %1030 = vmatpush.msra.mxu0 0.0
      %1031 = vmatpush.msra.mxu0 0.0
      %1032 = vmatpush.msra.mxu0 0.0
      %1033 = vmatpush.msra.mxu0 0.0
      %1034 = vmatpush.msra.mxu0 %v1006
      %1035 = vmatpush.msra.mxu0 %v1004
      %1036 = vmatpush.msra.mxu0 %v1002
      %1037 = vmatmul.f32.gmra.mxu0 %v1013
      %v1038 = vpop.f32.mrf.mxu0
      %v1039 = vadd.f32 0.0, %v1038
      %1040 = vmatmul.f32.gmra.mxu0 %v1016
      %v1041 = vpop.f32.mrf.mxu0
      %v1042 = vadd.f32 0.0, %v1041
      %1043 = vmatmul.f32.gmra.mxu0 %v1019
      %v1044 = vpop.f32.mrf.mxu0
      %v1045 = vadd.f32 0.0, %v1044
      %1046 = vdwg.mxu0
      %1047 = vmatpush.msra.mxu0 0.0
      %1048 = vmatpush.msra.mxu0 0.0
      %1049 = vmatpush.msra.mxu0 0.0
      %1050 = vmatpush.msra.mxu0 0.0
      %1051 = vmatpush.msra.mxu0 0.0
      %1052 = vmatpush.msra.mxu0 0.0
      %1053 = vmatpush.msra.mxu0 0.0
      %1054 = vmatpush.msra.mxu0 0.0
      %1055 = vmatpush.msra.mxu0 0.0
      %1056 = vmatpush.msra.mxu0 0.0
      %1057 = vmatpush.msra.mxu0 0.0
      %1058 = vmatpush.msra.mxu0 0.0
      %1059 = vmatpush.msra.mxu0 0.0
      %1060 = vmatpush.msra.mxu0 %v1007
      %1061 = vmatpush.msra.mxu0 %v1005
      %1062 = vmatpush.msra.mxu0 %v1003
      %1063 = vmatmul.f32.gmra.mxu0 %v1013
      %v1064 = vpop.f32.mrf.mxu0
      %v1065 = vadd.f32 0.0, %v1064
      %1066 = vmatmul.f32.gmra.mxu0 %v1016
      %v1067 = vpop.f32.mrf.mxu0
      %v1068 = vadd.f32 0.0, %v1067
      %1069 = vmatmul.f32.gmra.mxu0 %v1019
      %v1070 = vpop.f32.mrf.mxu0
      %v1071 = vadd.f32 0.0, %v1070
      %1072 = vdwg.mxu0
      %v1073 = vadd.f32 %v966, %v1039
      %v1074 = vadd.f32 %v967, %v1065
      %v1075 = vadd.f32 %v968, %v1042
      %v1076 = vadd.f32 %v969, %v1068
      %v1077 = vadd.f32 %v970, %v1045
      %v1078 = vadd.f32 %v971, %v1071
      %s1079 = scalar_lea.vmem %s5, 96
      %v1080 = vld [vmem:[%s1079] sm:$0xff]
      %v1081 = vld [vmem:[%s1079 + $0x8] sm:$0xff]
      %v1082 = vld [vmem:[%s1079 + $0x10] sm:$0xff]
      %v1084 = vsel %vm742, %v1080, 0
      %v1087 = vsel %vm742, %v1081, 0
      %v1090 = vsel %vm742, %v1082, 0
      %1092 = vmatpush.msra.mxu0 0.0
      %1093 = vmatpush.msra.mxu0 0.0
      %1094 = vmatpush.msra.mxu0 0.0
      %1095 = vmatpush.msra.mxu0 0.0
      %1096 = vmatpush.msra.mxu0 0.0
      %1097 = vmatpush.msra.mxu0 0.0
      %1098 = vmatpush.msra.mxu0 0.0
      %1099 = vmatpush.msra.mxu0 0.0
      %1100 = vmatpush.msra.mxu0 0.0
      %1101 = vmatpush.msra.mxu0 0.0
      %1102 = vmatpush.msra.mxu0 0.0
      %1103 = vmatpush.msra.mxu0 0.0
      %1104 = vmatpush.msra.mxu0 0.0
      %1105 = vmatpush.msra.mxu0 %v638
      %1106 = vmatpush.msra.mxu0 %v636
      %1107 = vmatpush.msra.mxu0 %v634
      %1108 = vmatmul.f32.gmra.mxu0 %v1084
      %v1109 = vpop.f32.mrf.mxu0
      %v1110 = vadd.f32 0.0, %v1109
      %1111 = vmatmul.f32.gmra.mxu0 %v1087
      %v1112 = vpop.f32.mrf.mxu0
      %v1113 = vadd.f32 0.0, %v1112
      %1114 = vmatmul.f32.gmra.mxu0 %v1090
      %v1115 = vpop.f32.mrf.mxu0
      %v1116 = vadd.f32 0.0, %v1115
      %1117 = vdwg.mxu0
      %1118 = vmatpush.msra.mxu0 0.0
      %1119 = vmatpush.msra.mxu0 0.0
      %1120 = vmatpush.msra.mxu0 0.0
      %1121 = vmatpush.msra.mxu0 0.0
      %1122 = vmatpush.msra.mxu0 0.0
      %1123 = vmatpush.msra.mxu0 0.0
      %1124 = vmatpush.msra.mxu0 0.0
      %1125 = vmatpush.msra.mxu0 0.0
      %1126 = vmatpush.msra.mxu0 0.0
      %1127 = vmatpush.msra.mxu0 0.0
      %1128 = vmatpush.msra.mxu0 0.0
      %1129 = vmatpush.msra.mxu0 0.0
      %1130 = vmatpush.msra.mxu0 0.0
      %1131 = vmatpush.msra.mxu0 %v639
      %1132 = vmatpush.msra.mxu0 %v637
      %1133 = vmatpush.msra.mxu0 %v635
      %1134 = vmatmul.f32.gmra.mxu0 %v1084
      %v1135 = vpop.f32.mrf.mxu0
      %v1136 = vadd.f32 0.0, %v1135
      %1137 = vmatmul.f32.gmra.mxu0 %v1087
      %v1138 = vpop.f32.mrf.mxu0
      %v1139 = vadd.f32 0.0, %v1138
      %1140 = vmatmul.f32.gmra.mxu0 %v1090
      %v1141 = vpop.f32.mrf.mxu0
      %v1142 = vadd.f32 0.0, %v1141
      %1143 = vdwg.mxu0
      %v1144 = vadd.f32 %v1073, %v1110
      %v1145 = vadd.f32 %v1074, %v1136
      %v1146 = vadd.f32 %v1075, %v1113
      %v1147 = vadd.f32 %v1076, %v1139
      %v1148 = vadd.f32 %v1077, %v1116
      %v1149 = vadd.f32 %v1078, %v1142
      %1150 = vrot.lane.b32.xlu0 %v634, 127
      %v1151 = vpop.permute.xlu0 %1150
      %1152 = vrot.lane.b32.xlu0 %v635, 127
      %v1153 = vpop.permute.xlu0 %1152
      %1154 = vrot.lane.b32.xlu0 %v636, 127
      %v1155 = vpop.permute.xlu0 %1154
      %1156 = vrot.lane.b32.xlu0 %v637, 127
      %v1157 = vpop.permute.xlu0 %1156
      %1158 = vrot.lane.b32.xlu0 %v638, 127
      %v1159 = vpop.permute.xlu0 %1158
      %1160 = vrot.lane.b32.xlu0 %v639, 127
      %v1161 = vpop.permute.xlu0 %1160
      %vm1162 = vcmask 1039360
      %v1163 = vsel %vm1162, %v1151, %v1153
      %v1164 = vsel %vm1162, %v1155, %v1157
      %v1165 = vsel %vm1162, %v1159, %v1161
      %v1172 = vsel %vm1162, %v1153, 0.0
      %v1173 = vsel %vm1162, %v1157, 0.0
      %v1174 = vsel %vm1162, %v1161, 0.0
      %v1176 = vperm.slane %v650, 0
      %v1177 = vperm.slane %v650, 1
      %v1180 = vmul.f32 %v1163, %v1176
      %v1181 = vmul.f32 %v1172, %v1177
      %v1182 = vmul.f32 %v1164, %v1176
      %v1183 = vmul.f32 %v1173, %v1177
      %v1184 = vmul.f32 %v1165, %v1176
      %v1185 = vmul.f32 %v1174, %v1177
      %s1186 = scalar_lea.vmem %s5, 120
      %v1187 = vld [vmem:[%s1186] sm:$0xff]
      %v1188 = vld [vmem:[%s1186 + $0x8] sm:$0xff]
      %v1189 = vld [vmem:[%s1186 + $0x10] sm:$0xff]
      %v1191 = vsel %vm742, %v1187, 0
      %v1194 = vsel %vm742, %v1188, 0
      %v1197 = vsel %vm742, %v1189, 0
      %1199 = vmatpush.msra.mxu0 0.0
      %1200 = vmatpush.msra.mxu0 0.0
      %1201 = vmatpush.msra.mxu0 0.0
      %1202 = vmatpush.msra.mxu0 0.0
      %1203 = vmatpush.msra.mxu0 0.0
      %1204 = vmatpush.msra.mxu0 0.0
      %1205 = vmatpush.msra.mxu0 0.0
      %1206 = vmatpush.msra.mxu0 0.0
      %1207 = vmatpush.msra.mxu0 0.0
      %1208 = vmatpush.msra.mxu0 0.0
      %1209 = vmatpush.msra.mxu0 0.0
      %1210 = vmatpush.msra.mxu0 0.0
      %1211 = vmatpush.msra.mxu0 0.0
      %1212 = vmatpush.msra.mxu0 %v1184
      %1213 = vmatpush.msra.mxu0 %v1182
      %1214 = vmatpush.msra.mxu0 %v1180
      %1215 = vmatmul.f32.gmra.mxu0 %v1191
      %v1216 = vpop.f32.mrf.mxu0
      %v1217 = vadd.f32 0.0, %v1216
      %1218 = vmatmul.f32.gmra.mxu0 %v1194
      %v1219 = vpop.f32.mrf.mxu0
      %v1220 = vadd.f32 0.0, %v1219
      %1221 = vmatmul.f32.gmra.mxu0 %v1197
      %v1222 = vpop.f32.mrf.mxu0
      %v1223 = vadd.f32 0.0, %v1222
      %1224 = vdwg.mxu0
      %1225 = vmatpush.msra.mxu0 0.0
      %1226 = vmatpush.msra.mxu0 0.0
      %1227 = vmatpush.msra.mxu0 0.0
      %1228 = vmatpush.msra.mxu0 0.0
      %1229 = vmatpush.msra.mxu0 0.0
      %1230 = vmatpush.msra.mxu0 0.0
      %1231 = vmatpush.msra.mxu0 0.0
      %1232 = vmatpush.msra.mxu0 0.0
      %1233 = vmatpush.msra.mxu0 0.0
      %1234 = vmatpush.msra.mxu0 0.0
      %1235 = vmatpush.msra.mxu0 0.0
      %1236 = vmatpush.msra.mxu0 0.0
      %1237 = vmatpush.msra.mxu0 0.0
      %1238 = vmatpush.msra.mxu0 %v1185
      %1239 = vmatpush.msra.mxu0 %v1183
      %1240 = vmatpush.msra.mxu0 %v1181
      %1241 = vmatmul.f32.gmra.mxu0 %v1191
      %v1242 = vpop.f32.mrf.mxu0
      %v1243 = vadd.f32 0.0, %v1242
      %1244 = vmatmul.f32.gmra.mxu0 %v1194
      %v1245 = vpop.f32.mrf.mxu0
      %v1246 = vadd.f32 0.0, %v1245
      %1247 = vmatmul.f32.gmra.mxu0 %v1197
      %v1248 = vpop.f32.mrf.mxu0
      %v1249 = vadd.f32 0.0, %v1248
      %1250 = vdwg.mxu0
      %v1251 = vadd.f32 %v1144, %v1217
      %v1252 = vadd.f32 %v1145, %v1243
      %v1253 = vadd.f32 %v1146, %v1220
      %v1254 = vadd.f32 %v1147, %v1246
      %v1255 = vadd.f32 %v1148, %v1223
      %v1256 = vadd.f32 %v1149, %v1249
      %1257 = vrot.lane.b32.xlu0 %v634, 113
      %v1258 = vpop.permute.xlu0 %1257
      %1259 = vrot.lane.b32.xlu0 %v635, 113
      %v1260 = vpop.permute.xlu0 %1259
      %1261 = vrot.lane.b32.xlu0 %v636, 113
      %v1262 = vpop.permute.xlu0 %1261
      %1263 = vrot.lane.b32.xlu0 %v637, 113
      %v1264 = vpop.permute.xlu0 %1263
      %1265 = vrot.lane.b32.xlu0 %v638, 113
      %v1266 = vpop.permute.xlu0 %1265
      %1267 = vrot.lane.b32.xlu0 %v639, 113
      %v1268 = vpop.permute.xlu0 %1267
      %vm1269 = vcmask 924672
      %v1270 = vsel %vm1269, %v1258, %v1260
      %v1271 = vsel %vm1269, %v1262, %v1264
      %v1272 = vsel %vm1269, %v1266, %v1268
      %v1279 = vsel %vm1269, %v1260, 0.0
      %v1280 = vsel %vm1269, %v1264, 0.0
      %v1281 = vsel %vm1269, %v1268, 0.0
      %v1283 = vperm.slane %v652, 0
      %v1284 = vperm.slane %v652, 1
      %v1287 = vmul.f32 %v1270, %v1283
      %v1288 = vmul.f32 %v1279, %v1284
      %v1289 = vmul.f32 %v1271, %v1283
      %v1290 = vmul.f32 %v1280, %v1284
      %v1291 = vmul.f32 %v1272, %v1283
      %v1292 = vmul.f32 %v1281, %v1284
      %s1293 = scalar_lea.vmem %s5, 144
      %v1294 = vld [vmem:[%s1293] sm:$0xff]
      %v1295 = vld [vmem:[%s1293 + $0x8] sm:$0xff]
      %v1296 = vld [vmem:[%s1293 + $0x10] sm:$0xff]
      %v1298 = vsel %vm742, %v1294, 0
      %v1301 = vsel %vm742, %v1295, 0
      %v1304 = vsel %vm742, %v1296, 0
      %1306 = vmatpush.msra.mxu0 0.0
      %1307 = vmatpush.msra.mxu0 0.0
      %1308 = vmatpush.msra.mxu0 0.0
      %1309 = vmatpush.msra.mxu0 0.0
      %1310 = vmatpush.msra.mxu0 0.0
      %1311 = vmatpush.msra.mxu0 0.0
      %1312 = vmatpush.msra.mxu0 0.0
      %1313 = vmatpush.msra.mxu0 0.0
      %1314 = vmatpush.msra.mxu0 0.0
      %1315 = vmatpush.msra.mxu0 0.0
      %1316 = vmatpush.msra.mxu0 0.0
      %1317 = vmatpush.msra.mxu0 0.0
      %1318 = vmatpush.msra.mxu0 0.0
      %1319 = vmatpush.msra.mxu0 %v1291
      %1320 = vmatpush.msra.mxu0 %v1289
      %1321 = vmatpush.msra.mxu0 %v1287
      %1322 = vmatmul.f32.gmra.mxu0 %v1298
      %v1323 = vpop.f32.mrf.mxu0
      %v1324 = vadd.f32 0.0, %v1323
      %1325 = vmatmul.f32.gmra.mxu0 %v1301
      %v1326 = vpop.f32.mrf.mxu0
      %v1327 = vadd.f32 0.0, %v1326
      %1328 = vmatmul.f32.gmra.mxu0 %v1304
      %v1329 = vpop.f32.mrf.mxu0
      %v1330 = vadd.f32 0.0, %v1329
      %1331 = vdwg.mxu0
      %1332 = vmatpush.msra.mxu0 0.0
      %1333 = vmatpush.msra.mxu0 0.0
      %1334 = vmatpush.msra.mxu0 0.0
      %1335 = vmatpush.msra.mxu0 0.0
      %1336 = vmatpush.msra.mxu0 0.0
      %1337 = vmatpush.msra.mxu0 0.0
      %1338 = vmatpush.msra.mxu0 0.0
      %1339 = vmatpush.msra.mxu0 0.0
      %1340 = vmatpush.msra.mxu0 0.0
      %1341 = vmatpush.msra.mxu0 0.0
      %1342 = vmatpush.msra.mxu0 0.0
      %1343 = vmatpush.msra.mxu0 0.0
      %1344 = vmatpush.msra.mxu0 0.0
      %1345 = vmatpush.msra.mxu0 %v1292
      %1346 = vmatpush.msra.mxu0 %v1290
      %1347 = vmatpush.msra.mxu0 %v1288
      %1348 = vmatmul.f32.gmra.mxu0 %v1298
      %v1349 = vpop.f32.mrf.mxu0
      %v1350 = vadd.f32 0.0, %v1349
      %1351 = vmatmul.f32.gmra.mxu0 %v1301
      %v1352 = vpop.f32.mrf.mxu0
      %v1353 = vadd.f32 0.0, %v1352
      %1354 = vmatmul.f32.gmra.mxu0 %v1304
      %v1355 = vpop.f32.mrf.mxu0
      %v1356 = vadd.f32 0.0, %v1355
      %1357 = vdwg.mxu0
      %v1358 = vadd.f32 %v1251, %v1324
      %v1359 = vadd.f32 %v1252, %v1350
      %v1360 = vadd.f32 %v1253, %v1327
      %v1361 = vadd.f32 %v1254, %v1353
      %v1362 = vadd.f32 %v1255, %v1330
      %v1363 = vadd.f32 %v1256, %v1356
      %1364 = vrot.lane.b32.xlu0 %v634, 112
      %v1365 = vpop.permute.xlu0 %1364
      %1366 = vrot.lane.b32.xlu0 %v635, 112
      %v1367 = vpop.permute.xlu0 %1366
      %1368 = vrot.lane.b32.xlu0 %v636, 112
      %v1369 = vpop.permute.xlu0 %1368
      %1370 = vrot.lane.b32.xlu0 %v637, 112
      %v1371 = vpop.permute.xlu0 %1370
      %1372 = vrot.lane.b32.xlu0 %v638, 112
      %v1373 = vpop.permute.xlu0 %1372
      %1374 = vrot.lane.b32.xlu0 %v639, 112
      %v1375 = vpop.permute.xlu0 %1374
      %vm1376 = vcmask 916480
      %v1377 = vsel %vm1376, %v1365, %v1367
      %v1378 = vsel %vm1376, %v1369, %v1371
      %v1379 = vsel %vm1376, %v1373, %v1375
      %v1386 = vsel %vm1376, %v1367, 0.0
      %v1387 = vsel %vm1376, %v1371, 0.0
      %v1388 = vsel %vm1376, %v1375, 0.0
      %v1390 = vperm.slane %v654, 0
      %v1391 = vperm.slane %v654, 1
      %v1394 = vmul.f32 %v1377, %v1390
      %v1395 = vmul.f32 %v1386, %v1391
      %v1396 = vmul.f32 %v1378, %v1390
      %v1397 = vmul.f32 %v1387, %v1391
      %v1398 = vmul.f32 %v1379, %v1390
      %v1399 = vmul.f32 %v1388, %v1391
      %s1400 = scalar_lea.vmem %s5, 168
      %v1401 = vld [vmem:[%s1400] sm:$0xff]
      %v1402 = vld [vmem:[%s1400 + $0x8] sm:$0xff]
      %v1403 = vld [vmem:[%s1400 + $0x10] sm:$0xff]
      %v1405 = vsel %vm742, %v1401, 0
      %v1408 = vsel %vm742, %v1402, 0
      %v1411 = vsel %vm742, %v1403, 0
      %1413 = vmatpush.msra.mxu0 0.0
      %1414 = vmatpush.msra.mxu0 0.0
      %1415 = vmatpush.msra.mxu0 0.0
      %1416 = vmatpush.msra.mxu0 0.0
      %1417 = vmatpush.msra.mxu0 0.0
      %1418 = vmatpush.msra.mxu0 0.0
      %1419 = vmatpush.msra.mxu0 0.0
      %1420 = vmatpush.msra.mxu0 0.0
      %1421 = vmatpush.msra.mxu0 0.0
      %1422 = vmatpush.msra.mxu0 0.0
      %1423 = vmatpush.msra.mxu0 0.0
      %1424 = vmatpush.msra.mxu0 0.0
      %1425 = vmatpush.msra.mxu0 0.0
      %1426 = vmatpush.msra.mxu0 %v1398
      %1427 = vmatpush.msra.mxu0 %v1396
      %1428 = vmatpush.msra.mxu0 %v1394
      %1429 = vmatmul.f32.gmra.mxu0 %v1405
      %v1430 = vpop.f32.mrf.mxu0
      %v1431 = vadd.f32 0.0, %v1430
      %1432 = vmatmul.f32.gmra.mxu0 %v1408
      %v1433 = vpop.f32.mrf.mxu0
      %v1434 = vadd.f32 0.0, %v1433
      %1435 = vmatmul.f32.gmra.mxu0 %v1411
      %v1436 = vpop.f32.mrf.mxu0
      %v1437 = vadd.f32 0.0, %v1436
      %1438 = vdwg.mxu0
      %1439 = vmatpush.msra.mxu0 0.0
      %1440 = vmatpush.msra.mxu0 0.0
      %1441 = vmatpush.msra.mxu0 0.0
      %1442 = vmatpush.msra.mxu0 0.0
      %1443 = vmatpush.msra.mxu0 0.0
      %1444 = vmatpush.msra.mxu0 0.0
      %1445 = vmatpush.msra.mxu0 0.0
      %1446 = vmatpush.msra.mxu0 0.0
      %1447 = vmatpush.msra.mxu0 0.0
      %1448 = vmatpush.msra.mxu0 0.0
      %1449 = vmatpush.msra.mxu0 0.0
      %1450 = vmatpush.msra.mxu0 0.0
      %1451 = vmatpush.msra.mxu0 0.0
      %1452 = vmatpush.msra.mxu0 %v1399
      %1453 = vmatpush.msra.mxu0 %v1397
      %1454 = vmatpush.msra.mxu0 %v1395
      %1455 = vmatmul.f32.gmra.mxu0 %v1405
      %v1456 = vpop.f32.mrf.mxu0
      %v1457 = vadd.f32 0.0, %v1456
      %1458 = vmatmul.f32.gmra.mxu0 %v1408
      %v1459 = vpop.f32.mrf.mxu0
      %v1460 = vadd.f32 0.0, %v1459
      %1461 = vmatmul.f32.gmra.mxu0 %v1411
      %v1462 = vpop.f32.mrf.mxu0
      %v1463 = vadd.f32 0.0, %v1462
      %1464 = vdwg.mxu0
      %v1465 = vadd.f32 %v1358, %v1431
      %v1466 = vadd.f32 %v1359, %v1457
      %v1467 = vadd.f32 %v1360, %v1434
      %v1468 = vadd.f32 %v1361, %v1460
      %v1469 = vadd.f32 %v1362, %v1437
      %v1470 = vadd.f32 %v1363, %v1463
      %1471 = vrot.lane.b32.xlu0 %v634, 111
      %v1472 = vpop.permute.xlu0 %1471
      %1473 = vrot.lane.b32.xlu0 %v635, 111
      %v1474 = vpop.permute.xlu0 %1473
      %1475 = vrot.lane.b32.xlu0 %v636, 111
      %v1476 = vpop.permute.xlu0 %1475
      %1477 = vrot.lane.b32.xlu0 %v637, 111
      %v1478 = vpop.permute.xlu0 %1477
      %1479 = vrot.lane.b32.xlu0 %v638, 111
      %v1480 = vpop.permute.xlu0 %1479
      %1481 = vrot.lane.b32.xlu0 %v639, 111
      %v1482 = vpop.permute.xlu0 %1481
      %vm1483 = vcmask 908288
      %v1484 = vsel %vm1483, %v1472, %v1474
      %v1485 = vsel %vm1483, %v1476, %v1478
      %v1486 = vsel %vm1483, %v1480, %v1482
      %v1493 = vsel %vm1483, %v1474, 0.0
      %v1494 = vsel %vm1483, %v1478, 0.0
      %v1495 = vsel %vm1483, %v1482, 0.0
      %v1497 = vperm.slane %v656, 0
      %v1498 = vperm.slane %v656, 1
      %v1501 = vmul.f32 %v1484, %v1497
      %v1502 = vmul.f32 %v1493, %v1498
      %v1503 = vmul.f32 %v1485, %v1497
      %v1504 = vmul.f32 %v1494, %v1498
      %v1505 = vmul.f32 %v1486, %v1497
      %v1506 = vmul.f32 %v1495, %v1498
      %s1507 = scalar_lea.vmem %s5, 192
      %v1508 = vld [vmem:[%s1507] sm:$0xff]
      %v1509 = vld [vmem:[%s1507 + $0x8] sm:$0xff]
      %v1510 = vld [vmem:[%s1507 + $0x10] sm:$0xff]
      %v1512 = vsel %vm742, %v1508, 0
      %v1515 = vsel %vm742, %v1509, 0
      %v1518 = vsel %vm742, %v1510, 0
      %1520 = vmatpush.msra.mxu0 0.0
      %1521 = vmatpush.msra.mxu0 0.0
      %1522 = vmatpush.msra.mxu0 0.0
      %1523 = vmatpush.msra.mxu0 0.0
      %1524 = vmatpush.msra.mxu0 0.0
      %1525 = vmatpush.msra.mxu0 0.0
      %1526 = vmatpush.msra.mxu0 0.0
      %1527 = vmatpush.msra.mxu0 0.0
      %1528 = vmatpush.msra.mxu0 0.0
      %1529 = vmatpush.msra.mxu0 0.0
      %1530 = vmatpush.msra.mxu0 0.0
      %1531 = vmatpush.msra.mxu0 0.0
      %1532 = vmatpush.msra.mxu0 0.0
      %1533 = vmatpush.msra.mxu0 %v1505
      %1534 = vmatpush.msra.mxu0 %v1503
      %1535 = vmatpush.msra.mxu0 %v1501
      %1536 = vmatmul.f32.gmra.mxu0 %v1512
      %v1537 = vpop.f32.mrf.mxu0
      %v1538 = vadd.f32 0.0, %v1537
      %1539 = vmatmul.f32.gmra.mxu0 %v1515
      %v1540 = vpop.f32.mrf.mxu0
      %v1541 = vadd.f32 0.0, %v1540
      %1542 = vmatmul.f32.gmra.mxu0 %v1518
      %v1543 = vpop.f32.mrf.mxu0
      %v1544 = vadd.f32 0.0, %v1543
      %1545 = vdwg.mxu0
      %1546 = vmatpush.msra.mxu0 0.0
      %1547 = vmatpush.msra.mxu0 0.0
      %1548 = vmatpush.msra.mxu0 0.0
      %1549 = vmatpush.msra.mxu0 0.0
      %1550 = vmatpush.msra.mxu0 0.0
      %1551 = vmatpush.msra.mxu0 0.0
      %1552 = vmatpush.msra.mxu0 0.0
      %1553 = vmatpush.msra.mxu0 0.0
      %1554 = vmatpush.msra.mxu0 0.0
      %1555 = vmatpush.msra.mxu0 0.0
      %1556 = vmatpush.msra.mxu0 0.0
      %1557 = vmatpush.msra.mxu0 0.0
      %1558 = vmatpush.msra.mxu0 0.0
      %1559 = vmatpush.msra.mxu0 %v1506
      %1560 = vmatpush.msra.mxu0 %v1504
      %1561 = vmatpush.msra.mxu0 %v1502
      %1562 = vmatmul.f32.gmra.mxu0 %v1512
      %v1563 = vpop.f32.mrf.mxu0
      %v1564 = vadd.f32 0.0, %v1563
      %1565 = vmatmul.f32.gmra.mxu0 %v1515
      %v1566 = vpop.f32.mrf.mxu0
      %v1567 = vadd.f32 0.0, %v1566
      %1568 = vmatmul.f32.gmra.mxu0 %v1518
      %v1569 = vpop.f32.mrf.mxu0
      %v1570 = vadd.f32 0.0, %v1569
      %1571 = vdwg.mxu0
      %v1572 = vadd.f32 %v1465, %v1538
      %v1573 = vadd.f32 %v1466, %v1564
      %v1574 = vadd.f32 %v1467, %v1541
      %v1575 = vadd.f32 %v1468, %v1567
      %v1576 = vadd.f32 %v1469, %v1544
      %v1577 = vadd.f32 %v1470, %v1570
      %v1578 = vld [vmem:[%s6] sm:$0xff]
      %v1579 = vld [vmem:[%s6 + $0x8] sm:$0xff]
      %v1580 = vld [vmem:[%s6 + $0x10] sm:$0xff]
      %1582 = vset.pattern.permute.xlu0 0
      %1583 = vperm.xlu0 %1582, %v1578
      %v1584 = vpop.permute.xlu0 %1583
      %1587 = vset.pattern.permute.xlu0 0
      %1588 = vperm.xlu0 %1587, %v1579
      %v1589 = vpop.permute.xlu0 %1588
      %1592 = vset.pattern.permute.xlu0 0
      %1593 = vperm.xlu0 %1592, %v1580
      %v1594 = vpop.permute.xlu0 %1593
      %v1596 = vadd.f32 %v1572, %v1584
      %v1597 = vadd.f32 %v1573, %v1584
      %v1598 = vadd.f32 %v1574, %v1589
      %v1599 = vadd.f32 %v1575, %v1589
      %v1600 = vadd.f32 %v1576, %v1594
      %v1601 = vadd.f32 %v1577, %v1594
      %v1602 = vadd.f32 %v1596, %v1597
      %v1603 = vadd.f32 %v1602, %v1598
      %v1604 = vadd.f32 %v1603, %v1599
      %v1605 = vadd.f32 %v1604, %v1600
      %v1606 = vadd.f32 %v1605, %v1601
      %1607 = vadd.xlane.f32.xlu0 %v1606
      %v1608 = vpop.xlane.xlu0 %1607
      %v1609 = vrot.slane %v1608, 4
      %v1610 = vadd.f32 %v1608, %v1609
      %v1611 = vrot.slane %v1610, 2
      %v1612 = vadd.f32 %v1610, %v1611
      %v1613 = vrot.slane %v1612, 1
      %v1614 = vadd.f32 %v1612, %v1613
      %s1615 = vtos %v1614
      %v1616 = vmul.f32 %v1596, %v1596
      %v1617 = vmul.f32 %v1597, %v1597
      %v1618 = vmul.f32 %v1598, %v1598
      %v1619 = vmul.f32 %v1599, %v1599
      %v1620 = vmul.f32 %v1600, %v1600
      %v1621 = vmul.f32 %v1601, %v1601
      %v1622 = vadd.f32 %v1616, %v1617
      %v1623 = vadd.f32 %v1622, %v1618
      %v1624 = vadd.f32 %v1623, %v1619
      %v1625 = vadd.f32 %v1624, %v1620
      %v1626 = vadd.f32 %v1625, %v1621
      %1627 = vadd.xlane.f32.xlu0 %v1626
      %v1628 = vpop.xlane.xlu0 %1627
      %v1629 = vrot.slane %v1628, 4
      %v1630 = vadd.f32 %v1628, %v1629
      %v1631 = vrot.slane %v1630, 2
      %v1632 = vadd.f32 %v1630, %v1631
      %v1633 = vrot.slane %v1632, 1
      %v1634 = vadd.f32 %v1632, %v1633
      %s1635 = vtos %v1634
      %v1636 = vrcp.pop 6144.0
      %v1637 = vmul.f32 6144.0, %v1636
      %v1638 = vsub.f32 1.0, %v1637
      %v1639 = vmul.f32 %v1636, %v1638
      %v1640 = vadd.f32 %v1636, %v1639
      %vm1641 = vweird.f32 %v1636
      %v1642 = vsel %vm1641, %v1636, %v1640
      %s1643 = vtos %v1642
      %s1644 = smul.f32 %s1615, %s1643
      %v1645 = vrcp.pop 6144.0
      %v1646 = vmul.f32 6144.0, %v1645
      %v1647 = vsub.f32 1.0, %v1646
      %v1648 = vmul.f32 %v1645, %v1647
      %v1649 = vadd.f32 %v1645, %v1648
      %vm1650 = vweird.f32 %v1645
      %v1651 = vsel %vm1650, %v1645, %v1649
      %s1652 = vtos %v1651
      %s1653 = smul.f32 %s1635, %s1652
      %s1654 = smul.f32 %s1644, %s1644
      %s1655 = ssub.f32 %s1653, %s1654
      %v1656 = vstv %s1644
      %v1657 = vsub.f32 %v1596, %v1656
      %v1658 = vsub.f32 %v1597, %v1656
      %v1659 = vsub.f32 %v1598, %v1656
      %v1660 = vsub.f32 %v1599, %v1656
      %v1661 = vsub.f32 %v1600, %v1656
      %v1662 = vsub.f32 %v1601, %v1656
      %s1663 = sadd.f32 %s1655, 1e-05
      %v1664 = vstv %s1663
      %v1665 = vrsqrt.pop %v1664
      %v1666 = vmul.f32 %v1665, %v1664
      %v1667 = vmul.f32 %v1666, %v1665
      %v1668 = vmul.f32 0.5, %v1667
      %v1669 = vsub.f32 1.5, %v1668
      %v1670 = vmul.f32 %v1665, %v1669
      %vm1671 = vweird.f32 %v1664
      %vm1672 = vweird.f32 %v1665
      %vm1673 = vmor %vm1671, %vm1672
      %v1674 = vsel %vm1673, %v1665, %v1670
      %s1675 = vtos %v1674
      %v1676 = vstv %s1675
      %v1677 = vmul.f32 %v1657, %v1676
      %v1678 = vmul.f32 %v1658, %v1676
      %v1679 = vmul.f32 %v1659, %v1676
      %v1680 = vmul.f32 %v1660, %v1676
      %v1681 = vmul.f32 %v1661, %v1676
      %v1682 = vmul.f32 %v1662, %v1676
      %v1683 = vtanh.pop %v1677
      %v1684 = vtanh.pop %v1678
      %v1685 = vmul.f32 %v1679, 0.5
      %v1686 = vmul.f32 %v1680, 0.5
      %v1687 = vtanh.pop %v1685
      %v1688 = vtanh.pop %v1686
      %v1689 = vadd.f32 %v1687, 1.0
      %v1690 = vadd.f32 %v1688, 1.0
      %v1691 = vmul.f32 %v1689, 0.5
      %v1692 = vmul.f32 %v1690, 0.5
      %v1693 = vadd.f32 %v1681, 0.01
      %v1694 = vadd.f32 %v1682, 0.01
      %v1695 = vmul.f32 %v1693, 0.5
      %v1696 = vmul.f32 %v1694, 0.5
      %v1697 = vtanh.pop %v1695
      %v1698 = vtanh.pop %v1696
      %v1699 = vadd.f32 %v1697, 1.0
      %v1700 = vadd.f32 %v1698, 1.0
      %v1701 = vmul.f32 %v1699, 0.5
      %v1702 = vmul.f32 %v1700, 0.5
      %v1703 = vmul.f32 %v1701, %v638
      %v1704 = vmul.f32 %v1702, %v639
      %v1705 = vmul.f32 %v1691, %v1683
      %v1706 = vmul.f32 %v1692, %v1684
      %v1707 = vadd.f32 %v1703, %v1705
      %v1708 = vadd.f32 %v1704, %v1706
      %1709 = vst [vmem:[%s628] sm:$0xff] %v1707
      %1710 = vst [vmem:[%s628 + $0x8] sm:$0xff] %v1708
      %1715 = vrot.lane.b32.xlu0 %v1707, 17
      %v1716 = vpop.permute.xlu0 %1715
      %1717 = vrot.lane.b32.xlu0 %v1708, 17
      %v1718 = vpop.permute.xlu0 %1717
      %1719 = vrot.lane.b32.xlu0 %v640, 17
      %v1720 = vpop.permute.xlu0 %1719
      %1721 = vrot.lane.b32.xlu0 %v641, 17
      %v1722 = vpop.permute.xlu0 %1721
      %v1723 = vsel %vm675, %v1716, %v1718
      %v1724 = vsel %vm675, %v1720, %v1722
      %v1729 = vsel %vm675, 0.0, %v1716
      %v1730 = vsel %vm675, 0.0, %v1720
      %v1731 = vmul.f32 %v1729, %v689
      %v1732 = vmul.f32 %v1723, %v690
      %v1733 = vmul.f32 %v1730, %v689
      %v1734 = vmul.f32 %v1724, %v690
      %v1735 = vld [vmem:[%s7] sm:$0xff]
      %v1736 = vld [vmem:[%s7 + $0x8] sm:$0xff]
      %v1737 = vld [vmem:[%s7 + $0x10] sm:$0xff]
      %1738 = vrot.lane.b32.xlu0 %v1707, 16
      %v1739 = vpop.permute.xlu0 %1738
      %1740 = vrot.lane.b32.xlu0 %v1708, 16
      %v1741 = vpop.permute.xlu0 %1740
      %1742 = vrot.lane.b32.xlu0 %v640, 16
      %v1743 = vpop.permute.xlu0 %1742
      %1744 = vrot.lane.b32.xlu0 %v641, 16
      %v1745 = vpop.permute.xlu0 %1744
      %v1746 = vsel %vm714, %v1739, %v1741
      %v1747 = vsel %vm714, %v1743, %v1745
      %v1752 = vsel %vm714, 0.0, %v1739
      %v1753 = vsel %vm714, 0.0, %v1743
      %v1754 = vmul.f32 %v1752, %v728
      %v1755 = vmul.f32 %v1746, %v729
      %v1756 = vmul.f32 %v1753, %v728
      %v1757 = vmul.f32 %v1747, %v729
      %s1758 = scalar_lea.vmem %s7, 24
      %v1759 = vld [vmem:[%s1758] sm:$0xff]
      %v1760 = vld [vmem:[%s1758 + $0x8] sm:$0xff]
      %v1761 = vld [vmem:[%s1758 + $0x10] sm:$0xff]
      %v1763 = vsel %vm742, %v1759, 0
      %v1766 = vsel %vm742, %v1760, 0
      %v1769 = vsel %vm742, %v1761, 0
      %1771 = vmatpush.msra.mxu0 0.0
      %1772 = vmatpush.msra.mxu0 0.0
      %1773 = vmatpush.msra.mxu0 0.0
      %1774 = vmatpush.msra.mxu0 0.0
      %1775 = vmatpush.msra.mxu0 0.0
      %1776 = vmatpush.msra.mxu0 0.0
      %1777 = vmatpush.msra.mxu0 0.0
      %1778 = vmatpush.msra.mxu0 0.0
      %1779 = vmatpush.msra.mxu0 0.0
      %1780 = vmatpush.msra.mxu0 0.0
      %1781 = vmatpush.msra.mxu0 0.0
      %1782 = vmatpush.msra.mxu0 0.0
      %1783 = vmatpush.msra.mxu0 0.0
      %1784 = vmatpush.msra.mxu0 %v1756
      %1785 = vmatpush.msra.mxu0 %v1754
      %1786 = vmatpush.msra.mxu0 %v732
      %1787 = vmatmul.f32.gmra.mxu0 %v1763
      %v1788 = vpop.f32.mrf.mxu0
      %v1789 = vadd.f32 0.0, %v1788
      %1790 = vmatmul.f32.gmra.mxu0 %v1766
      %v1791 = vpop.f32.mrf.mxu0
      %v1792 = vadd.f32 0.0, %v1791
      %1793 = vmatmul.f32.gmra.mxu0 %v1769
      %v1794 = vpop.f32.mrf.mxu0
      %v1795 = vadd.f32 0.0, %v1794
      %1796 = vdwg.mxu0
      %1797 = vmatpush.msra.mxu0 0.0
      %1798 = vmatpush.msra.mxu0 0.0
      %1799 = vmatpush.msra.mxu0 0.0
      %1800 = vmatpush.msra.mxu0 0.0
      %1801 = vmatpush.msra.mxu0 0.0
      %1802 = vmatpush.msra.mxu0 0.0
      %1803 = vmatpush.msra.mxu0 0.0
      %1804 = vmatpush.msra.mxu0 0.0
      %1805 = vmatpush.msra.mxu0 0.0
      %1806 = vmatpush.msra.mxu0 0.0
      %1807 = vmatpush.msra.mxu0 0.0
      %1808 = vmatpush.msra.mxu0 0.0
      %1809 = vmatpush.msra.mxu0 0.0
      %1810 = vmatpush.msra.mxu0 %v1757
      %1811 = vmatpush.msra.mxu0 %v1755
      %1812 = vmatpush.msra.mxu0 %v733
      %1813 = vmatmul.f32.gmra.mxu0 %v1763
      %v1814 = vpop.f32.mrf.mxu0
      %v1815 = vadd.f32 0.0, %v1814
      %1816 = vmatmul.f32.gmra.mxu0 %v1766
      %v1817 = vpop.f32.mrf.mxu0
      %v1818 = vadd.f32 0.0, %v1817
      %1819 = vmatmul.f32.gmra.mxu0 %v1769
      %v1820 = vpop.f32.mrf.mxu0
      %v1821 = vadd.f32 0.0, %v1820
      %1822 = vdwg.mxu0
      %v1824 = vsel %vm742, %v1735, 0
      %v1827 = vsel %vm742, %v1736, 0
      %v1830 = vsel %vm742, %v1737, 0
      %1832 = vmatpush.msra.mxu0 0.0
      %1833 = vmatpush.msra.mxu0 0.0
      %1834 = vmatpush.msra.mxu0 0.0
      %1835 = vmatpush.msra.mxu0 0.0
      %1836 = vmatpush.msra.mxu0 0.0
      %1837 = vmatpush.msra.mxu0 0.0
      %1838 = vmatpush.msra.mxu0 0.0
      %1839 = vmatpush.msra.mxu0 0.0
      %1840 = vmatpush.msra.mxu0 0.0
      %1841 = vmatpush.msra.mxu0 0.0
      %1842 = vmatpush.msra.mxu0 0.0
      %1843 = vmatpush.msra.mxu0 0.0
      %1844 = vmatpush.msra.mxu0 0.0
      %1845 = vmatpush.msra.mxu0 %v1733
      %1846 = vmatpush.msra.mxu0 %v1731
      %1847 = vmatpush.msra.mxu0 %v693
      %1848 = vmatmul.f32.gmra.mxu0 %v1824
      %v1849 = vpop.f32.mrf.mxu0
      %v1850 = vadd.f32 %v1789, %v1849
      %1851 = vmatmul.f32.gmra.mxu0 %v1827
      %v1852 = vpop.f32.mrf.mxu0
      %v1853 = vadd.f32 %v1792, %v1852
      %1854 = vmatmul.f32.gmra.mxu0 %v1830
      %v1855 = vpop.f32.mrf.mxu0
      %v1856 = vadd.f32 %v1795, %v1855
      %1857 = vdwg.mxu0
      %1858 = vmatpush.msra.mxu0 0.0
      %1859 = vmatpush.msra.mxu0 0.0
      %1860 = vmatpush.msra.mxu0 0.0
      %1861 = vmatpush.msra.mxu0 0.0
      %1862 = vmatpush.msra.mxu0 0.0
      %1863 = vmatpush.msra.mxu0 0.0
      %1864 = vmatpush.msra.mxu0 0.0
      %1865 = vmatpush.msra.mxu0 0.0
      %1866 = vmatpush.msra.mxu0 0.0
      %1867 = vmatpush.msra.mxu0 0.0
      %1868 = vmatpush.msra.mxu0 0.0
      %1869 = vmatpush.msra.mxu0 0.0
      %1870 = vmatpush.msra.mxu0 0.0
      %1871 = vmatpush.msra.mxu0 %v1734
      %1872 = vmatpush.msra.mxu0 %v1732
      %1873 = vmatpush.msra.mxu0 %v694
      %1874 = vmatmul.f32.gmra.mxu0 %v1824
      %v1875 = vpop.f32.mrf.mxu0
      %v1876 = vadd.f32 %v1815, %v1875
      %1877 = vmatmul.f32.gmra.mxu0 %v1827
      %v1878 = vpop.f32.mrf.mxu0
      %v1879 = vadd.f32 %v1818, %v1878
      %1880 = vmatmul.f32.gmra.mxu0 %v1830
      %v1881 = vpop.f32.mrf.mxu0
      %v1882 = vadd.f32 %v1821, %v1881
      %1883 = vdwg.mxu0
      %1884 = vrot.lane.b32.xlu0 %v1707, 15
      %v1885 = vpop.permute.xlu0 %1884
      %1886 = vrot.lane.b32.xlu0 %v1708, 15
      %v1887 = vpop.permute.xlu0 %1886
      %1888 = vrot.lane.b32.xlu0 %v640, 15
      %v1889 = vpop.permute.xlu0 %1888
      %1890 = vrot.lane.b32.xlu0 %v641, 15
      %v1891 = vpop.permute.xlu0 %1890
      %v1892 = vsel %vm877, %v1885, %v1887
      %v1893 = vsel %vm877, %v1889, %v1891
      %v1898 = vsel %vm877, 0.0, %v1885
      %v1899 = vsel %vm877, 0.0, %v1889
      %v1900 = vmul.f32 %v1898, %v891
      %v1901 = vmul.f32 %v1892, %v892
      %v1902 = vmul.f32 %v1899, %v891
      %v1903 = vmul.f32 %v1893, %v892
      %s1904 = scalar_lea.vmem %s7, 48
      %v1905 = vld [vmem:[%s1904] sm:$0xff]
      %v1906 = vld [vmem:[%s1904 + $0x8] sm:$0xff]
      %v1907 = vld [vmem:[%s1904 + $0x10] sm:$0xff]
      %v1909 = vsel %vm742, %v1905, 0
      %v1912 = vsel %vm742, %v1906, 0
      %v1915 = vsel %vm742, %v1907, 0
      %1917 = vmatpush.msra.mxu0 0.0
      %1918 = vmatpush.msra.mxu0 0.0
      %1919 = vmatpush.msra.mxu0 0.0
      %1920 = vmatpush.msra.mxu0 0.0
      %1921 = vmatpush.msra.mxu0 0.0
      %1922 = vmatpush.msra.mxu0 0.0
      %1923 = vmatpush.msra.mxu0 0.0
      %1924 = vmatpush.msra.mxu0 0.0
      %1925 = vmatpush.msra.mxu0 0.0
      %1926 = vmatpush.msra.mxu0 0.0
      %1927 = vmatpush.msra.mxu0 0.0
      %1928 = vmatpush.msra.mxu0 0.0
      %1929 = vmatpush.msra.mxu0 0.0
      %1930 = vmatpush.msra.mxu0 %v1902
      %1931 = vmatpush.msra.mxu0 %v1900
      %1932 = vmatpush.msra.mxu0 %v895
      %1933 = vmatmul.f32.gmra.mxu0 %v1909
      %v1934 = vpop.f32.mrf.mxu0
      %v1935 = vadd.f32 0.0, %v1934
      %1936 = vmatmul.f32.gmra.mxu0 %v1912
      %v1937 = vpop.f32.mrf.mxu0
      %v1938 = vadd.f32 0.0, %v1937
      %1939 = vmatmul.f32.gmra.mxu0 %v1915
      %v1940 = vpop.f32.mrf.mxu0
      %v1941 = vadd.f32 0.0, %v1940
      %1942 = vdwg.mxu0
      %1943 = vmatpush.msra.mxu0 0.0
      %1944 = vmatpush.msra.mxu0 0.0
      %1945 = vmatpush.msra.mxu0 0.0
      %1946 = vmatpush.msra.mxu0 0.0
      %1947 = vmatpush.msra.mxu0 0.0
      %1948 = vmatpush.msra.mxu0 0.0
      %1949 = vmatpush.msra.mxu0 0.0
      %1950 = vmatpush.msra.mxu0 0.0
      %1951 = vmatpush.msra.mxu0 0.0
      %1952 = vmatpush.msra.mxu0 0.0
      %1953 = vmatpush.msra.mxu0 0.0
      %1954 = vmatpush.msra.mxu0 0.0
      %1955 = vmatpush.msra.mxu0 0.0
      %1956 = vmatpush.msra.mxu0 %v1903
      %1957 = vmatpush.msra.mxu0 %v1901
      %1958 = vmatpush.msra.mxu0 %v896
      %1959 = vmatmul.f32.gmra.mxu0 %v1909
      %v1960 = vpop.f32.mrf.mxu0
      %v1961 = vadd.f32 0.0, %v1960
      %1962 = vmatmul.f32.gmra.mxu0 %v1912
      %v1963 = vpop.f32.mrf.mxu0
      %v1964 = vadd.f32 0.0, %v1963
      %1965 = vmatmul.f32.gmra.mxu0 %v1915
      %v1966 = vpop.f32.mrf.mxu0
      %v1967 = vadd.f32 0.0, %v1966
      %1968 = vdwg.mxu0
      %v1969 = vadd.f32 %v1850, %v1935
      %v1970 = vadd.f32 %v1876, %v1961
      %v1971 = vadd.f32 %v1853, %v1938
      %v1972 = vadd.f32 %v1879, %v1964
      %v1973 = vadd.f32 %v1856, %v1941
      %v1974 = vadd.f32 %v1882, %v1967
      %1975 = vrot.lane.b32.xlu0 %v1707, 1
      %v1976 = vpop.permute.xlu0 %1975
      %1977 = vrot.lane.b32.xlu0 %v1708, 1
      %v1978 = vpop.permute.xlu0 %1977
      %1979 = vrot.lane.b32.xlu0 %v640, 1
      %v1980 = vpop.permute.xlu0 %1979
      %1981 = vrot.lane.b32.xlu0 %v641, 1
      %v1982 = vpop.permute.xlu0 %1981
      %v1983 = vsel %vm984, %v1976, %v1978
      %v1984 = vsel %vm984, %v1980, %v1982
      %v1989 = vsel %vm984, 0.0, %v1976
      %v1990 = vsel %vm984, 0.0, %v1980
      %v1991 = vmul.f32 %v1989, %v998
      %v1992 = vmul.f32 %v1983, %v999
      %v1993 = vmul.f32 %v1990, %v998
      %v1994 = vmul.f32 %v1984, %v999
      %s1995 = scalar_lea.vmem %s7, 72
      %v1996 = vld [vmem:[%s1995] sm:$0xff]
      %v1997 = vld [vmem:[%s1995 + $0x8] sm:$0xff]
      %v1998 = vld [vmem:[%s1995 + $0x10] sm:$0xff]
      %v2000 = vsel %vm742, %v1996, 0
      %v2003 = vsel %vm742, %v1997, 0
      %v2006 = vsel %vm742, %v1998, 0
      %2008 = vmatpush.msra.mxu0 0.0
      %2009 = vmatpush.msra.mxu0 0.0
      %2010 = vmatpush.msra.mxu0 0.0
      %2011 = vmatpush.msra.mxu0 0.0
      %2012 = vmatpush.msra.mxu0 0.0
      %2013 = vmatpush.msra.mxu0 0.0
      %2014 = vmatpush.msra.mxu0 0.0
      %2015 = vmatpush.msra.mxu0 0.0
      %2016 = vmatpush.msra.mxu0 0.0
      %2017 = vmatpush.msra.mxu0 0.0
      %2018 = vmatpush.msra.mxu0 0.0
      %2019 = vmatpush.msra.mxu0 0.0
      %2020 = vmatpush.msra.mxu0 0.0
      %2021 = vmatpush.msra.mxu0 %v1993
      %2022 = vmatpush.msra.mxu0 %v1991
      %2023 = vmatpush.msra.mxu0 %v1002
      %2024 = vmatmul.f32.gmra.mxu0 %v2000
      %v2025 = vpop.f32.mrf.mxu0
      %v2026 = vadd.f32 0.0, %v2025
      %2027 = vmatmul.f32.gmra.mxu0 %v2003
      %v2028 = vpop.f32.mrf.mxu0
      %v2029 = vadd.f32 0.0, %v2028
      %2030 = vmatmul.f32.gmra.mxu0 %v2006
      %v2031 = vpop.f32.mrf.mxu0
      %v2032 = vadd.f32 0.0, %v2031
      %2033 = vdwg.mxu0
      %2034 = vmatpush.msra.mxu0 0.0
      %2035 = vmatpush.msra.mxu0 0.0
      %2036 = vmatpush.msra.mxu0 0.0
      %2037 = vmatpush.msra.mxu0 0.0
      %2038 = vmatpush.msra.mxu0 0.0
      %2039 = vmatpush.msra.mxu0 0.0
      %2040 = vmatpush.msra.mxu0 0.0
      %2041 = vmatpush.msra.mxu0 0.0
      %2042 = vmatpush.msra.mxu0 0.0
      %2043 = vmatpush.msra.mxu0 0.0
      %2044 = vmatpush.msra.mxu0 0.0
      %2045 = vmatpush.msra.mxu0 0.0
      %2046 = vmatpush.msra.mxu0 0.0
      %2047 = vmatpush.msra.mxu0 %v1994
      %2048 = vmatpush.msra.mxu0 %v1992
      %2049 = vmatpush.msra.mxu0 %v1003
      %2050 = vmatmul.f32.gmra.mxu0 %v2000
      %v2051 = vpop.f32.mrf.mxu0
      %v2052 = vadd.f32 0.0, %v2051
      %2053 = vmatmul.f32.gmra.mxu0 %v2003
      %v2054 = vpop.f32.mrf.mxu0
      %v2055 = vadd.f32 0.0, %v2054
      %2056 = vmatmul.f32.gmra.mxu0 %v2006
      %v2057 = vpop.f32.mrf.mxu0
      %v2058 = vadd.f32 0.0, %v2057
      %2059 = vdwg.mxu0
      %v2060 = vadd.f32 %v1969, %v2026
      %v2061 = vadd.f32 %v1970, %v2052
      %v2062 = vadd.f32 %v1971, %v2029
      %v2063 = vadd.f32 %v1972, %v2055
      %v2064 = vadd.f32 %v1973, %v2032
      %v2065 = vadd.f32 %v1974, %v2058
      %s2066 = scalar_lea.vmem %s7, 96
      %v2067 = vld [vmem:[%s2066] sm:$0xff]
      %v2068 = vld [vmem:[%s2066 + $0x8] sm:$0xff]
      %v2069 = vld [vmem:[%s2066 + $0x10] sm:$0xff]
      %v2071 = vsel %vm742, %v2067, 0
      %v2074 = vsel %vm742, %v2068, 0
      %v2077 = vsel %vm742, %v2069, 0
      %2079 = vmatpush.msra.mxu0 0.0
      %2080 = vmatpush.msra.mxu0 0.0
      %2081 = vmatpush.msra.mxu0 0.0
      %2082 = vmatpush.msra.mxu0 0.0
      %2083 = vmatpush.msra.mxu0 0.0
      %2084 = vmatpush.msra.mxu0 0.0
      %2085 = vmatpush.msra.mxu0 0.0
      %2086 = vmatpush.msra.mxu0 0.0
      %2087 = vmatpush.msra.mxu0 0.0
      %2088 = vmatpush.msra.mxu0 0.0
      %2089 = vmatpush.msra.mxu0 0.0
      %2090 = vmatpush.msra.mxu0 0.0
      %2091 = vmatpush.msra.mxu0 0.0
      %2092 = vmatpush.msra.mxu0 %v640
      %2093 = vmatpush.msra.mxu0 %v1707
      %2094 = vmatpush.msra.mxu0 %v634
      %2095 = vmatmul.f32.gmra.mxu0 %v2071
      %v2096 = vpop.f32.mrf.mxu0
      %v2097 = vadd.f32 0.0, %v2096
      %2098 = vmatmul.f32.gmra.mxu0 %v2074
      %v2099 = vpop.f32.mrf.mxu0
      %v2100 = vadd.f32 0.0, %v2099
      %2101 = vmatmul.f32.gmra.mxu0 %v2077
      %v2102 = vpop.f32.mrf.mxu0
      %v2103 = vadd.f32 0.0, %v2102
      %2104 = vdwg.mxu0
      %2105 = vmatpush.msra.mxu0 0.0
      %2106 = vmatpush.msra.mxu0 0.0
      %2107 = vmatpush.msra.mxu0 0.0
      %2108 = vmatpush.msra.mxu0 0.0
      %2109 = vmatpush.msra.mxu0 0.0
      %2110 = vmatpush.msra.mxu0 0.0
      %2111 = vmatpush.msra.mxu0 0.0
      %2112 = vmatpush.msra.mxu0 0.0
      %2113 = vmatpush.msra.mxu0 0.0
      %2114 = vmatpush.msra.mxu0 0.0
      %2115 = vmatpush.msra.mxu0 0.0
      %2116 = vmatpush.msra.mxu0 0.0
      %2117 = vmatpush.msra.mxu0 0.0
      %2118 = vmatpush.msra.mxu0 %v641
      %2119 = vmatpush.msra.mxu0 %v1708
      %2120 = vmatpush.msra.mxu0 %v635
      %2121 = vmatmul.f32.gmra.mxu0 %v2071
      %v2122 = vpop.f32.mrf.mxu0
      %v2123 = vadd.f32 0.0, %v2122
      %2124 = vmatmul.f32.gmra.mxu0 %v2074
      %v2125 = vpop.f32.mrf.mxu0
      %v2126 = vadd.f32 0.0, %v2125
      %2127 = vmatmul.f32.gmra.mxu0 %v2077
      %v2128 = vpop.f32.mrf.mxu0
      %v2129 = vadd.f32 0.0, %v2128
      %2130 = vdwg.mxu0
      %v2131 = vadd.f32 %v2060, %v2097
      %v2132 = vadd.f32 %v2061, %v2123
      %v2133 = vadd.f32 %v2062, %v2100
      %v2134 = vadd.f32 %v2063, %v2126
      %v2135 = vadd.f32 %v2064, %v2103
      %v2136 = vadd.f32 %v2065, %v2129
      %2137 = vrot.lane.b32.xlu0 %v1707, 127
      %v2138 = vpop.permute.xlu0 %2137
      %2139 = vrot.lane.b32.xlu0 %v1708, 127
      %v2140 = vpop.permute.xlu0 %2139
      %2141 = vrot.lane.b32.xlu0 %v640, 127
      %v2142 = vpop.permute.xlu0 %2141
      %2143 = vrot.lane.b32.xlu0 %v641, 127
      %v2144 = vpop.permute.xlu0 %2143
      %v2145 = vsel %vm1162, %v2138, %v2140
      %v2146 = vsel %vm1162, %v2142, %v2144
      %v2151 = vsel %vm1162, %v2140, 0.0
      %v2152 = vsel %vm1162, %v2144, 0.0
      %v2153 = vmul.f32 %v2145, %v1176
      %v2154 = vmul.f32 %v2151, %v1177
      %v2155 = vmul.f32 %v2146, %v1176
      %v2156 = vmul.f32 %v2152, %v1177
      %s2157 = scalar_lea.vmem %s7, 120
      %v2158 = vld [vmem:[%s2157] sm:$0xff]
      %v2159 = vld [vmem:[%s2157 + $0x8] sm:$0xff]
      %v2160 = vld [vmem:[%s2157 + $0x10] sm:$0xff]
      %v2162 = vsel %vm742, %v2158, 0
      %v2165 = vsel %vm742, %v2159, 0
      %v2168 = vsel %vm742, %v2160, 0
      %2170 = vmatpush.msra.mxu0 0.0
      %2171 = vmatpush.msra.mxu0 0.0
      %2172 = vmatpush.msra.mxu0 0.0
      %2173 = vmatpush.msra.mxu0 0.0
      %2174 = vmatpush.msra.mxu0 0.0
      %2175 = vmatpush.msra.mxu0 0.0
      %2176 = vmatpush.msra.mxu0 0.0
      %2177 = vmatpush.msra.mxu0 0.0
      %2178 = vmatpush.msra.mxu0 0.0
      %2179 = vmatpush.msra.mxu0 0.0
      %2180 = vmatpush.msra.mxu0 0.0
      %2181 = vmatpush.msra.mxu0 0.0
      %2182 = vmatpush.msra.mxu0 0.0
      %2183 = vmatpush.msra.mxu0 %v2155
      %2184 = vmatpush.msra.mxu0 %v2153
      %2185 = vmatpush.msra.mxu0 %v1180
      %2186 = vmatmul.f32.gmra.mxu0 %v2162
      %v2187 = vpop.f32.mrf.mxu0
      %v2188 = vadd.f32 0.0, %v2187
      %2189 = vmatmul.f32.gmra.mxu0 %v2165
      %v2190 = vpop.f32.mrf.mxu0
      %v2191 = vadd.f32 0.0, %v2190
      %2192 = vmatmul.f32.gmra.mxu0 %v2168
      %v2193 = vpop.f32.mrf.mxu0
      %v2194 = vadd.f32 0.0, %v2193
      %2195 = vdwg.mxu0
      %2196 = vmatpush.msra.mxu0 0.0
      %2197 = vmatpush.msra.mxu0 0.0
      %2198 = vmatpush.msra.mxu0 0.0
      %2199 = vmatpush.msra.mxu0 0.0
      %2200 = vmatpush.msra.mxu0 0.0
      %2201 = vmatpush.msra.mxu0 0.0
      %2202 = vmatpush.msra.mxu0 0.0
      %2203 = vmatpush.msra.mxu0 0.0
      %2204 = vmatpush.msra.mxu0 0.0
      %2205 = vmatpush.msra.mxu0 0.0
      %2206 = vmatpush.msra.mxu0 0.0
      %2207 = vmatpush.msra.mxu0 0.0
      %2208 = vmatpush.msra.mxu0 0.0
      %2209 = vmatpush.msra.mxu0 %v2156
      %2210 = vmatpush.msra.mxu0 %v2154
      %2211 = vmatpush.msra.mxu0 %v1181
      %2212 = vmatmul.f32.gmra.mxu0 %v2162
      %v2213 = vpop.f32.mrf.mxu0
      %v2214 = vadd.f32 0.0, %v2213
      %2215 = vmatmul.f32.gmra.mxu0 %v2165
      %v2216 = vpop.f32.mrf.mxu0
      %v2217 = vadd.f32 0.0, %v2216
      %2218 = vmatmul.f32.gmra.mxu0 %v2168
      %v2219 = vpop.f32.mrf.mxu0
      %v2220 = vadd.f32 0.0, %v2219
      %2221 = vdwg.mxu0
      %v2222 = vadd.f32 %v2131, %v2188
      %v2223 = vadd.f32 %v2132, %v2214
      %v2224 = vadd.f32 %v2133, %v2191
      %v2225 = vadd.f32 %v2134, %v2217
      %v2226 = vadd.f32 %v2135, %v2194
      %v2227 = vadd.f32 %v2136, %v2220
      %2228 = vrot.lane.b32.xlu0 %v1707, 113
      %v2229 = vpop.permute.xlu0 %2228
      %2230 = vrot.lane.b32.xlu0 %v1708, 113
      %v2231 = vpop.permute.xlu0 %2230
      %2232 = vrot.lane.b32.xlu0 %v640, 113
      %v2233 = vpop.permute.xlu0 %2232
      %2234 = vrot.lane.b32.xlu0 %v641, 113
      %v2235 = vpop.permute.xlu0 %2234
      %v2236 = vsel %vm1269, %v2229, %v2231
      %v2237 = vsel %vm1269, %v2233, %v2235
      %v2242 = vsel %vm1269, %v2231, 0.0
      %v2243 = vsel %vm1269, %v2235, 0.0
      %v2244 = vmul.f32 %v2236, %v1283
      %v2245 = vmul.f32 %v2242, %v1284
      %v2246 = vmul.f32 %v2237, %v1283
      %v2247 = vmul.f32 %v2243, %v1284
      %s2248 = scalar_lea.vmem %s7, 144
      %v2249 = vld [vmem:[%s2248] sm:$0xff]
      %v2250 = vld [vmem:[%s2248 + $0x8] sm:$0xff]
      %v2251 = vld [vmem:[%s2248 + $0x10] sm:$0xff]
      %v2253 = vsel %vm742, %v2249, 0
      %v2256 = vsel %vm742, %v2250, 0
      %v2259 = vsel %vm742, %v2251, 0
      %2261 = vmatpush.msra.mxu0 0.0
      %2262 = vmatpush.msra.mxu0 0.0
      %2263 = vmatpush.msra.mxu0 0.0
      %2264 = vmatpush.msra.mxu0 0.0
      %2265 = vmatpush.msra.mxu0 0.0
      %2266 = vmatpush.msra.mxu0 0.0
      %2267 = vmatpush.msra.mxu0 0.0
      %2268 = vmatpush.msra.mxu0 0.0
      %2269 = vmatpush.msra.mxu0 0.0
      %2270 = vmatpush.msra.mxu0 0.0
      %2271 = vmatpush.msra.mxu0 0.0
      %2272 = vmatpush.msra.mxu0 0.0
      %2273 = vmatpush.msra.mxu0 0.0
      %2274 = vmatpush.msra.mxu0 %v2246
      %2275 = vmatpush.msra.mxu0 %v2244
      %2276 = vmatpush.msra.mxu0 %v1287
      %2277 = vmatmul.f32.gmra.mxu0 %v2253
      %v2278 = vpop.f32.mrf.mxu0
      %v2279 = vadd.f32 0.0, %v2278
      %2280 = vmatmul.f32.gmra.mxu0 %v2256
      %v2281 = vpop.f32.mrf.mxu0
      %v2282 = vadd.f32 0.0, %v2281
      %2283 = vmatmul.f32.gmra.mxu0 %v2259
      %v2284 = vpop.f32.mrf.mxu0
      %v2285 = vadd.f32 0.0, %v2284
      %2286 = vdwg.mxu0
      %2287 = vmatpush.msra.mxu0 0.0
      %2288 = vmatpush.msra.mxu0 0.0
      %2289 = vmatpush.msra.mxu0 0.0
      %2290 = vmatpush.msra.mxu0 0.0
      %2291 = vmatpush.msra.mxu0 0.0
      %2292 = vmatpush.msra.mxu0 0.0
      %2293 = vmatpush.msra.mxu0 0.0
      %2294 = vmatpush.msra.mxu0 0.0
      %2295 = vmatpush.msra.mxu0 0.0
      %2296 = vmatpush.msra.mxu0 0.0
      %2297 = vmatpush.msra.mxu0 0.0
      %2298 = vmatpush.msra.mxu0 0.0
      %2299 = vmatpush.msra.mxu0 0.0
      %2300 = vmatpush.msra.mxu0 %v2247
      %2301 = vmatpush.msra.mxu0 %v2245
      %2302 = vmatpush.msra.mxu0 %v1288
      %2303 = vmatmul.f32.gmra.mxu0 %v2253
      %v2304 = vpop.f32.mrf.mxu0
      %v2305 = vadd.f32 0.0, %v2304
      %2306 = vmatmul.f32.gmra.mxu0 %v2256
      %v2307 = vpop.f32.mrf.mxu0
      %v2308 = vadd.f32 0.0, %v2307
      %2309 = vmatmul.f32.gmra.mxu0 %v2259
      %v2310 = vpop.f32.mrf.mxu0
      %v2311 = vadd.f32 0.0, %v2310
      %2312 = vdwg.mxu0
      %v2313 = vadd.f32 %v2222, %v2279
      %v2314 = vadd.f32 %v2223, %v2305
      %v2315 = vadd.f32 %v2224, %v2282
      %v2316 = vadd.f32 %v2225, %v2308
      %v2317 = vadd.f32 %v2226, %v2285
      %v2318 = vadd.f32 %v2227, %v2311
      %2319 = vrot.lane.b32.xlu0 %v1707, 112
      %v2320 = vpop.permute.xlu0 %2319
      %2321 = vrot.lane.b32.xlu0 %v1708, 112
      %v2322 = vpop.permute.xlu0 %2321
      %2323 = vrot.lane.b32.xlu0 %v640, 112
      %v2324 = vpop.permute.xlu0 %2323
      %2325 = vrot.lane.b32.xlu0 %v641, 112
      %v2326 = vpop.permute.xlu0 %2325
      %v2327 = vsel %vm1376, %v2320, %v2322
      %v2328 = vsel %vm1376, %v2324, %v2326
      %v2333 = vsel %vm1376, %v2322, 0.0
      %v2334 = vsel %vm1376, %v2326, 0.0
      %v2335 = vmul.f32 %v2327, %v1390
      %v2336 = vmul.f32 %v2333, %v1391
      %v2337 = vmul.f32 %v2328, %v1390
      %v2338 = vmul.f32 %v2334, %v1391
      %s2339 = scalar_lea.vmem %s7, 168
      %v2340 = vld [vmem:[%s2339] sm:$0xff]
      %v2341 = vld [vmem:[%s2339 + $0x8] sm:$0xff]
      %v2342 = vld [vmem:[%s2339 + $0x10] sm:$0xff]
      %v2344 = vsel %vm742, %v2340, 0
      %v2347 = vsel %vm742, %v2341, 0
      %v2350 = vsel %vm742, %v2342, 0
      %2352 = vmatpush.msra.mxu0 0.0
      %2353 = vmatpush.msra.mxu0 0.0
      %2354 = vmatpush.msra.mxu0 0.0
      %2355 = vmatpush.msra.mxu0 0.0
      %2356 = vmatpush.msra.mxu0 0.0
      %2357 = vmatpush.msra.mxu0 0.0
      %2358 = vmatpush.msra.mxu0 0.0
      %2359 = vmatpush.msra.mxu0 0.0
      %2360 = vmatpush.msra.mxu0 0.0
      %2361 = vmatpush.msra.mxu0 0.0
      %2362 = vmatpush.msra.mxu0 0.0
      %2363 = vmatpush.msra.mxu0 0.0
      %2364 = vmatpush.msra.mxu0 0.0
      %2365 = vmatpush.msra.mxu0 %v2337
      %2366 = vmatpush.msra.mxu0 %v2335
      %2367 = vmatpush.msra.mxu0 %v1394
      %2368 = vmatmul.f32.gmra.mxu0 %v2344
      %v2369 = vpop.f32.mrf.mxu0
      %v2370 = vadd.f32 0.0, %v2369
      %2371 = vmatmul.f32.gmra.mxu0 %v2347
      %v2372 = vpop.f32.mrf.mxu0
      %v2373 = vadd.f32 0.0, %v2372
      %2374 = vmatmul.f32.gmra.mxu0 %v2350
      %v2375 = vpop.f32.mrf.mxu0
      %v2376 = vadd.f32 0.0, %v2375
      %2377 = vdwg.mxu0
      %2378 = vmatpush.msra.mxu0 0.0
      %2379 = vmatpush.msra.mxu0 0.0
      %2380 = vmatpush.msra.mxu0 0.0
      %2381 = vmatpush.msra.mxu0 0.0
      %2382 = vmatpush.msra.mxu0 0.0
      %2383 = vmatpush.msra.mxu0 0.0
      %2384 = vmatpush.msra.mxu0 0.0
      %2385 = vmatpush.msra.mxu0 0.0
      %2386 = vmatpush.msra.mxu0 0.0
      %2387 = vmatpush.msra.mxu0 0.0
      %2388 = vmatpush.msra.mxu0 0.0
      %2389 = vmatpush.msra.mxu0 0.0
      %2390 = vmatpush.msra.mxu0 0.0
      %2391 = vmatpush.msra.mxu0 %v2338
      %2392 = vmatpush.msra.mxu0 %v2336
      %2393 = vmatpush.msra.mxu0 %v1395
      %2394 = vmatmul.f32.gmra.mxu0 %v2344
      %v2395 = vpop.f32.mrf.mxu0
      %v2396 = vadd.f32 0.0, %v2395
      %2397 = vmatmul.f32.gmra.mxu0 %v2347
      %v2398 = vpop.f32.mrf.mxu0
      %v2399 = vadd.f32 0.0, %v2398
      %2400 = vmatmul.f32.gmra.mxu0 %v2350
      %v2401 = vpop.f32.mrf.mxu0
      %v2402 = vadd.f32 0.0, %v2401
      %2403 = vdwg.mxu0
      %v2404 = vadd.f32 %v2313, %v2370
      %v2405 = vadd.f32 %v2314, %v2396
      %v2406 = vadd.f32 %v2315, %v2373
      %v2407 = vadd.f32 %v2316, %v2399
      %v2408 = vadd.f32 %v2317, %v2376
      %v2409 = vadd.f32 %v2318, %v2402
      %2410 = vrot.lane.b32.xlu0 %v1707, 111
      %v2411 = vpop.permute.xlu0 %2410
      %2412 = vrot.lane.b32.xlu0 %v1708, 111
      %v2413 = vpop.permute.xlu0 %2412
      %2414 = vrot.lane.b32.xlu0 %v640, 111
      %v2415 = vpop.permute.xlu0 %2414
      %2416 = vrot.lane.b32.xlu0 %v641, 111
      %v2417 = vpop.permute.xlu0 %2416
      %v2418 = vsel %vm1483, %v2411, %v2413
      %v2419 = vsel %vm1483, %v2415, %v2417
      %v2424 = vsel %vm1483, %v2413, 0.0
      %v2425 = vsel %vm1483, %v2417, 0.0
      %v2426 = vmul.f32 %v2418, %v1497
      %v2427 = vmul.f32 %v2424, %v1498
      %v2428 = vmul.f32 %v2419, %v1497
      %v2429 = vmul.f32 %v2425, %v1498
      %s2430 = scalar_lea.vmem %s7, 192
      %v2431 = vld [vmem:[%s2430] sm:$0xff]
      %v2432 = vld [vmem:[%s2430 + $0x8] sm:$0xff]
      %v2433 = vld [vmem:[%s2430 + $0x10] sm:$0xff]
      %v2435 = vsel %vm742, %v2431, 0
      %v2438 = vsel %vm742, %v2432, 0
      %v2441 = vsel %vm742, %v2433, 0
      %2443 = vmatpush.msra.mxu0 0.0
      %2444 = vmatpush.msra.mxu0 0.0
      %2445 = vmatpush.msra.mxu0 0.0
      %2446 = vmatpush.msra.mxu0 0.0
      %2447 = vmatpush.msra.mxu0 0.0
      %2448 = vmatpush.msra.mxu0 0.0
      %2449 = vmatpush.msra.mxu0 0.0
      %2450 = vmatpush.msra.mxu0 0.0
      %2451 = vmatpush.msra.mxu0 0.0
      %2452 = vmatpush.msra.mxu0 0.0
      %2453 = vmatpush.msra.mxu0 0.0
      %2454 = vmatpush.msra.mxu0 0.0
      %2455 = vmatpush.msra.mxu0 0.0
      %2456 = vmatpush.msra.mxu0 %v2428
      %2457 = vmatpush.msra.mxu0 %v2426
      %2458 = vmatpush.msra.mxu0 %v1501
      %2459 = vmatmul.f32.gmra.mxu0 %v2435
      %v2460 = vpop.f32.mrf.mxu0
      %v2461 = vadd.f32 0.0, %v2460
      %2462 = vmatmul.f32.gmra.mxu0 %v2438
      %v2463 = vpop.f32.mrf.mxu0
      %v2464 = vadd.f32 0.0, %v2463
      %2465 = vmatmul.f32.gmra.mxu0 %v2441
      %v2466 = vpop.f32.mrf.mxu0
      %v2467 = vadd.f32 0.0, %v2466
      %2468 = vdwg.mxu0
      %2469 = vmatpush.msra.mxu0 0.0
      %2470 = vmatpush.msra.mxu0 0.0
      %2471 = vmatpush.msra.mxu0 0.0
      %2472 = vmatpush.msra.mxu0 0.0
      %2473 = vmatpush.msra.mxu0 0.0
      %2474 = vmatpush.msra.mxu0 0.0
      %2475 = vmatpush.msra.mxu0 0.0
      %2476 = vmatpush.msra.mxu0 0.0
      %2477 = vmatpush.msra.mxu0 0.0
      %2478 = vmatpush.msra.mxu0 0.0
      %2479 = vmatpush.msra.mxu0 0.0
      %2480 = vmatpush.msra.mxu0 0.0
      %2481 = vmatpush.msra.mxu0 0.0
      %2482 = vmatpush.msra.mxu0 %v2429
      %2483 = vmatpush.msra.mxu0 %v2427
      %2484 = vmatpush.msra.mxu0 %v1502
      %2485 = vmatmul.f32.gmra.mxu0 %v2435
      %v2486 = vpop.f32.mrf.mxu0
      %v2487 = vadd.f32 0.0, %v2486
      %2488 = vmatmul.f32.gmra.mxu0 %v2438
      %v2489 = vpop.f32.mrf.mxu0
      %v2490 = vadd.f32 0.0, %v2489
      %2491 = vmatmul.f32.gmra.mxu0 %v2441
      %v2492 = vpop.f32.mrf.mxu0
      %v2493 = vadd.f32 0.0, %v2492
      %2494 = vdwg.mxu0
      %v2495 = vadd.f32 %v2404, %v2461
      %v2496 = vadd.f32 %v2405, %v2487
      %v2497 = vadd.f32 %v2406, %v2464
      %v2498 = vadd.f32 %v2407, %v2490
      %v2499 = vadd.f32 %v2408, %v2467
      %v2500 = vadd.f32 %v2409, %v2493
      %v2501 = vld [vmem:[%s8] sm:$0xff]
      %v2502 = vld [vmem:[%s8 + $0x8] sm:$0xff]
      %v2503 = vld [vmem:[%s8 + $0x10] sm:$0xff]
      %2505 = vset.pattern.permute.xlu0 0
      %2506 = vperm.xlu0 %2505, %v2501
      %v2507 = vpop.permute.xlu0 %2506
      %2510 = vset.pattern.permute.xlu0 0
      %2511 = vperm.xlu0 %2510, %v2502
      %v2512 = vpop.permute.xlu0 %2511
      %2515 = vset.pattern.permute.xlu0 0
      %2516 = vperm.xlu0 %2515, %v2503
      %v2517 = vpop.permute.xlu0 %2516
      %v2519 = vadd.f32 %v2495, %v2507
      %v2520 = vadd.f32 %v2496, %v2507
      %v2521 = vadd.f32 %v2497, %v2512
      %v2522 = vadd.f32 %v2498, %v2512
      %v2523 = vadd.f32 %v2499, %v2517
      %v2524 = vadd.f32 %v2500, %v2517
      %v2525 = vadd.f32 %v2519, %v2520
      %v2526 = vadd.f32 %v2525, %v2521
      %v2527 = vadd.f32 %v2526, %v2522
      %v2528 = vadd.f32 %v2527, %v2523
      %v2529 = vadd.f32 %v2528, %v2524
      %2530 = vadd.xlane.f32.xlu0 %v2529
      %v2531 = vpop.xlane.xlu0 %2530
      %v2532 = vrot.slane %v2531, 4
      %v2533 = vadd.f32 %v2531, %v2532
      %v2534 = vrot.slane %v2533, 2
      %v2535 = vadd.f32 %v2533, %v2534
      %v2536 = vrot.slane %v2535, 1
      %v2537 = vadd.f32 %v2535, %v2536
      %s2538 = vtos %v2537
      %v2539 = vmul.f32 %v2519, %v2519
      %v2540 = vmul.f32 %v2520, %v2520
      %v2541 = vmul.f32 %v2521, %v2521
      %v2542 = vmul.f32 %v2522, %v2522
      %v2543 = vmul.f32 %v2523, %v2523
      %v2544 = vmul.f32 %v2524, %v2524
      %v2545 = vadd.f32 %v2539, %v2540
      %v2546 = vadd.f32 %v2545, %v2541
      %v2547 = vadd.f32 %v2546, %v2542
      %v2548 = vadd.f32 %v2547, %v2543
      %v2549 = vadd.f32 %v2548, %v2544
      %2550 = vadd.xlane.f32.xlu0 %v2549
      %v2551 = vpop.xlane.xlu0 %2550
      %v2552 = vrot.slane %v2551, 4
      %v2553 = vadd.f32 %v2551, %v2552
      %v2554 = vrot.slane %v2553, 2
      %v2555 = vadd.f32 %v2553, %v2554
      %v2556 = vrot.slane %v2555, 1
      %v2557 = vadd.f32 %v2555, %v2556
      %s2558 = vtos %v2557
      %v2559 = vrcp.pop 6144.0
      %v2560 = vmul.f32 6144.0, %v2559
      %v2561 = vsub.f32 1.0, %v2560
      %v2562 = vmul.f32 %v2559, %v2561
      %v2563 = vadd.f32 %v2559, %v2562
      %vm2564 = vweird.f32 %v2559
      %v2565 = vsel %vm2564, %v2559, %v2563
      %s2566 = vtos %v2565
      %s2567 = smul.f32 %s2538, %s2566
      %v2568 = vrcp.pop 6144.0
      %v2569 = vmul.f32 6144.0, %v2568
      %v2570 = vsub.f32 1.0, %v2569
      %v2571 = vmul.f32 %v2568, %v2570
      %v2572 = vadd.f32 %v2568, %v2571
      %vm2573 = vweird.f32 %v2568
      %v2574 = vsel %vm2573, %v2568, %v2572
      %s2575 = vtos %v2574
      %s2576 = smul.f32 %s2558, %s2575
      %s2577 = smul.f32 %s2567, %s2567
      %s2578 = ssub.f32 %s2576, %s2577
      %v2579 = vstv %s2567
      %v2580 = vsub.f32 %v2519, %v2579
      %v2581 = vsub.f32 %v2520, %v2579
      %v2582 = vsub.f32 %v2521, %v2579
      %v2583 = vsub.f32 %v2522, %v2579
      %v2584 = vsub.f32 %v2523, %v2579
      %v2585 = vsub.f32 %v2524, %v2579
      %s2586 = sadd.f32 %s2578, 1e-05
      %v2587 = vstv %s2586
      %v2588 = vrsqrt.pop %v2587
      %v2589 = vmul.f32 %v2588, %v2587
      %v2590 = vmul.f32 %v2589, %v2588
      %v2591 = vmul.f32 0.5, %v2590
      %v2592 = vsub.f32 1.5, %v2591
      %v2593 = vmul.f32 %v2588, %v2592
      %vm2594 = vweird.f32 %v2587
      %vm2595 = vweird.f32 %v2588
      %vm2596 = vmor %vm2594, %vm2595
      %v2597 = vsel %vm2596, %v2588, %v2593
      %s2598 = vtos %v2597
      %v2599 = vstv %s2598
      %v2600 = vmul.f32 %v2580, %v2599
      %v2601 = vmul.f32 %v2581, %v2599
      %v2602 = vmul.f32 %v2582, %v2599
      %v2603 = vmul.f32 %v2583, %v2599
      %v2604 = vmul.f32 %v2584, %v2599
      %v2605 = vmul.f32 %v2585, %v2599
      %v2606 = vtanh.pop %v2600
      %v2607 = vtanh.pop %v2601
      %v2608 = vmul.f32 %v2602, 0.5
      %v2609 = vmul.f32 %v2603, 0.5
      %v2610 = vtanh.pop %v2608
      %v2611 = vtanh.pop %v2609
      %v2612 = vadd.f32 %v2610, 1.0
      %v2613 = vadd.f32 %v2611, 1.0
      %v2614 = vmul.f32 %v2612, 0.5
      %v2615 = vmul.f32 %v2613, 0.5
      %v2616 = vadd.f32 %v2604, 0.01
      %v2617 = vadd.f32 %v2605, 0.01
      %v2618 = vmul.f32 %v2616, 0.5
      %v2619 = vmul.f32 %v2617, 0.5
      %v2620 = vtanh.pop %v2618
      %v2621 = vtanh.pop %v2619
      %v2622 = vadd.f32 %v2620, 1.0
      %v2623 = vadd.f32 %v2621, 1.0
      %v2624 = vmul.f32 %v2622, 0.5
      %v2625 = vmul.f32 %v2623, 0.5
      %v2626 = vld [vmem:[%s9] sm:$0xff]
      %v2627 = vld [vmem:[%s10] sm:$0xff]
      %2629 = vset.pattern.permute.xlu0 0
      %2630 = vperm.xlu0 %2629, %v2627
      %v2631 = vpop.permute.xlu0 %2630
      %vm2633 = vcmask 64512
      %v2635 = vsel %vm2633, %v2626, 0
      %2637 = vmatpush.msra.mxu0 0.0
      %2638 = vmatpush.msra.mxu0 0.0
      %2639 = vmatpush.msra.mxu0 0.0
      %2640 = vmatpush.msra.mxu0 0.0
      %2641 = vmatpush.msra.mxu0 0.0
      %2642 = vmatpush.msra.mxu0 0.0
      %2643 = vmatpush.msra.mxu0 0.0
      %2644 = vmatpush.msra.mxu0 0.0
      %2645 = vmatpush.msra.mxu0 0.0
      %2646 = vmatpush.msra.mxu0 0.0
      %2647 = vmatpush.msra.mxu0 0.0
      %2648 = vmatpush.msra.mxu0 0.0
      %2649 = vmatpush.msra.mxu0 0.0
      %2650 = vmatpush.msra.mxu0 0.0
      %2651 = vmatpush.msra.mxu0 0.0
      %2652 = vmatpush.msra.mxu0 %v640
      %2653 = vmatmul.f32.gmra.mxu0 %v2635
      %v2654 = vpop.f32.mrf.mxu0
      %v2655 = vadd.f32 %v2631, %v2654
      %2656 = vdwg.mxu0
      %2657 = vmatpush.msra.mxu0 0.0
      %2658 = vmatpush.msra.mxu0 0.0
      %2659 = vmatpush.msra.mxu0 0.0
      %2660 = vmatpush.msra.mxu0 0.0
      %2661 = vmatpush.msra.mxu0 0.0
      %2662 = vmatpush.msra.mxu0 0.0
      %2663 = vmatpush.msra.mxu0 0.0
      %2664 = vmatpush.msra.mxu0 0.0
      %2665 = vmatpush.msra.mxu0 0.0
      %2666 = vmatpush.msra.mxu0 0.0
      %2667 = vmatpush.msra.mxu0 0.0
      %2668 = vmatpush.msra.mxu0 0.0
      %2669 = vmatpush.msra.mxu0 0.0
      %2670 = vmatpush.msra.mxu0 0.0
      %2671 = vmatpush.msra.mxu0 0.0
      %2672 = vmatpush.msra.mxu0 %v641
      %2673 = vmatmul.f32.gmra.mxu0 %v2635
      %v2674 = vpop.f32.mrf.mxu0
      %v2675 = vadd.f32 %v2631, %v2674
      %2676 = vdwg.mxu0
      %v2677 = vtanh.pop %v2655
      %v2678 = vtanh.pop %v2675
      %v2679 = vmul.f32 %v2624, %v2677
      %v2680 = vmul.f32 %v2625, %v2678
      %v2681 = vmul.f32 %v2614, %v2606
      %v2682 = vmul.f32 %v2615, %v2607
      %v2683 = vadd.f32 %v2679, %v2681
      %v2684 = vadd.f32 %v2680, %v2682
      %2685 = vst [vmem:[%s633] sm:$0xff] %v2683
      %2686 = vst [vmem:[%s633 + $0x8] sm:$0xff] %v2684
      %2689 = vrot.lane.b32.xlu0 %v2683, 17
      %v2690 = vpop.permute.xlu0 %2689
      %2691 = vrot.lane.b32.xlu0 %v2684, 17
      %v2692 = vpop.permute.xlu0 %2691
      %v2693 = vsel %vm675, %v2690, %v2692
      %v2696 = vsel %vm675, 0.0, %v2690
      %v2697 = vmul.f32 %v2696, %v689
      %v2698 = vmul.f32 %v2693, %v690
      %v2699 = vld [vmem:[%s11] sm:$0xff]
      %2700 = vrot.lane.b32.xlu0 %v2683, 16
      %v2701 = vpop.permute.xlu0 %2700
      %2702 = vrot.lane.b32.xlu0 %v2684, 16
      %v2703 = vpop.permute.xlu0 %2702
      %v2704 = vsel %vm714, %v2701, %v2703
      %v2707 = vsel %vm714, 0.0, %v2701
      %v2708 = vmul.f32 %v2707, %v728
      %v2709 = vmul.f32 %v2704, %v729
      %s2710 = scalar_lea.vmem %s11, 8
      %v2711 = vld [vmem:[%s2710] sm:$0xff]
      %v2713 = vsel %vm742, %v2711, 0
      %2715 = vmatpush.msra.mxu0 0.0
      %2716 = vmatpush.msra.mxu0 0.0
      %2717 = vmatpush.msra.mxu0 0.0
      %2718 = vmatpush.msra.mxu0 0.0
      %2719 = vmatpush.msra.mxu0 0.0
      %2720 = vmatpush.msra.mxu0 0.0
      %2721 = vmatpush.msra.mxu0 0.0
      %2722 = vmatpush.msra.mxu0 0.0
      %2723 = vmatpush.msra.mxu0 0.0
      %2724 = vmatpush.msra.mxu0 0.0
      %2725 = vmatpush.msra.mxu0 0.0
      %2726 = vmatpush.msra.mxu0 0.0
      %2727 = vmatpush.msra.mxu0 0.0
      %2728 = vmatpush.msra.mxu0 %v2708
      %2729 = vmatpush.msra.mxu0 %v1754
      %2730 = vmatpush.msra.mxu0 %v732
      %2731 = vmatmul.f32.gmra.mxu0 %v2713
      %v2732 = vpop.f32.mrf.mxu0
      %v2733 = vadd.f32 0.0, %v2732
      %2734 = vdwg.mxu0
      %2735 = vmatpush.msra.mxu0 0.0
      %2736 = vmatpush.msra.mxu0 0.0
      %2737 = vmatpush.msra.mxu0 0.0
      %2738 = vmatpush.msra.mxu0 0.0
      %2739 = vmatpush.msra.mxu0 0.0
      %2740 = vmatpush.msra.mxu0 0.0
      %2741 = vmatpush.msra.mxu0 0.0
      %2742 = vmatpush.msra.mxu0 0.0
      %2743 = vmatpush.msra.mxu0 0.0
      %2744 = vmatpush.msra.mxu0 0.0
      %2745 = vmatpush.msra.mxu0 0.0
      %2746 = vmatpush.msra.mxu0 0.0
      %2747 = vmatpush.msra.mxu0 0.0
      %2748 = vmatpush.msra.mxu0 %v2709
      %2749 = vmatpush.msra.mxu0 %v1755
      %2750 = vmatpush.msra.mxu0 %v733
      %2751 = vmatmul.f32.gmra.mxu0 %v2713
      %v2752 = vpop.f32.mrf.mxu0
      %v2753 = vadd.f32 0.0, %v2752
      %2754 = vdwg.mxu0
      %v2756 = vsel %vm742, %v2699, 0
      %2758 = vmatpush.msra.mxu0 0.0
      %2759 = vmatpush.msra.mxu0 0.0
      %2760 = vmatpush.msra.mxu0 0.0
      %2761 = vmatpush.msra.mxu0 0.0
      %2762 = vmatpush.msra.mxu0 0.0
      %2763 = vmatpush.msra.mxu0 0.0
      %2764 = vmatpush.msra.mxu0 0.0
      %2765 = vmatpush.msra.mxu0 0.0
      %2766 = vmatpush.msra.mxu0 0.0
      %2767 = vmatpush.msra.mxu0 0.0
      %2768 = vmatpush.msra.mxu0 0.0
      %2769 = vmatpush.msra.mxu0 0.0
      %2770 = vmatpush.msra.mxu0 0.0
      %2771 = vmatpush.msra.mxu0 %v2697
      %2772 = vmatpush.msra.mxu0 %v1731
      %2773 = vmatpush.msra.mxu0 %v693
      %2774 = vmatmul.f32.gmra.mxu0 %v2756
      %v2775 = vpop.f32.mrf.mxu0
      %v2776 = vadd.f32 %v2733, %v2775
      %2777 = vdwg.mxu0
      %2778 = vmatpush.msra.mxu0 0.0
      %2779 = vmatpush.msra.mxu0 0.0
      %2780 = vmatpush.msra.mxu0 0.0
      %2781 = vmatpush.msra.mxu0 0.0
      %2782 = vmatpush.msra.mxu0 0.0
      %2783 = vmatpush.msra.mxu0 0.0
      %2784 = vmatpush.msra.mxu0 0.0
      %2785 = vmatpush.msra.mxu0 0.0
      %2786 = vmatpush.msra.mxu0 0.0
      %2787 = vmatpush.msra.mxu0 0.0
      %2788 = vmatpush.msra.mxu0 0.0
      %2789 = vmatpush.msra.mxu0 0.0
      %2790 = vmatpush.msra.mxu0 0.0
      %2791 = vmatpush.msra.mxu0 %v2698
      %2792 = vmatpush.msra.mxu0 %v1732
      %2793 = vmatpush.msra.mxu0 %v694
      %2794 = vmatmul.f32.gmra.mxu0 %v2756
      %v2795 = vpop.f32.mrf.mxu0
      %v2796 = vadd.f32 %v2753, %v2795
      %2797 = vdwg.mxu0
      %2798 = vrot.lane.b32.xlu0 %v2683, 15
      %v2799 = vpop.permute.xlu0 %2798
      %2800 = vrot.lane.b32.xlu0 %v2684, 15
      %v2801 = vpop.permute.xlu0 %2800
      %v2802 = vsel %vm877, %v2799, %v2801
      %v2805 = vsel %vm877, 0.0, %v2799
      %v2806 = vmul.f32 %v2805, %v891
      %v2807 = vmul.f32 %v2802, %v892
      %s2808 = scalar_lea.vmem %s11, 16
      %v2809 = vld [vmem:[%s2808] sm:$0xff]
      %v2811 = vsel %vm742, %v2809, 0
      %2813 = vmatpush.msra.mxu0 0.0
      %2814 = vmatpush.msra.mxu0 0.0
      %2815 = vmatpush.msra.mxu0 0.0
      %2816 = vmatpush.msra.mxu0 0.0
      %2817 = vmatpush.msra.mxu0 0.0
      %2818 = vmatpush.msra.mxu0 0.0
      %2819 = vmatpush.msra.mxu0 0.0
      %2820 = vmatpush.msra.mxu0 0.0
      %2821 = vmatpush.msra.mxu0 0.0
      %2822 = vmatpush.msra.mxu0 0.0
      %2823 = vmatpush.msra.mxu0 0.0
      %2824 = vmatpush.msra.mxu0 0.0
      %2825 = vmatpush.msra.mxu0 0.0
      %2826 = vmatpush.msra.mxu0 %v2806
      %2827 = vmatpush.msra.mxu0 %v1900
      %2828 = vmatpush.msra.mxu0 %v895
      %2829 = vmatmul.f32.gmra.mxu0 %v2811
      %v2830 = vpop.f32.mrf.mxu0
      %v2831 = vadd.f32 0.0, %v2830
      %2832 = vdwg.mxu0
      %2833 = vmatpush.msra.mxu0 0.0
      %2834 = vmatpush.msra.mxu0 0.0
      %2835 = vmatpush.msra.mxu0 0.0
      %2836 = vmatpush.msra.mxu0 0.0
      %2837 = vmatpush.msra.mxu0 0.0
      %2838 = vmatpush.msra.mxu0 0.0
      %2839 = vmatpush.msra.mxu0 0.0
      %2840 = vmatpush.msra.mxu0 0.0
      %2841 = vmatpush.msra.mxu0 0.0
      %2842 = vmatpush.msra.mxu0 0.0
      %2843 = vmatpush.msra.mxu0 0.0
      %2844 = vmatpush.msra.mxu0 0.0
      %2845 = vmatpush.msra.mxu0 0.0
      %2846 = vmatpush.msra.mxu0 %v2807
      %2847 = vmatpush.msra.mxu0 %v1901
      %2848 = vmatpush.msra.mxu0 %v896
      %2849 = vmatmul.f32.gmra.mxu0 %v2811
      %v2850 = vpop.f32.mrf.mxu0
      %v2851 = vadd.f32 0.0, %v2850
      %2852 = vdwg.mxu0
      %v2853 = vadd.f32 %v2776, %v2831
      %v2854 = vadd.f32 %v2796, %v2851
      %2855 = vrot.lane.b32.xlu0 %v2683, 1
      %v2856 = vpop.permute.xlu0 %2855
      %2857 = vrot.lane.b32.xlu0 %v2684, 1
      %v2858 = vpop.permute.xlu0 %2857
      %v2859 = vsel %vm984, %v2856, %v2858
      %v2862 = vsel %vm984, 0.0, %v2856
      %v2863 = vmul.f32 %v2862, %v998
      %v2864 = vmul.f32 %v2859, %v999
      %s2865 = scalar_lea.vmem %s11, 24
      %v2866 = vld [vmem:[%s2865] sm:$0xff]
      %v2868 = vsel %vm742, %v2866, 0
      %2870 = vmatpush.msra.mxu0 0.0
      %2871 = vmatpush.msra.mxu0 0.0
      %2872 = vmatpush.msra.mxu0 0.0
      %2873 = vmatpush.msra.mxu0 0.0
      %2874 = vmatpush.msra.mxu0 0.0
      %2875 = vmatpush.msra.mxu0 0.0
      %2876 = vmatpush.msra.mxu0 0.0
      %2877 = vmatpush.msra.mxu0 0.0
      %2878 = vmatpush.msra.mxu0 0.0
      %2879 = vmatpush.msra.mxu0 0.0
      %2880 = vmatpush.msra.mxu0 0.0
      %2881 = vmatpush.msra.mxu0 0.0
      %2882 = vmatpush.msra.mxu0 0.0
      %2883 = vmatpush.msra.mxu0 %v2863
      %2884 = vmatpush.msra.mxu0 %v1991
      %2885 = vmatpush.msra.mxu0 %v1002
      %2886 = vmatmul.f32.gmra.mxu0 %v2868
      %v2887 = vpop.f32.mrf.mxu0
      %v2888 = vadd.f32 0.0, %v2887
      %2889 = vdwg.mxu0
      %2890 = vmatpush.msra.mxu0 0.0
      %2891 = vmatpush.msra.mxu0 0.0
      %2892 = vmatpush.msra.mxu0 0.0
      %2893 = vmatpush.msra.mxu0 0.0
      %2894 = vmatpush.msra.mxu0 0.0
      %2895 = vmatpush.msra.mxu0 0.0
      %2896 = vmatpush.msra.mxu0 0.0
      %2897 = vmatpush.msra.mxu0 0.0
      %2898 = vmatpush.msra.mxu0 0.0
      %2899 = vmatpush.msra.mxu0 0.0
      %2900 = vmatpush.msra.mxu0 0.0
      %2901 = vmatpush.msra.mxu0 0.0
      %2902 = vmatpush.msra.mxu0 0.0
      %2903 = vmatpush.msra.mxu0 %v2864
      %2904 = vmatpush.msra.mxu0 %v1992
      %2905 = vmatpush.msra.mxu0 %v1003
      %2906 = vmatmul.f32.gmra.mxu0 %v2868
      %v2907 = vpop.f32.mrf.mxu0
      %v2908 = vadd.f32 0.0, %v2907
      %2909 = vdwg.mxu0
      %v2910 = vadd.f32 %v2853, %v2888
      %v2911 = vadd.f32 %v2854, %v2908
      %s2912 = scalar_lea.vmem %s11, 32
      %v2913 = vld [vmem:[%s2912] sm:$0xff]
      %v2915 = vsel %vm742, %v2913, 0
      %2917 = vmatpush.msra.mxu0 0.0
      %2918 = vmatpush.msra.mxu0 0.0
      %2919 = vmatpush.msra.mxu0 0.0
      %2920 = vmatpush.msra.mxu0 0.0
      %2921 = vmatpush.msra.mxu0 0.0
      %2922 = vmatpush.msra.mxu0 0.0
      %2923 = vmatpush.msra.mxu0 0.0
      %2924 = vmatpush.msra.mxu0 0.0
      %2925 = vmatpush.msra.mxu0 0.0
      %2926 = vmatpush.msra.mxu0 0.0
      %2927 = vmatpush.msra.mxu0 0.0
      %2928 = vmatpush.msra.mxu0 0.0
      %2929 = vmatpush.msra.mxu0 0.0
      %2930 = vmatpush.msra.mxu0 %v2683
      %2931 = vmatpush.msra.mxu0 %v1707
      %2932 = vmatpush.msra.mxu0 %v634
      %2933 = vmatmul.f32.gmra.mxu0 %v2915
      %v2934 = vpop.f32.mrf.mxu0
      %v2935 = vadd.f32 0.0, %v2934
      %2936 = vdwg.mxu0
      %2937 = vmatpush.msra.mxu0 0.0
      %2938 = vmatpush.msra.mxu0 0.0
      %2939 = vmatpush.msra.mxu0 0.0
      %2940 = vmatpush.msra.mxu0 0.0
      %2941 = vmatpush.msra.mxu0 0.0
      %2942 = vmatpush.msra.mxu0 0.0
      %2943 = vmatpush.msra.mxu0 0.0
      %2944 = vmatpush.msra.mxu0 0.0
      %2945 = vmatpush.msra.mxu0 0.0
      %2946 = vmatpush.msra.mxu0 0.0
      %2947 = vmatpush.msra.mxu0 0.0
      %2948 = vmatpush.msra.mxu0 0.0
      %2949 = vmatpush.msra.mxu0 0.0
      %2950 = vmatpush.msra.mxu0 %v2684
      %2951 = vmatpush.msra.mxu0 %v1708
      %2952 = vmatpush.msra.mxu0 %v635
      %2953 = vmatmul.f32.gmra.mxu0 %v2915
      %v2954 = vpop.f32.mrf.mxu0
      %v2955 = vadd.f32 0.0, %v2954
      %2956 = vdwg.mxu0
      %v2957 = vadd.f32 %v2910, %v2935
      %v2958 = vadd.f32 %v2911, %v2955
      %2959 = vrot.lane.b32.xlu0 %v2683, 127
      %v2960 = vpop.permute.xlu0 %2959
      %2961 = vrot.lane.b32.xlu0 %v2684, 127
      %v2962 = vpop.permute.xlu0 %2961
      %v2963 = vsel %vm1162, %v2960, %v2962
      %v2966 = vsel %vm1162, %v2962, 0.0
      %v2967 = vmul.f32 %v2963, %v1176
      %v2968 = vmul.f32 %v2966, %v1177
      %s2969 = scalar_lea.vmem %s11, 40
      %v2970 = vld [vmem:[%s2969] sm:$0xff]
      %v2972 = vsel %vm742, %v2970, 0
      %2974 = vmatpush.msra.mxu0 0.0
      %2975 = vmatpush.msra.mxu0 0.0
      %2976 = vmatpush.msra.mxu0 0.0
      %2977 = vmatpush.msra.mxu0 0.0
      %2978 = vmatpush.msra.mxu0 0.0
      %2979 = vmatpush.msra.mxu0 0.0
      %2980 = vmatpush.msra.mxu0 0.0
      %2981 = vmatpush.msra.mxu0 0.0
      %2982 = vmatpush.msra.mxu0 0.0
      %2983 = vmatpush.msra.mxu0 0.0
      %2984 = vmatpush.msra.mxu0 0.0
      %2985 = vmatpush.msra.mxu0 0.0
      %2986 = vmatpush.msra.mxu0 0.0
      %2987 = vmatpush.msra.mxu0 %v2967
      %2988 = vmatpush.msra.mxu0 %v2153
      %2989 = vmatpush.msra.mxu0 %v1180
      %2990 = vmatmul.f32.gmra.mxu0 %v2972
      %v2991 = vpop.f32.mrf.mxu0
      %v2992 = vadd.f32 0.0, %v2991
      %2993 = vdwg.mxu0
      %2994 = vmatpush.msra.mxu0 0.0
      %2995 = vmatpush.msra.mxu0 0.0
      %2996 = vmatpush.msra.mxu0 0.0
      %2997 = vmatpush.msra.mxu0 0.0
      %2998 = vmatpush.msra.mxu0 0.0
      %2999 = vmatpush.msra.mxu0 0.0
      %3000 = vmatpush.msra.mxu0 0.0
      %3001 = vmatpush.msra.mxu0 0.0
      %3002 = vmatpush.msra.mxu0 0.0
      %3003 = vmatpush.msra.mxu0 0.0
      %3004 = vmatpush.msra.mxu0 0.0
      %3005 = vmatpush.msra.mxu0 0.0
      %3006 = vmatpush.msra.mxu0 0.0
      %3007 = vmatpush.msra.mxu0 %v2968
      %3008 = vmatpush.msra.mxu0 %v2154
      %3009 = vmatpush.msra.mxu0 %v1181
      %3010 = vmatmul.f32.gmra.mxu0 %v2972
      %v3011 = vpop.f32.mrf.mxu0
      %v3012 = vadd.f32 0.0, %v3011
      %3013 = vdwg.mxu0
      %v3014 = vadd.f32 %v2957, %v2992
      %v3015 = vadd.f32 %v2958, %v3012
      %3016 = vrot.lane.b32.xlu0 %v2683, 113
      %v3017 = vpop.permute.xlu0 %3016
      %3018 = vrot.lane.b32.xlu0 %v2684, 113
      %v3019 = vpop.permute.xlu0 %3018
      %v3020 = vsel %vm1269, %v3017, %v3019
      %v3023 = vsel %vm1269, %v3019, 0.0
      %v3024 = vmul.f32 %v3020, %v1283
      %v3025 = vmul.f32 %v3023, %v1284
      %s3026 = scalar_lea.vmem %s11, 48
      %v3027 = vld [vmem:[%s3026] sm:$0xff]
      %v3029 = vsel %vm742, %v3027, 0
      %3031 = vmatpush.msra.mxu0 0.0
      %3032 = vmatpush.msra.mxu0 0.0
      %3033 = vmatpush.msra.mxu0 0.0
      %3034 = vmatpush.msra.mxu0 0.0
      %3035 = vmatpush.msra.mxu0 0.0
      %3036 = vmatpush.msra.mxu0 0.0
      %3037 = vmatpush.msra.mxu0 0.0
      %3038 = vmatpush.msra.mxu0 0.0
      %3039 = vmatpush.msra.mxu0 0.0
      %3040 = vmatpush.msra.mxu0 0.0
      %3041 = vmatpush.msra.mxu0 0.0
      %3042 = vmatpush.msra.mxu0 0.0
      %3043 = vmatpush.msra.mxu0 0.0
      %3044 = vmatpush.msra.mxu0 %v3024
      %3045 = vmatpush.msra.mxu0 %v2244
      %3046 = vmatpush.msra.mxu0 %v1287
      %3047 = vmatmul.f32.gmra.mxu0 %v3029
      %v3048 = vpop.f32.mrf.mxu0
      %v3049 = vadd.f32 0.0, %v3048
      %3050 = vdwg.mxu0
      %3051 = vmatpush.msra.mxu0 0.0
      %3052 = vmatpush.msra.mxu0 0.0
      %3053 = vmatpush.msra.mxu0 0.0
      %3054 = vmatpush.msra.mxu0 0.0
      %3055 = vmatpush.msra.mxu0 0.0
      %3056 = vmatpush.msra.mxu0 0.0
      %3057 = vmatpush.msra.mxu0 0.0
      %3058 = vmatpush.msra.mxu0 0.0
      %3059 = vmatpush.msra.mxu0 0.0
      %3060 = vmatpush.msra.mxu0 0.0
      %3061 = vmatpush.msra.mxu0 0.0
      %3062 = vmatpush.msra.mxu0 0.0
      %3063 = vmatpush.msra.mxu0 0.0
      %3064 = vmatpush.msra.mxu0 %v3025
      %3065 = vmatpush.msra.mxu0 %v2245
      %3066 = vmatpush.msra.mxu0 %v1288
      %3067 = vmatmul.f32.gmra.mxu0 %v3029
      %v3068 = vpop.f32.mrf.mxu0
      %v3069 = vadd.f32 0.0, %v3068
      %3070 = vdwg.mxu0
      %v3071 = vadd.f32 %v3014, %v3049
      %v3072 = vadd.f32 %v3015, %v3069
      %3073 = vrot.lane.b32.xlu0 %v2683, 112
      %v3074 = vpop.permute.xlu0 %3073
      %3075 = vrot.lane.b32.xlu0 %v2684, 112
      %v3076 = vpop.permute.xlu0 %3075
      %v3077 = vsel %vm1376, %v3074, %v3076
      %v3080 = vsel %vm1376, %v3076, 0.0
      %v3081 = vmul.f32 %v3077, %v1390
      %v3082 = vmul.f32 %v3080, %v1391
      %s3083 = scalar_lea.vmem %s11, 56
      %v3084 = vld [vmem:[%s3083] sm:$0xff]
      %v3086 = vsel %vm742, %v3084, 0
      %3088 = vmatpush.msra.mxu0 0.0
      %3089 = vmatpush.msra.mxu0 0.0
      %3090 = vmatpush.msra.mxu0 0.0
      %3091 = vmatpush.msra.mxu0 0.0
      %3092 = vmatpush.msra.mxu0 0.0
      %3093 = vmatpush.msra.mxu0 0.0
      %3094 = vmatpush.msra.mxu0 0.0
      %3095 = vmatpush.msra.mxu0 0.0
      %3096 = vmatpush.msra.mxu0 0.0
      %3097 = vmatpush.msra.mxu0 0.0
      %3098 = vmatpush.msra.mxu0 0.0
      %3099 = vmatpush.msra.mxu0 0.0
      %3100 = vmatpush.msra.mxu0 0.0
      %3101 = vmatpush.msra.mxu0 %v3081
      %3102 = vmatpush.msra.mxu0 %v2335
      %3103 = vmatpush.msra.mxu0 %v1394
      %3104 = vmatmul.f32.gmra.mxu0 %v3086
      %v3105 = vpop.f32.mrf.mxu0
      %v3106 = vadd.f32 0.0, %v3105
      %3107 = vdwg.mxu0
      %3108 = vmatpush.msra.mxu0 0.0
      %3109 = vmatpush.msra.mxu0 0.0
      %3110 = vmatpush.msra.mxu0 0.0
      %3111 = vmatpush.msra.mxu0 0.0
      %3112 = vmatpush.msra.mxu0 0.0
      %3113 = vmatpush.msra.mxu0 0.0
      %3114 = vmatpush.msra.mxu0 0.0
      %3115 = vmatpush.msra.mxu0 0.0
      %3116 = vmatpush.msra.mxu0 0.0
      %3117 = vmatpush.msra.mxu0 0.0
      %3118 = vmatpush.msra.mxu0 0.0
      %3119 = vmatpush.msra.mxu0 0.0
      %3120 = vmatpush.msra.mxu0 0.0
      %3121 = vmatpush.msra.mxu0 %v3082
      %3122 = vmatpush.msra.mxu0 %v2336
      %3123 = vmatpush.msra.mxu0 %v1395
      %3124 = vmatmul.f32.gmra.mxu0 %v3086
      %v3125 = vpop.f32.mrf.mxu0
      %v3126 = vadd.f32 0.0, %v3125
      %3127 = vdwg.mxu0
      %v3128 = vadd.f32 %v3071, %v3106
      %v3129 = vadd.f32 %v3072, %v3126
      %3130 = vrot.lane.b32.xlu0 %v2683, 111
      %v3131 = vpop.permute.xlu0 %3130
      %3132 = vrot.lane.b32.xlu0 %v2684, 111
      %v3133 = vpop.permute.xlu0 %3132
      %v3134 = vsel %vm1483, %v3131, %v3133
      %v3137 = vsel %vm1483, %v3133, 0.0
      %v3138 = vmul.f32 %v3134, %v1497
      %v3139 = vmul.f32 %v3137, %v1498
      %s3140 = scalar_lea.vmem %s11, 64
      %v3141 = vld [vmem:[%s3140] sm:$0xff]
      %v3143 = vsel %vm742, %v3141, 0
      %3145 = vmatpush.msra.mxu0 0.0
      %3146 = vmatpush.msra.mxu0 0.0
      %3147 = vmatpush.msra.mxu0 0.0
      %3148 = vmatpush.msra.mxu0 0.0
      %3149 = vmatpush.msra.mxu0 0.0
      %3150 = vmatpush.msra.mxu0 0.0
      %3151 = vmatpush.msra.mxu0 0.0
      %3152 = vmatpush.msra.mxu0 0.0
      %3153 = vmatpush.msra.mxu0 0.0
      %3154 = vmatpush.msra.mxu0 0.0
      %3155 = vmatpush.msra.mxu0 0.0
      %3156 = vmatpush.msra.mxu0 0.0
      %3157 = vmatpush.msra.mxu0 0.0
      %3158 = vmatpush.msra.mxu0 %v3138
      %3159 = vmatpush.msra.mxu0 %v2426
      %3160 = vmatpush.msra.mxu0 %v1501
      %3161 = vmatmul.f32.gmra.mxu0 %v3143
      %v3162 = vpop.f32.mrf.mxu0
      %v3163 = vadd.f32 0.0, %v3162
      %3164 = vdwg.mxu0
      %3165 = vmatpush.msra.mxu0 0.0
      %3166 = vmatpush.msra.mxu0 0.0
      %3167 = vmatpush.msra.mxu0 0.0
      %3168 = vmatpush.msra.mxu0 0.0
      %3169 = vmatpush.msra.mxu0 0.0
      %3170 = vmatpush.msra.mxu0 0.0
      %3171 = vmatpush.msra.mxu0 0.0
      %3172 = vmatpush.msra.mxu0 0.0
      %3173 = vmatpush.msra.mxu0 0.0
      %3174 = vmatpush.msra.mxu0 0.0
      %3175 = vmatpush.msra.mxu0 0.0
      %3176 = vmatpush.msra.mxu0 0.0
      %3177 = vmatpush.msra.mxu0 0.0
      %3178 = vmatpush.msra.mxu0 %v3139
      %3179 = vmatpush.msra.mxu0 %v2427
      %3180 = vmatpush.msra.mxu0 %v1502
      %3181 = vmatmul.f32.gmra.mxu0 %v3143
      %v3182 = vpop.f32.mrf.mxu0
      %v3183 = vadd.f32 0.0, %v3182
      %3184 = vdwg.mxu0
      %v3185 = vadd.f32 %v3128, %v3163
      %v3186 = vadd.f32 %v3129, %v3183
      %v3187 = vld [vmem:[%s12] sm:$0xff]
      %3189 = vset.pattern.permute.xlu0 0
      %3190 = vperm.xlu0 %3189, %v3187
      %v3191 = vpop.permute.xlu0 %3190
      %v3193 = vadd.f32 %v3185, %v3191
      %v3194 = vadd.f32 %v3186, %v3191
      %v3195 = vadd.f32 %v3193, %v3194
      %3196 = vadd.xlane.f32.xlu0 %v3195
      %v3197 = vpop.xlane.xlu0 %3196
      %v3198 = vrot.slane %v3197, 4
      %v3199 = vadd.f32 %v3197, %v3198
      %v3200 = vrot.slane %v3199, 2
      %v3201 = vadd.f32 %v3199, %v3200
      %v3202 = vrot.slane %v3201, 1
      %v3203 = vadd.f32 %v3201, %v3202
      %s3204 = vtos %v3203
      %v3205 = vmul.f32 %v3193, %v3193
      %v3206 = vmul.f32 %v3194, %v3194
      %v3207 = vadd.f32 %v3205, %v3206
      %3208 = vadd.xlane.f32.xlu0 %v3207
      %v3209 = vpop.xlane.xlu0 %3208
      %v3210 = vrot.slane %v3209, 4
      %v3211 = vadd.f32 %v3209, %v3210
      %v3212 = vrot.slane %v3211, 2
      %v3213 = vadd.f32 %v3211, %v3212
      %v3214 = vrot.slane %v3213, 1
      %v3215 = vadd.f32 %v3213, %v3214
      %s3216 = vtos %v3215
      %v3217 = vrcp.pop 2048.0
      %v3218 = vmul.f32 2048.0, %v3217
      %v3219 = vsub.f32 1.0, %v3218
      %v3220 = vmul.f32 %v3217, %v3219
      %v3221 = vadd.f32 %v3217, %v3220
      %vm3222 = vweird.f32 %v3217
      %v3223 = vsel %vm3222, %v3217, %v3221
      %s3224 = vtos %v3223
      %s3225 = smul.f32 %s3204, %s3224
      %v3226 = vrcp.pop 2048.0
      %v3227 = vmul.f32 2048.0, %v3226
      %v3228 = vsub.f32 1.0, %v3227
      %v3229 = vmul.f32 %v3226, %v3228
      %v3230 = vadd.f32 %v3226, %v3229
      %vm3231 = vweird.f32 %v3226
      %v3232 = vsel %vm3231, %v3226, %v3230
      %s3233 = vtos %v3232
      %s3234 = smul.f32 %s3216, %s3233
      %s3235 = smul.f32 %s3225, %s3225
      %s3236 = ssub.f32 %s3234, %s3235
      %v3237 = vstv %s3225
      %v3238 = vsub.f32 %v3193, %v3237
      %v3239 = vsub.f32 %v3194, %v3237
      %s3240 = sadd.f32 %s3236, 1e-05
      %v3241 = vstv %s3240
      %v3242 = vrsqrt.pop %v3241
      %v3243 = vmul.f32 %v3242, %v3241
      %v3244 = vmul.f32 %v3243, %v3242
      %v3245 = vmul.f32 0.5, %v3244
      %v3246 = vsub.f32 1.5, %v3245
      %v3247 = vmul.f32 %v3242, %v3246
      %vm3248 = vweird.f32 %v3241
      %vm3249 = vweird.f32 %v3242
      %vm3250 = vmor %vm3248, %vm3249
      %v3251 = vsel %vm3250, %v3242, %v3247
      %s3252 = vtos %v3251
      %v3253 = vstv %s3252
      %v3254 = vmul.f32 %v3238, %v3253
      %v3255 = vmul.f32 %v3239, %v3253
      %v3256 = vtanh.pop %v3254
      %v3257 = vtanh.pop %v3255
      %v3258 = vld [vmem:[%s13] sm:$0xff]
      %v3259 = vld [vmem:[%s14] sm:$0xff]
      %3261 = vset.pattern.permute.xlu0 0
      %3262 = vperm.xlu0 %3261, %v3259
      %v3263 = vpop.permute.xlu0 %3262
      %v3266 = vsel %vm714, %v3258, 0
      %3268 = vmatpush.msra.mxu0 0.0
      %3269 = vmatpush.msra.mxu0 0.0
      %3270 = vmatpush.msra.mxu0 0.0
      %3271 = vmatpush.msra.mxu0 0.0
      %3272 = vmatpush.msra.mxu0 0.0
      %3273 = vmatpush.msra.mxu0 0.0
      %3274 = vmatpush.msra.mxu0 0.0
      %3275 = vmatpush.msra.mxu0 0.0
      %3276 = vmatpush.msra.mxu0 0.0
      %3277 = vmatpush.msra.mxu0 0.0
      %3278 = vmatpush.msra.mxu0 0.0
      %3279 = vmatpush.msra.mxu0 0.0
      %3280 = vmatpush.msra.mxu0 0.0
      %3281 = vmatpush.msra.mxu0 0.0
      %3282 = vmatpush.msra.mxu0 %v2683
      %3283 = vmatpush.msra.mxu0 %v1707
      %3284 = vmatmul.f32.gmra.mxu0 %v3266
      %v3285 = vpop.f32.mrf.mxu0
      %v3286 = vadd.f32 %v3263, %v3285
      %3287 = vdwg.mxu0
      %3288 = vmatpush.msra.mxu0 0.0
      %3289 = vmatpush.msra.mxu0 0.0
      %3290 = vmatpush.msra.mxu0 0.0
      %3291 = vmatpush.msra.mxu0 0.0
      %3292 = vmatpush.msra.mxu0 0.0
      %3293 = vmatpush.msra.mxu0 0.0
      %3294 = vmatpush.msra.mxu0 0.0
      %3295 = vmatpush.msra.mxu0 0.0
      %3296 = vmatpush.msra.mxu0 0.0
      %3297 = vmatpush.msra.mxu0 0.0
      %3298 = vmatpush.msra.mxu0 0.0
      %3299 = vmatpush.msra.mxu0 0.0
      %3300 = vmatpush.msra.mxu0 0.0
      %3301 = vmatpush.msra.mxu0 0.0
      %3302 = vmatpush.msra.mxu0 %v2684
      %3303 = vmatpush.msra.mxu0 %v1708
      %3304 = vmatmul.f32.gmra.mxu0 %v3266
      %v3305 = vpop.f32.mrf.mxu0
      %v3306 = vadd.f32 %v3263, %v3305
      %3307 = vdwg.mxu0
      %v3308 = vadd.f32 %v3286, %v3306
      %3309 = vadd.xlane.f32.xlu0 %v3308
      %v3310 = vpop.xlane.xlu0 %3309
      %v3311 = vrot.slane %v3310, 4
      %v3312 = vadd.f32 %v3310, %v3311
      %v3313 = vrot.slane %v3312, 2
      %v3314 = vadd.f32 %v3312, %v3313
      %v3315 = vrot.slane %v3314, 1
      %v3316 = vadd.f32 %v3314, %v3315
      %s3317 = vtos %v3316
      %v3318 = vmul.f32 %v3286, %v3286
      %v3319 = vmul.f32 %v3306, %v3306
      %v3320 = vadd.f32 %v3318, %v3319
      %3321 = vadd.xlane.f32.xlu0 %v3320
      %v3322 = vpop.xlane.xlu0 %3321
      %v3323 = vrot.slane %v3322, 4
      %v3324 = vadd.f32 %v3322, %v3323
      %v3325 = vrot.slane %v3324, 2
      %v3326 = vadd.f32 %v3324, %v3325
      %v3327 = vrot.slane %v3326, 1
      %v3328 = vadd.f32 %v3326, %v3327
      %s3329 = vtos %v3328
      %v3330 = vrcp.pop 2048.0
      %v3331 = vmul.f32 2048.0, %v3330
      %v3332 = vsub.f32 1.0, %v3331
      %v3333 = vmul.f32 %v3330, %v3332
      %v3334 = vadd.f32 %v3330, %v3333
      %vm3335 = vweird.f32 %v3330
      %v3336 = vsel %vm3335, %v3330, %v3334
      %s3337 = vtos %v3336
      %s3338 = smul.f32 %s3317, %s3337
      %v3339 = vrcp.pop 2048.0
      %v3340 = vmul.f32 2048.0, %v3339
      %v3341 = vsub.f32 1.0, %v3340
      %v3342 = vmul.f32 %v3339, %v3341
      %v3343 = vadd.f32 %v3339, %v3342
      %vm3344 = vweird.f32 %v3339
      %v3345 = vsel %vm3344, %v3339, %v3343
      %s3346 = vtos %v3345
      %s3347 = smul.f32 %s3329, %s3346
      %s3348 = smul.f32 %s3338, %s3338
      %s3349 = ssub.f32 %s3347, %s3348
      %v3350 = vstv %s3338
      %v3351 = vsub.f32 %v3286, %v3350
      %v3352 = vsub.f32 %v3306, %v3350
      %s3353 = sadd.f32 %s3349, 1e-05
      %v3354 = vstv %s3353
      %v3355 = vrsqrt.pop %v3354
      %v3356 = vmul.f32 %v3355, %v3354
      %v3357 = vmul.f32 %v3356, %v3355
      %v3358 = vmul.f32 0.5, %v3357
      %v3359 = vsub.f32 1.5, %v3358
      %v3360 = vmul.f32 %v3355, %v3359
      %vm3361 = vweird.f32 %v3354
      %vm3362 = vweird.f32 %v3355
      %vm3363 = vmor %vm3361, %vm3362
      %v3364 = vsel %vm3363, %v3355, %v3360
      %s3365 = vtos %v3364
      %v3366 = vstv %s3365
      %v3367 = vmul.f32 %v3351, %v3366
      %v3368 = vmul.f32 %v3352, %v3366
      %v3369 = vtanh.pop %v3367
      %v3370 = vtanh.pop %v3368
      %v3371 = vmul.f32 %v3256, %v3369
      %v3372 = vmul.f32 %v3257, %v3370
      %3373 = vst [vmem:[%s623] sm:$0xff] %v3371
      %3374 = vst [vmem:[%s623 + $0x8] sm:$0xff] %v3372
      %p3375 = scmp.lt.s32.totalorder %s29, 1
      %s3376 = scalar_select %p3375, %s29, 1
      %s3377 = smul.addr %s3376, 2
      %s3378 = smul.addr %s3377, 8
      %s3379 = scalar_lea.vmem %s15, %s3378
      %p3380 = scmp.lt.s32.totalorder %s29, 1
      %s3381 = scalar_select %p3380, %s29, 1
      %s3382 = smul.addr %s3381, 2
      %s3383 = smul.addr %s3382, 8
      %s3384 = scalar_lea.vmem %s16, %s3383
      %p3385 = scmp.lt.s32.totalorder %s29, 1
      %s3386 = scalar_select %p3385, %s29, 1
      %s3387 = smul.addr %s3386, 2
      %s3388 = smul.addr %s3387, 8
      %s3389 = scalar_lea.vmem %s17, %s3388
      // Predicated region
      $region81: #{causal_lstm_forward.1} parent=79 // pred_check
        %p3390 = pneg %p382
      $region82: #{causal_lstm_forward.1} parent=79 // pred_check_branch
        %3392 = sbr.rel (%p3390) target = $region84
      $region83: #{causal_lstm_forward.1} parent=79 // pred_region
        _
      $region84: #{causal_lstm_forward.1} parent=79 // pred_fallthru
        _
      // Predicated region
      $region85: #{causal_lstm_forward.1} parent=79 // pred_check
        %p3393 = pneg %p408
      $region86: #{causal_lstm_forward.1} parent=79 // pred_check_branch
        %3395 = sbr.rel (%p3393) target = $region88
      $region87: #{causal_lstm_forward.1} parent=79 // pred_region
        _
      $region88: #{causal_lstm_forward.1} parent=79 // pred_fallthru
        _
      // Predicated region
      $region89: #{causal_lstm_forward.1} parent=79 // pred_check
        %p3396 = pneg %p434
      $region90: #{causal_lstm_forward.1} parent=79 // pred_check_branch
        %3398 = sbr.rel (%p3396) target = $region92
      $region91: #{causal_lstm_forward.1} parent=79 // pred_region
        _
      $region92: #{causal_lstm_forward.1} parent=79 // pred_fallthru
        _
    $region80: #{causal_lstm_forward.1} parent=5 // pred_fallthru
      _
    %p3399 = scmp.le.s32.totalorder 2, %s24
    // Predicated region
    $region93: #{causal_lstm_forward.1} parent=5 // pred_check
      %p3400 = pneg %p3399
    $region94: #{causal_lstm_forward.1} parent=5 // pred_check_branch
      %3402 = sbr.rel (%p3400) target = $region96
    $region95: #{causal_lstm_forward.1} parent=5 // pred_region
      %s3403 = ssub.s32 %s24, 2
      // Predicated region
      $region97: #{causal_lstm_forward.1} parent=95 // pred_check
        %p3404 = pneg %p388
      $region98: #{causal_lstm_forward.1} parent=95 // pred_check_branch
        %3406 = sbr.rel (%p3404) target = $region100
      $region99: #{causal_lstm_forward.1} parent=95 // pred_region
        %p3407 = scmp.lt.s32.totalorder %s30, 1
        %s3408 = scalar_select %p3407, %s30, 1
        %s3409 = smul.addr %s3408, 2
        %s3410 = smul.addr %s3409, 8
        %s3411 = scalar_lea.vmem %s15, %s3410
      $region100: #{causal_lstm_forward.1} parent=95 // pred_fallthru
        _
      // Predicated region
      $region101: #{causal_lstm_forward.1} parent=95 // pred_check
        %p3412 = pneg %p414
      $region102: #{causal_lstm_forward.1} parent=95 // pred_check_branch
        %3414 = sbr.rel (%p3412) target = $region104
      $region103: #{causal_lstm_forward.1} parent=95 // pred_region
        %p3415 = scmp.lt.s32.totalorder %s30, 1
        %s3416 = scalar_select %p3415, %s30, 1
        %s3417 = smul.addr %s3416, 2
        %s3418 = smul.addr %s3417, 8
        %s3419 = scalar_lea.vmem %s16, %s3418
      $region104: #{causal_lstm_forward.1} parent=95 // pred_fallthru
        _
      // Predicated region
      $region105: #{causal_lstm_forward.1} parent=95 // pred_check
        %p3420 = pneg %p440
      $region106: #{causal_lstm_forward.1} parent=95 // pred_check_branch
        %3422 = sbr.rel (%p3420) target = $region108
      $region107: #{causal_lstm_forward.1} parent=95 // pred_region
        %p3423 = scmp.lt.s32.totalorder %s30, 1
        %s3424 = scalar_select %p3423, %s30, 1
        %s3425 = smul.addr %s3424, 2
        %s3426 = smul.addr %s3425, 8
        %s3427 = scalar_lea.vmem %s17, %s3426
      $region108: #{causal_lstm_forward.1} parent=95 // pred_fallthru
        _
    $region96: #{causal_lstm_forward.1} parent=5 // pred_fallthru
      _
  $region6: #{causal_lstm_forward.1} parent=0 // loop_footer
    %s28 = sadd.s32 1, %s24
  $region7: #{causal_lstm_forward.1} parent=0 // loop_footer_branch
    %23 = sbr.rel target = $region3
  $region8: #{causal_lstm_forward.1} parent=0 // loop_exit
    _

</llo_original>
